<compile_context>
chip_gen: v7x
topology: tpu7x:2x2x1
jax: 0.10.0
libtpu: 0.0.40
codegen_flags: <defaults>
</compile_context>

<pallas_src>
import jax
import jax.numpy as jnp
from jax.experimental import pallas as pl
from jax.experimental.pallas import tpu as pltpu

TILE_G = 8                  # sublane groups per batch tile
TILE_B = TILE_G * 128       # 1024 samples per grid step

# ---- packed-parameter offsets (single f32 SMEM vector) ----
O_W1 = 0                    # (4,16) row-major: i*16 + j
O_B1 = O_W1 + 64
O_W2 = O_B1 + 16            # (16,2): i*2 + j
O_B2 = O_W2 + 32
O_QC = O_B2 + 2             # cos(qw/2), 12 entries
O_QS = O_QC + 12            # sin(qw/2), 12 entries
O_W3 = O_QS + 12            # (2,8): i*8 + j
O_B3 = O_W3 + 16
O_W4 = O_B3 + 8             # (8,1): j
O_B4 = O_W4 + 8
N_PARAMS = O_B4 + 1         # 171


def hybrid_kernel(x_ref, p_ref, o_ref):
    # x_ref: (4, TILE_G, 128) = (feature, sublane-group, lane)  lane-dense batch
    # p_ref: (N_PARAMS,) f32 in SMEM
    # o_ref: (TILE_G, 128)
    xf = [x_ref[f] for f in range(4)]                      # 4 x (G,128)

    # ---- classical head: Linear(4,16) + ReLU + Linear(16,2) + Tanh ----
    h = []
    for j in range(16):
        acc = p_ref[O_B1 + j] + p_ref[O_W1 + j] * xf[0]
        for i in range(1, 4):
            acc = acc + p_ref[O_W1 + i * 16 + j] * xf[i]
        h.append(jnp.maximum(acc, 0.0))

    y = []
    for j in range(2):
        acc = p_ref[O_B2 + j] + p_ref[O_W2 + j] * h[0]
        for i in range(1, 16):
            acc = acc + p_ref[O_W2 + i * 2 + j] * h[i]
        y.append(jnp.tanh(acc))
    x0, x1 = y[0], y[1]                                    # angles, (G,128)

    # ---- data-angle cos/sin: one cos+sin per qubit, recurrences for layers ----
    def data_cs(a):
        c1 = jnp.cos(0.5 * a)                              # cos(a/2)
        s1 = jnp.sin(0.5 * a)
        c2 = 2.0 * c1 * c1 - 1.0                           # cos(a)
        s2 = 2.0 * s1 * c1                                 # sin(a)
        c3 = (4.0 * c1 * c1 - 3.0) * c1                    # cos(3a/2)
        s3 = (3.0 - 4.0 * s1 * s1) * s1                    # sin(3a/2)
        return (c1, c2, c3), (s1, s2, s3)

    cq0, sq0 = data_cs(x0)
    cq1, sq1 = data_cs(x1)

    # ---- exact 2-qubit statevector, index = 2*q1 + q0, start in |00> ----
    zero = jnp.zeros_like(x0)
    one = jnp.ones_like(x0)
    ar = [one, zero, zero, zero]
    ai = [zero, zero, zero, zero]

    def ry_pair(i, j, c, s):
        nri = c * ar[i] - s * ar[j]
        nii = c * ai[i] - s * ai[j]
        nrj = s * ar[i] + c * ar[j]
        nij = s * ai[i] + c * ai[j]
        ar[i], ai[i], ar[j], ai[j] = nri, nii, nrj, nij

    def ry(q, c, s):
        if q == 0:
            ry_pair(0, 1, c, s)
            ry_pair(2, 3, c, s)
        else:
            ry_pair(0, 2, c, s)
            ry_pair(1, 3, c, s)

    def rz(q, c, s):
        idx0 = (0, 2) if q == 0 else (0, 1)   # q-bit == 0 -> phase e^{-i t/2}
        idx1 = (1, 3) if q == 0 else (2, 3)   # q-bit == 1 -> phase e^{+i t/2}
        for i in idx0:
            nr = c * ar[i] + s * ai[i]
            ni = c * ai[i] - s * ar[i]
            ar[i], ai[i] = nr, ni
        for i in idx1:
            nr = c * ar[i] - s * ai[i]
            ni = c * ai[i] + s * ar[i]
            ar[i], ai[i] = nr, ni

    def cx01():   # CX(control=q0, target=q1): swap |01> (idx 1) and |11> (idx 3)
        ar[1], ar[3] = ar[3], ar[1]
        ai[1], ai[3] = ai[3], ai[1]

    k = 0
    for layer in range(3):
        ry(0, cq0[layer], sq0[layer])
        ry(1, cq1[layer], sq1[layer])
        cx01()
        for q in range(2):
            ry(q, p_ref[O_QC + k], p_ref[O_QS + k]); k += 1
            rz(q, p_ref[O_QC + k], p_ref[O_QS + k]); k += 1
        cx01()

    p = [ar[i] * ar[i] + ai[i] * ai[i] for i in range(4)]
    z_q1 = p[0] + p[1] - p[2] - p[3]        # <ZI>  (Z on qubit 1)
    z_q0 = p[0] - p[1] + p[2] - p[3]        # <IZ>  (Z on qubit 0)
    q_feat = [z_q1, z_q0]

    # ---- output head: Linear(2,8) + ReLU + Linear(8,1) ----
    r = []
    for j in range(8):
        acc = (p_ref[O_B3 + j]
               + p_ref[O_W3 + j] * q_feat[0]
               + p_ref[O_W3 + 8 + j] * q_feat[1])
        r.append(jnp.maximum(acc, 0.0))

    out = p_ref[O_B4] + p_ref[O_W4] * r[0]
    for j in range(1, 8):
        out = out + p_ref[O_W4 + j] * r[j]
    o_ref[...] = out                                       # lane-dense store


def pack_params(w1, b1, w2, b2, qw, w3, b3, w4, b4):
    """Pack all parameters (with precomputed cos/sin of circuit weights) into
    one f32 vector for a single SMEM operand."""
    parts = [w1.reshape(-1), b1.reshape(-1), w2.reshape(-1), b2.reshape(-1),
             jnp.cos(0.5 * qw).reshape(-1), jnp.sin(0.5 * qw).reshape(-1),
             w3.reshape(-1), b3.reshape(-1), w4.reshape(-1), b4.reshape(-1)]
    packed = jnp.concatenate(parts).astype(jnp.float32)
    assert packed.shape == (N_PARAMS,)
    return packed


@jax.jit
def hybrid_forward(x, packed_params):
    B = x.shape[0]
    n_tiles = max(1, -(-B // TILE_B))
    B_pad = n_tiles * TILE_B
    xp = jnp.pad(x.astype(jnp.float32), ((0, B_pad - B), (0, 0)))   # (B_pad, 4)
    xt = xp.T.reshape(4, B_pad // 128, 128)       # (feature, group, lane)

    out2d = pl.pallas_call(
        hybrid_kernel,
        out_shape=jax.ShapeDtypeStruct((B_pad // 128, 128), jnp.float32),
        grid=(n_tiles,),
        in_specs=[
            pl.BlockSpec((4, TILE_G, 128), lambda i: (0, i, 0)),
            pl.BlockSpec(memory_space=pltpu.MemorySpace.SMEM),
        ],
        out_specs=pl.BlockSpec((TILE_G, 128), lambda i: (i, 0)),
        compiler_params=pltpu.CompilerParams(
            dimension_semantics=("parallel",)),
    )(xt, packed_params)

    return out2d.reshape(B_pad)[:B].reshape(B, 1)


def init_params(key):
    ks = jax.random.split(key, 9)

    def lin(kw, kb, fan_in, fan_out):
        bound = 1.0 / jnp.sqrt(fan_in)
        w = jax.random.uniform(kw, (fan_in, fan_out), jnp.float32, -bound, bound)
        b = jax.random.uniform(kb, (1, fan_out), jnp.float32, -bound, bound)
        return w, b

    w1, b1 = lin(ks[0], ks[1], 4, 16)
    w2, b2 = lin(ks[2], ks[3], 16, 2)
    qw = jax.random.normal(ks[4], (1, 12), jnp.float32)   # VQALayer weights (12,)
    w3, b3 = lin(ks[5], ks[6], 2, 8)
    w4, b4 = lin(ks[7], ks[8], 8, 1)
    return (w1, b1, w2, b2, qw, w3, b3, w4, b4)


def hybrid_reference(x, params):
    """Pure-JAX reference (complex statevector) mirroring the PyTorch module."""
    w1, b1, w2, b2, qw, w3, b3, w4, b4 = params
    h = jnp.maximum(x @ w1 + b1, 0.0)
    y = jnp.tanh(h @ w2 + b2)
    ang0, ang1 = y[:, 0], y[:, 1]
    B = x.shape[0]
    a = [jnp.ones((B,), jnp.complex64)] + [jnp.zeros((B,), jnp.complex64)] * 3

    def ry(q, theta):
        c = jnp.cos(0.5 * theta).astype(jnp.complex64)
        s = jnp.sin(0.5 * theta).astype(jnp.complex64)
        pairs = [(0, 1), (2, 3)] if q == 0 else [(0, 2), (1, 3)]
        for i, j in pairs:
            a_i, a_j = a[i], a[j]
            a[i] = c * a_i - s * a_j
            a[j] = s * a_i + c * a_j

    def rz(q, theta):
        ph0 = jnp.exp(-0.5j * theta).astype(jnp.complex64)
        ph1 = jnp.exp(0.5j * theta).astype(jnp.complex64)
        for i in range(4):
            a[i] = a[i] * (ph1 if (i >> q) & 1 else ph0)

    def cx():
        a[1], a[3] = a[3], a[1]

    k = 0
    for layer in range(3):
        ry(0, ang0 * (layer + 1))
        ry(1, ang1 * (layer + 1))
        cx()
        for q in range(2):
            ry(q, qw[0, k]); k += 1
            rz(q, qw[0, k]); k += 1
        cx()

    p = [jnp.abs(a[i]) ** 2 for i in range(4)]
    z_q1 = p[0] + p[1] - p[2] - p[3]
    z_q0 = p[0] - p[1] + p[2] - p[3]
    qout = jnp.stack([z_q1, z_q0], axis=1)
    r = jnp.maximum(qout @ w3 + b3, 0.0)
    return r @ w4 + b4


if __name__ == "__main__":
    key = jax.random.PRNGKey(0)
    kx, kp = jax.random.split(key)
    B = 8
    x = jax.random.normal(kx, (B, 4), jnp.float32)   # PCA(4) features, standardized
    params = init_params(kp)
    packed = pack_params(*params)

    out = hybrid_forward(x, packed)
    out = jax.block_until_ready(out)
    assert out.shape == (B, 1) and bool(jnp.all(jnp.isfinite(out)))

    ref = hybrid_reference(x, params)
    err = float(jnp.max(jnp.abs(out - ref)))
    assert err < 1e-3, f"kernel/reference mismatch: {err}"

    # TODO(synk): backward pass (parameter-shift rule) not implemented; forward only.
    print("KERNEL_OK")
</pallas_src>

<mosaic_0001>
module attributes {stable_mosaic.version = 11 : i64} {
  func.func @hybrid_kernel(%arg0: i32, %arg1: memref<4x8x128xf32, #tpu.memory_space<vmem>>, %arg2: memref<171xf32, #tpu.memory_space<smem>>, %arg3: memref<8x128xf32, #tpu.memory_space<vmem>>) attributes {dimension_semantics = [#tpu.dimension_semantics<parallel>], iteration_bounds = array<i64: 1>, scalar_prefetch = 0 : i64, scratch_operands = 0 : i64, tpu.core_type = #tpu.core_type<tc>, window_params = [{transform_indices = @transform_0, window_bounds = array<i64: 4, 8, 128>}, {transform_indices = @transform_1, window_bounds = array<i64: 171>}, {transform_indices = @transform_2, window_bounds = array<i64: 8, 128>}]} {
    %c0 = arith.constant 0 : index
    %c0_0 = arith.constant 0 : index
    %c0_1 = arith.constant 0 : index
    %0 = vector.load %arg1[%c0, %c0_0, %c0_1] : memref<4x8x128xf32, #tpu.memory_space<vmem>>, vector<1x8x128xf32>
    %1 = vector.shape_cast %0 : vector<1x8x128xf32> to vector<8x128xf32>
    %c1 = arith.constant 1 : index
    %c0_2 = arith.constant 0 : index
    %c0_3 = arith.constant 0 : index
    %2 = vector.load %arg1[%c1, %c0_2, %c0_3] : memref<4x8x128xf32, #tpu.memory_space<vmem>>, vector<1x8x128xf32>
    %3 = vector.shape_cast %2 : vector<1x8x128xf32> to vector<8x128xf32>
    %c2 = arith.constant 2 : index
    %c0_4 = arith.constant 0 : index
    %c0_5 = arith.constant 0 : index
    %4 = vector.load %arg1[%c2, %c0_4, %c0_5] : memref<4x8x128xf32, #tpu.memory_space<vmem>>, vector<1x8x128xf32>
    %5 = vector.shape_cast %4 : vector<1x8x128xf32> to vector<8x128xf32>
    %c3 = arith.constant 3 : index
    %c0_6 = arith.constant 0 : index
    %c0_7 = arith.constant 0 : index
    %6 = vector.load %arg1[%c3, %c0_6, %c0_7] : memref<4x8x128xf32, #tpu.memory_space<vmem>>, vector<1x8x128xf32>
    %7 = vector.shape_cast %6 : vector<1x8x128xf32> to vector<8x128xf32>
    %c64 = arith.constant 64 : index
    %8 = memref.load %arg2[%c64] : memref<171xf32, #tpu.memory_space<smem>>
    %c0_8 = arith.constant 0 : index
    %9 = memref.load %arg2[%c0_8] : memref<171xf32, #tpu.memory_space<smem>>
    %10 = vector.broadcast %9 : f32 to vector<8x128xf32>
    %11 = arith.mulf %10, %1 : vector<8x128xf32>
    %12 = vector.broadcast %8 : f32 to vector<8x128xf32>
    %13 = arith.addf %12, %11 : vector<8x128xf32>
    %c16 = arith.constant 16 : index
    %14 = memref.load %arg2[%c16] : memref<171xf32, #tpu.memory_space<smem>>
    %15 = vector.broadcast %14 : f32 to vector<8x128xf32>
    %16 = arith.mulf %15, %3 : vector<8x128xf32>
    %17 = arith.addf %13, %16 : vector<8x128xf32>
    %c32 = arith.constant 32 : index
    %18 = memref.load %arg2[%c32] : memref<171xf32, #tpu.memory_space<smem>>
    %19 = vector.broadcast %18 : f32 to vector<8x128xf32>
    %20 = arith.mulf %19, %5 : vector<8x128xf32>
    %21 = arith.addf %17, %20 : vector<8x128xf32>
    %c48 = arith.constant 48 : index
    %22 = memref.load %arg2[%c48] : memref<171xf32, #tpu.memory_space<smem>>
    %23 = vector.broadcast %22 : f32 to vector<8x128xf32>
    %24 = arith.mulf %23, %7 : vector<8x128xf32>
    %25 = arith.addf %21, %24 : vector<8x128xf32>
    %cst = arith.constant 0.000000e+00 : f32
    %26 = vector.broadcast %cst : f32 to vector<8x128xf32>
    %27 = arith.maximumf %25, %26 : vector<8x128xf32>
    %c65 = arith.constant 65 : index
    %28 = memref.load %arg2[%c65] : memref<171xf32, #tpu.memory_space<smem>>
    %c1_9 = arith.constant 1 : index
    %29 = memref.load %arg2[%c1_9] : memref<171xf32, #tpu.memory_space<smem>>
    %30 = vector.broadcast %29 : f32 to vector<8x128xf32>
    %31 = arith.mulf %30, %1 : vector<8x128xf32>
    %32 = vector.broadcast %28 : f32 to vector<8x128xf32>
    %33 = arith.addf %32, %31 : vector<8x128xf32>
    %c17 = arith.constant 17 : index
    %34 = memref.load %arg2[%c17] : memref<171xf32, #tpu.memory_space<smem>>
    %35 = vector.broadcast %34 : f32 to vector<8x128xf32>
    %36 = arith.mulf %35, %3 : vector<8x128xf32>
    %37 = arith.addf %33, %36 : vector<8x128xf32>
    %c33 = arith.constant 33 : index
    %38 = memref.load %arg2[%c33] : memref<171xf32, #tpu.memory_space<smem>>
    %39 = vector.broadcast %38 : f32 to vector<8x128xf32>
    %40 = arith.mulf %39, %5 : vector<8x128xf32>
    %41 = arith.addf %37, %40 : vector<8x128xf32>
    %c49 = arith.constant 49 : index
    %42 = memref.load %arg2[%c49] : memref<171xf32, #tpu.memory_space<smem>>
    %43 = vector.broadcast %42 : f32 to vector<8x128xf32>
    %44 = arith.mulf %43, %7 : vector<8x128xf32>
    %45 = arith.addf %41, %44 : vector<8x128xf32>
    %cst_10 = arith.constant 0.000000e+00 : f32
    %46 = vector.broadcast %cst_10 : f32 to vector<8x128xf32>
    %47 = arith.maximumf %45, %46 : vector<8x128xf32>
    %c66 = arith.constant 66 : index
    %48 = memref.load %arg2[%c66] : memref<171xf32, #tpu.memory_space<smem>>
    %c2_11 = arith.constant 2 : index
    %49 = memref.load %arg2[%c2_11] : memref<171xf32, #tpu.memory_space<smem>>
    %50 = vector.broadcast %49 : f32 to vector<8x128xf32>
    %51 = arith.mulf %50, %1 : vector<8x128xf32>
    %52 = vector.broadcast %48 : f32 to vector<8x128xf32>
    %53 = arith.addf %52, %51 : vector<8x128xf32>
    %c18 = arith.constant 18 : index
    %54 = memref.load %arg2[%c18] : memref<171xf32, #tpu.memory_space<smem>>
    %55 = vector.broadcast %54 : f32 to vector<8x128xf32>
    %56 = arith.mulf %55, %3 : vector<8x128xf32>
    %57 = arith.addf %53, %56 : vector<8x128xf32>
    %c34 = arith.constant 34 : index
    %58 = memref.load %arg2[%c34] : memref<171xf32, #tpu.memory_space<smem>>
    %59 = vector.broadcast %58 : f32 to vector<8x128xf32>
    %60 = arith.mulf %59, %5 : vector<8x128xf32>
    %61 = arith.addf %57, %60 : vector<8x128xf32>
    %c50 = arith.constant 50 : index
    %62 = memref.load %arg2[%c50] : memref<171xf32, #tpu.memory_space<smem>>
    %63 = vector.broadcast %62 : f32 to vector<8x128xf32>
    %64 = arith.mulf %63, %7 : vector<8x128xf32>
    %65 = arith.addf %61, %64 : vector<8x128xf32>
    %cst_12 = arith.constant 0.000000e+00 : f32
    %66 = vector.broadcast %cst_12 : f32 to vector<8x128xf32>
    %67 = arith.maximumf %65, %66 : vector<8x128xf32>
    %c67 = arith.constant 67 : index
    %68 = memref.load %arg2[%c67] : memref<171xf32, #tpu.memory_space<smem>>
    %c3_13 = arith.constant 3 : index
    %69 = memref.load %arg2[%c3_13] : memref<171xf32, #tpu.memory_space<smem>>
    %70 = vector.broadcast %69 : f32 to vector<8x128xf32>
    %71 = arith.mulf %70, %1 : vector<8x128xf32>
    %72 = vector.broadcast %68 : f32 to vector<8x128xf32>
    %73 = arith.addf %72, %71 : vector<8x128xf32>
    %c19 = arith.constant 19 : index
    %74 = memref.load %arg2[%c19] : memref<171xf32, #tpu.memory_space<smem>>
    %75 = vector.broadcast %74 : f32 to vector<8x128xf32>
    %76 = arith.mulf %75, %3 : vector<8x128xf32>
    %77 = arith.addf %73, %76 : vector<8x128xf32>
    %c35 = arith.constant 35 : index
    %78 = memref.load %arg2[%c35] : memref<171xf32, #tpu.memory_space<smem>>
    %79 = vector.broadcast %78 : f32 to vector<8x128xf32>
    %80 = arith.mulf %79, %5 : vector<8x128xf32>
    %81 = arith.addf %77, %80 : vector<8x128xf32>
    %c51 = arith.constant 51 : index
    %82 = memref.load %arg2[%c51] : memref<171xf32, #tpu.memory_space<smem>>
    %83 = vector.broadcast %82 : f32 to vector<8x128xf32>
    %84 = arith.mulf %83, %7 : vector<8x128xf32>
    %85 = arith.addf %81, %84 : vector<8x128xf32>
    %cst_14 = arith.constant 0.000000e+00 : f32
    %86 = vector.broadcast %cst_14 : f32 to vector<8x128xf32>
    %87 = arith.maximumf %85, %86 : vector<8x128xf32>
    %c68 = arith.constant 68 : index
    %88 = memref.load %arg2[%c68] : memref<171xf32, #tpu.memory_space<smem>>
    %c4 = arith.constant 4 : index
    %89 = memref.load %arg2[%c4] : memref<171xf32, #tpu.memory_space<smem>>
    %90 = vector.broadcast %89 : f32 to vector<8x128xf32>
    %91 = arith.mulf %90, %1 : vector<8x128xf32>
    %92 = vector.broadcast %88 : f32 to vector<8x128xf32>
    %93 = arith.addf %92, %91 : vector<8x128xf32>
    %c20 = arith.constant 20 : index
    %94 = memref.load %arg2[%c20] : memref<171xf32, #tpu.memory_space<smem>>
    %95 = vector.broadcast %94 : f32 to vector<8x128xf32>
    %96 = arith.mulf %95, %3 : vector<8x128xf32>
    %97 = arith.addf %93, %96 : vector<8x128xf32>
    %c36 = arith.constant 36 : index
    %98 = memref.load %arg2[%c36] : memref<171xf32, #tpu.memory_space<smem>>
    %99 = vector.broadcast %98 : f32 to vector<8x128xf32>
    %100 = arith.mulf %99, %5 : vector<8x128xf32>
    %101 = arith.addf %97, %100 : vector<8x128xf32>
    %c52 = arith.constant 52 : index
    %102 = memref.load %arg2[%c52] : memref<171xf32, #tpu.memory_space<smem>>
    %103 = vector.broadcast %102 : f32 to vector<8x128xf32>
    %104 = arith.mulf %103, %7 : vector<8x128xf32>
    %105 = arith.addf %101, %104 : vector<8x128xf32>
    %cst_15 = arith.constant 0.000000e+00 : f32
    %106 = vector.broadcast %cst_15 : f32 to vector<8x128xf32>
    %107 = arith.maximumf %105, %106 : vector<8x128xf32>
    %c69 = arith.constant 69 : index
    %108 = memref.load %arg2[%c69] : memref<171xf32, #tpu.memory_space<smem>>
    %c5 = arith.constant 5 : index
    %109 = memref.load %arg2[%c5] : memref<171xf32, #tpu.memory_space<smem>>
    %110 = vector.broadcast %109 : f32 to vector<8x128xf32>
    %111 = arith.mulf %110, %1 : vector<8x128xf32>
    %112 = vector.broadcast %108 : f32 to vector<8x128xf32>
    %113 = arith.addf %112, %111 : vector<8x128xf32>
    %c21 = arith.constant 21 : index
    %114 = memref.load %arg2[%c21] : memref<171xf32, #tpu.memory_space<smem>>
    %115 = vector.broadcast %114 : f32 to vector<8x128xf32>
    %116 = arith.mulf %115, %3 : vector<8x128xf32>
    %117 = arith.addf %113, %116 : vector<8x128xf32>
    %c37 = arith.constant 37 : index
    %118 = memref.load %arg2[%c37] : memref<171xf32, #tpu.memory_space<smem>>
    %119 = vector.broadcast %118 : f32 to vector<8x128xf32>
    %120 = arith.mulf %119, %5 : vector<8x128xf32>
    %121 = arith.addf %117, %120 : vector<8x128xf32>
    %c53 = arith.constant 53 : index
    %122 = memref.load %arg2[%c53] : memref<171xf32, #tpu.memory_space<smem>>
    %123 = vector.broadcast %122 : f32 to vector<8x128xf32>
    %124 = arith.mulf %123, %7 : vector<8x128xf32>
    %125 = arith.addf %121, %124 : vector<8x128xf32>
    %cst_16 = arith.constant 0.000000e+00 : f32
    %126 = vector.broadcast %cst_16 : f32 to vector<8x128xf32>
    %127 = arith.maximumf %125, %126 : vector<8x128xf32>
    %c70 = arith.constant 70 : index
    %128 = memref.load %arg2[%c70] : memref<171xf32, #tpu.memory_space<smem>>
    %c6 = arith.constant 6 : index
    %129 = memref.load %arg2[%c6] : memref<171xf32, #tpu.memory_space<smem>>
    %130 = vector.broadcast %129 : f32 to vector<8x128xf32>
    %131 = arith.mulf %130, %1 : vector<8x128xf32>
    %132 = vector.broadcast %128 : f32 to vector<8x128xf32>
    %133 = arith.addf %132, %131 : vector<8x128xf32>
    %c22 = arith.constant 22 : index
    %134 = memref.load %arg2[%c22] : memref<171xf32, #tpu.memory_space<smem>>
    %135 = vector.broadcast %134 : f32 to vector<8x128xf32>
    %136 = arith.mulf %135, %3 : vector<8x128xf32>
    %137 = arith.addf %133, %136 : vector<8x128xf32>
    %c38 = arith.constant 38 : index
    %138 = memref.load %arg2[%c38] : memref<171xf32, #tpu.memory_space<smem>>
    %139 = vector.broadcast %138 : f32 to vector<8x128xf32>
    %140 = arith.mulf %139, %5 : vector<8x128xf32>
    %141 = arith.addf %137, %140 : vector<8x128xf32>
    %c54 = arith.constant 54 : index
    %142 = memref.load %arg2[%c54] : memref<171xf32, #tpu.memory_space<smem>>
    %143 = vector.broadcast %142 : f32 to vector<8x128xf32>
    %144 = arith.mulf %143, %7 : vector<8x128xf32>
    %145 = arith.addf %141, %144 : vector<8x128xf32>
    %cst_17 = arith.constant 0.000000e+00 : f32
    %146 = vector.broadcast %cst_17 : f32 to vector<8x128xf32>
    %147 = arith.maximumf %145, %146 : vector<8x128xf32>
    %c71 = arith.constant 71 : index
    %148 = memref.load %arg2[%c71] : memref<171xf32, #tpu.memory_space<smem>>
    %c7 = arith.constant 7 : index
    %149 = memref.load %arg2[%c7] : memref<171xf32, #tpu.memory_space<smem>>
    %150 = vector.broadcast %149 : f32 to vector<8x128xf32>
    %151 = arith.mulf %150, %1 : vector<8x128xf32>
    %152 = vector.broadcast %148 : f32 to vector<8x128xf32>
    %153 = arith.addf %152, %151 : vector<8x128xf32>
    %c23 = arith.constant 23 : index
    %154 = memref.load %arg2[%c23] : memref<171xf32, #tpu.memory_space<smem>>
    %155 = vector.broadcast %154 : f32 to vector<8x128xf32>
    %156 = arith.mulf %155, %3 : vector<8x128xf32>
    %157 = arith.addf %153, %156 : vector<8x128xf32>
    %c39 = arith.constant 39 : index
    %158 = memref.load %arg2[%c39] : memref<171xf32, #tpu.memory_space<smem>>
    %159 = vector.broadcast %158 : f32 to vector<8x128xf32>
    %160 = arith.mulf %159, %5 : vector<8x128xf32>
    %161 = arith.addf %157, %160 : vector<8x128xf32>
    %c55 = arith.constant 55 : index
    %162 = memref.load %arg2[%c55] : memref<171xf32, #tpu.memory_space<smem>>
    %163 = vector.broadcast %162 : f32 to vector<8x128xf32>
    %164 = arith.mulf %163, %7 : vector<8x128xf32>
    %165 = arith.addf %161, %164 : vector<8x128xf32>
    %cst_18 = arith.constant 0.000000e+00 : f32
    %166 = vector.broadcast %cst_18 : f32 to vector<8x128xf32>
    %167 = arith.maximumf %165, %166 : vector<8x128xf32>
    %c72 = arith.constant 72 : index
    %168 = memref.load %arg2[%c72] : memref<171xf32, #tpu.memory_space<smem>>
    %c8 = arith.constant 8 : index
    %169 = memref.load %arg2[%c8] : memref<171xf32, #tpu.memory_space<smem>>
    %170 = vector.broadcast %169 : f32 to vector<8x128xf32>
    %171 = arith.mulf %170, %1 : vector<8x128xf32>
    %172 = vector.broadcast %168 : f32 to vector<8x128xf32>
    %173 = arith.addf %172, %171 : vector<8x128xf32>
    %c24 = arith.constant 24 : index
    %174 = memref.load %arg2[%c24] : memref<171xf32, #tpu.memory_space<smem>>
    %175 = vector.broadcast %174 : f32 to vector<8x128xf32>
    %176 = arith.mulf %175, %3 : vector<8x128xf32>
    %177 = arith.addf %173, %176 : vector<8x128xf32>
    %c40 = arith.constant 40 : index
    %178 = memref.load %arg2[%c40] : memref<171xf32, #tpu.memory_space<smem>>
    %179 = vector.broadcast %178 : f32 to vector<8x128xf32>
    %180 = arith.mulf %179, %5 : vector<8x128xf32>
    %181 = arith.addf %177, %180 : vector<8x128xf32>
    %c56 = arith.constant 56 : index
    %182 = memref.load %arg2[%c56] : memref<171xf32, #tpu.memory_space<smem>>
    %183 = vector.broadcast %182 : f32 to vector<8x128xf32>
    %184 = arith.mulf %183, %7 : vector<8x128xf32>
    %185 = arith.addf %181, %184 : vector<8x128xf32>
    %cst_19 = arith.constant 0.000000e+00 : f32
    %186 = vector.broadcast %cst_19 : f32 to vector<8x128xf32>
    %187 = arith.maximumf %185, %186 : vector<8x128xf32>
    %c73 = arith.constant 73 : index
    %188 = memref.load %arg2[%c73] : memref<171xf32, #tpu.memory_space<smem>>
    %c9 = arith.constant 9 : index
    %189 = memref.load %arg2[%c9] : memref<171xf32, #tpu.memory_space<smem>>
    %190 = vector.broadcast %189 : f32 to vector<8x128xf32>
    %191 = arith.mulf %190, %1 : vector<8x128xf32>
    %192 = vector.broadcast %188 : f32 to vector<8x128xf32>
    %193 = arith.addf %192, %191 : vector<8x128xf32>
    %c25 = arith.constant 25 : index
    %194 = memref.load %arg2[%c25] : memref<171xf32, #tpu.memory_space<smem>>
    %195 = vector.broadcast %194 : f32 to vector<8x128xf32>
    %196 = arith.mulf %195, %3 : vector<8x128xf32>
    %197 = arith.addf %193, %196 : vector<8x128xf32>
    %c41 = arith.constant 41 : index
    %198 = memref.load %arg2[%c41] : memref<171xf32, #tpu.memory_space<smem>>
    %199 = vector.broadcast %198 : f32 to vector<8x128xf32>
    %200 = arith.mulf %199, %5 : vector<8x128xf32>
    %201 = arith.addf %197, %200 : vector<8x128xf32>
    %c57 = arith.constant 57 : index
    %202 = memref.load %arg2[%c57] : memref<171xf32, #tpu.memory_space<smem>>
    %203 = vector.broadcast %202 : f32 to vector<8x128xf32>
    %204 = arith.mulf %203, %7 : vector<8x128xf32>
    %205 = arith.addf %201, %204 : vector<8x128xf32>
    %cst_20 = arith.constant 0.000000e+00 : f32
    %206 = vector.broadcast %cst_20 : f32 to vector<8x128xf32>
    %207 = arith.maximumf %205, %206 : vector<8x128xf32>
    %c74 = arith.constant 74 : index
    %208 = memref.load %arg2[%c74] : memref<171xf32, #tpu.memory_space<smem>>
    %c10 = arith.constant 10 : index
    %209 = memref.load %arg2[%c10] : memref<171xf32, #tpu.memory_space<smem>>
    %210 = vector.broadcast %209 : f32 to vector<8x128xf32>
    %211 = arith.mulf %210, %1 : vector<8x128xf32>
    %212 = vector.broadcast %208 : f32 to vector<8x128xf32>
    %213 = arith.addf %212, %211 : vector<8x128xf32>
    %c26 = arith.constant 26 : index
    %214 = memref.load %arg2[%c26] : memref<171xf32, #tpu.memory_space<smem>>
    %215 = vector.broadcast %214 : f32 to vector<8x128xf32>
    %216 = arith.mulf %215, %3 : vector<8x128xf32>
    %217 = arith.addf %213, %216 : vector<8x128xf32>
    %c42 = arith.constant 42 : index
    %218 = memref.load %arg2[%c42] : memref<171xf32, #tpu.memory_space<smem>>
    %219 = vector.broadcast %218 : f32 to vector<8x128xf32>
    %220 = arith.mulf %219, %5 : vector<8x128xf32>
    %221 = arith.addf %217, %220 : vector<8x128xf32>
    %c58 = arith.constant 58 : index
    %222 = memref.load %arg2[%c58] : memref<171xf32, #tpu.memory_space<smem>>
    %223 = vector.broadcast %222 : f32 to vector<8x128xf32>
    %224 = arith.mulf %223, %7 : vector<8x128xf32>
    %225 = arith.addf %221, %224 : vector<8x128xf32>
    %cst_21 = arith.constant 0.000000e+00 : f32
    %226 = vector.broadcast %cst_21 : f32 to vector<8x128xf32>
    %227 = arith.maximumf %225, %226 : vector<8x128xf32>
    %c75 = arith.constant 75 : index
    %228 = memref.load %arg2[%c75] : memref<171xf32, #tpu.memory_space<smem>>
    %c11 = arith.constant 11 : index
    %229 = memref.load %arg2[%c11] : memref<171xf32, #tpu.memory_space<smem>>
    %230 = vector.broadcast %229 : f32 to vector<8x128xf32>
    %231 = arith.mulf %230, %1 : vector<8x128xf32>
    %232 = vector.broadcast %228 : f32 to vector<8x128xf32>
    %233 = arith.addf %232, %231 : vector<8x128xf32>
    %c27 = arith.constant 27 : index
    %234 = memref.load %arg2[%c27] : memref<171xf32, #tpu.memory_space<smem>>
    %235 = vector.broadcast %234 : f32 to vector<8x128xf32>
    %236 = arith.mulf %235, %3 : vector<8x128xf32>
    %237 = arith.addf %233, %236 : vector<8x128xf32>
    %c43 = arith.constant 43 : index
    %238 = memref.load %arg2[%c43] : memref<171xf32, #tpu.memory_space<smem>>
    %239 = vector.broadcast %238 : f32 to vector<8x128xf32>
    %240 = arith.mulf %239, %5 : vector<8x128xf32>
    %241 = arith.addf %237, %240 : vector<8x128xf32>
    %c59 = arith.constant 59 : index
    %242 = memref.load %arg2[%c59] : memref<171xf32, #tpu.memory_space<smem>>
    %243 = vector.broadcast %242 : f32 to vector<8x128xf32>
    %244 = arith.mulf %243, %7 : vector<8x128xf32>
    %245 = arith.addf %241, %244 : vector<8x128xf32>
    %cst_22 = arith.constant 0.000000e+00 : f32
    %246 = vector.broadcast %cst_22 : f32 to vector<8x128xf32>
    %247 = arith.maximumf %245, %246 : vector<8x128xf32>
    %c76 = arith.constant 76 : index
    %248 = memref.load %arg2[%c76] : memref<171xf32, #tpu.memory_space<smem>>
    %c12 = arith.constant 12 : index
    %249 = memref.load %arg2[%c12] : memref<171xf32, #tpu.memory_space<smem>>
    %250 = vector.broadcast %249 : f32 to vector<8x128xf32>
    %251 = arith.mulf %250, %1 : vector<8x128xf32>
    %252 = vector.broadcast %248 : f32 to vector<8x128xf32>
    %253 = arith.addf %252, %251 : vector<8x128xf32>
    %c28 = arith.constant 28 : index
    %254 = memref.load %arg2[%c28] : memref<171xf32, #tpu.memory_space<smem>>
    %255 = vector.broadcast %254 : f32 to vector<8x128xf32>
    %256 = arith.mulf %255, %3 : vector<8x128xf32>
    %257 = arith.addf %253, %256 : vector<8x128xf32>
    %c44 = arith.constant 44 : index
    %258 = memref.load %arg2[%c44] : memref<171xf32, #tpu.memory_space<smem>>
    %259 = vector.broadcast %258 : f32 to vector<8x128xf32>
    %260 = arith.mulf %259, %5 : vector<8x128xf32>
    %261 = arith.addf %257, %260 : vector<8x128xf32>
    %c60 = arith.constant 60 : index
    %262 = memref.load %arg2[%c60] : memref<171xf32, #tpu.memory_space<smem>>
    %263 = vector.broadcast %262 : f32 to vector<8x128xf32>
    %264 = arith.mulf %263, %7 : vector<8x128xf32>
    %265 = arith.addf %261, %264 : vector<8x128xf32>
    %cst_23 = arith.constant 0.000000e+00 : f32
    %266 = vector.broadcast %cst_23 : f32 to vector<8x128xf32>
    %267 = arith.maximumf %265, %266 : vector<8x128xf32>
    %c77 = arith.constant 77 : index
    %268 = memref.load %arg2[%c77] : memref<171xf32, #tpu.memory_space<smem>>
    %c13 = arith.constant 13 : index
    %269 = memref.load %arg2[%c13] : memref<171xf32, #tpu.memory_space<smem>>
    %270 = vector.broadcast %269 : f32 to vector<8x128xf32>
    %271 = arith.mulf %270, %1 : vector<8x128xf32>
    %272 = vector.broadcast %268 : f32 to vector<8x128xf32>
    %273 = arith.addf %272, %271 : vector<8x128xf32>
    %c29 = arith.constant 29 : index
    %274 = memref.load %arg2[%c29] : memref<171xf32, #tpu.memory_space<smem>>
    %275 = vector.broadcast %274 : f32 to vector<8x128xf32>
    %276 = arith.mulf %275, %3 : vector<8x128xf32>
    %277 = arith.addf %273, %276 : vector<8x128xf32>
    %c45 = arith.constant 45 : index
    %278 = memref.load %arg2[%c45] : memref<171xf32, #tpu.memory_space<smem>>
    %279 = vector.broadcast %278 : f32 to vector<8x128xf32>
    %280 = arith.mulf %279, %5 : vector<8x128xf32>
    %281 = arith.addf %277, %280 : vector<8x128xf32>
    %c61 = arith.constant 61 : index
    %282 = memref.load %arg2[%c61] : memref<171xf32, #tpu.memory_space<smem>>
    %283 = vector.broadcast %282 : f32 to vector<8x128xf32>
    %284 = arith.mulf %283, %7 : vector<8x128xf32>
    %285 = arith.addf %281, %284 : vector<8x128xf32>
    %cst_24 = arith.constant 0.000000e+00 : f32
    %286 = vector.broadcast %cst_24 : f32 to vector<8x128xf32>
    %287 = arith.maximumf %285, %286 : vector<8x128xf32>
    %c78 = arith.constant 78 : index
    %288 = memref.load %arg2[%c78] : memref<171xf32, #tpu.memory_space<smem>>
    %c14 = arith.constant 14 : index
    %289 = memref.load %arg2[%c14] : memref<171xf32, #tpu.memory_space<smem>>
    %290 = vector.broadcast %289 : f32 to vector<8x128xf32>
    %291 = arith.mulf %290, %1 : vector<8x128xf32>
    %292 = vector.broadcast %288 : f32 to vector<8x128xf32>
    %293 = arith.addf %292, %291 : vector<8x128xf32>
    %c30 = arith.constant 30 : index
    %294 = memref.load %arg2[%c30] : memref<171xf32, #tpu.memory_space<smem>>
    %295 = vector.broadcast %294 : f32 to vector<8x128xf32>
    %296 = arith.mulf %295, %3 : vector<8x128xf32>
    %297 = arith.addf %293, %296 : vector<8x128xf32>
    %c46 = arith.constant 46 : index
    %298 = memref.load %arg2[%c46] : memref<171xf32, #tpu.memory_space<smem>>
    %299 = vector.broadcast %298 : f32 to vector<8x128xf32>
    %300 = arith.mulf %299, %5 : vector<8x128xf32>
    %301 = arith.addf %297, %300 : vector<8x128xf32>
    %c62 = arith.constant 62 : index
    %302 = memref.load %arg2[%c62] : memref<171xf32, #tpu.memory_space<smem>>
    %303 = vector.broadcast %302 : f32 to vector<8x128xf32>
    %304 = arith.mulf %303, %7 : vector<8x128xf32>
    %305 = arith.addf %301, %304 : vector<8x128xf32>
    %cst_25 = arith.constant 0.000000e+00 : f32
    %306 = vector.broadcast %cst_25 : f32 to vector<8x128xf32>
    %307 = arith.maximumf %305, %306 : vector<8x128xf32>
    %c79 = arith.constant 79 : index
    %308 = memref.load %arg2[%c79] : memref<171xf32, #tpu.memory_space<smem>>
    %c15 = arith.constant 15 : index
    %309 = memref.load %arg2[%c15] : memref<171xf32, #tpu.memory_space<smem>>
    %310 = vector.broadcast %309 : f32 to vector<8x128xf32>
    %311 = arith.mulf %310, %1 : vector<8x128xf32>
    %312 = vector.broadcast %308 : f32 to vector<8x128xf32>
    %313 = arith.addf %312, %311 : vector<8x128xf32>
    %c31 = arith.constant 31 : index
    %314 = memref.load %arg2[%c31] : memref<171xf32, #tpu.memory_space<smem>>
    %315 = vector.broadcast %314 : f32 to vector<8x128xf32>
    %316 = arith.mulf %315, %3 : vector<8x128xf32>
    %317 = arith.addf %313, %316 : vector<8x128xf32>
    %c47 = arith.constant 47 : index
    %318 = memref.load %arg2[%c47] : memref<171xf32, #tpu.memory_space<smem>>
    %319 = vector.broadcast %318 : f32 to vector<8x128xf32>
    %320 = arith.mulf %319, %5 : vector<8x128xf32>
    %321 = arith.addf %317, %320 : vector<8x128xf32>
    %c63 = arith.constant 63 : index
    %322 = memref.load %arg2[%c63] : memref<171xf32, #tpu.memory_space<smem>>
    %323 = vector.broadcast %322 : f32 to vector<8x128xf32>
    %324 = arith.mulf %323, %7 : vector<8x128xf32>
    %325 = arith.addf %321, %324 : vector<8x128xf32>
    %cst_26 = arith.constant 0.000000e+00 : f32
    %326 = vector.broadcast %cst_26 : f32 to vector<8x128xf32>
    %327 = arith.maximumf %325, %326 : vector<8x128xf32>
    %c112 = arith.constant 112 : index
    %328 = memref.load %arg2[%c112] : memref<171xf32, #tpu.memory_space<smem>>
    %c80 = arith.constant 80 : index
    %329 = memref.load %arg2[%c80] : memref<171xf32, #tpu.memory_space<smem>>
    %330 = vector.broadcast %329 : f32 to vector<8x128xf32>
    %331 = arith.mulf %330, %27 : vector<8x128xf32>
    %332 = vector.broadcast %328 : f32 to vector<8x128xf32>
    %333 = arith.addf %332, %331 : vector<8x128xf32>
    %c82 = arith.constant 82 : index
    %334 = memref.load %arg2[%c82] : memref<171xf32, #tpu.memory_space<smem>>
    %335 = vector.broadcast %334 : f32 to vector<8x128xf32>
    %336 = arith.mulf %335, %47 : vector<8x128xf32>
    %337 = arith.addf %333, %336 : vector<8x128xf32>
    %c84 = arith.constant 84 : index
    %338 = memref.load %arg2[%c84] : memref<171xf32, #tpu.memory_space<smem>>
    %339 = vector.broadcast %338 : f32 to vector<8x128xf32>
    %340 = arith.mulf %339, %67 : vector<8x128xf32>
    %341 = arith.addf %337, %340 : vector<8x128xf32>
    %c86 = arith.constant 86 : index
    %342 = memref.load %arg2[%c86] : memref<171xf32, #tpu.memory_space<smem>>
    %343 = vector.broadcast %342 : f32 to vector<8x128xf32>
    %344 = arith.mulf %343, %87 : vector<8x128xf32>
    %345 = arith.addf %341, %344 : vector<8x128xf32>
    %c88 = arith.constant 88 : index
    %346 = memref.load %arg2[%c88] : memref<171xf32, #tpu.memory_space<smem>>
    %347 = vector.broadcast %346 : f32 to vector<8x128xf32>
    %348 = arith.mulf %347, %107 : vector<8x128xf32>
    %349 = arith.addf %345, %348 : vector<8x128xf32>
    %c90 = arith.constant 90 : index
    %350 = memref.load %arg2[%c90] : memref<171xf32, #tpu.memory_space<smem>>
    %351 = vector.broadcast %350 : f32 to vector<8x128xf32>
    %352 = arith.mulf %351, %127 : vector<8x128xf32>
    %353 = arith.addf %349, %352 : vector<8x128xf32>
    %c92 = arith.constant 92 : index
    %354 = memref.load %arg2[%c92] : memref<171xf32, #tpu.memory_space<smem>>
    %355 = vector.broadcast %354 : f32 to vector<8x128xf32>
    %356 = arith.mulf %355, %147 : vector<8x128xf32>
    %357 = arith.addf %353, %356 : vector<8x128xf32>
    %c94 = arith.constant 94 : index
    %358 = memref.load %arg2[%c94] : memref<171xf32, #tpu.memory_space<smem>>
    %359 = vector.broadcast %358 : f32 to vector<8x128xf32>
    %360 = arith.mulf %359, %167 : vector<8x128xf32>
    %361 = arith.addf %357, %360 : vector<8x128xf32>
    %c96 = arith.constant 96 : index
    %362 = memref.load %arg2[%c96] : memref<171xf32, #tpu.memory_space<smem>>
    %363 = vector.broadcast %362 : f32 to vector<8x128xf32>
    %364 = arith.mulf %363, %187 : vector<8x128xf32>
    %365 = arith.addf %361, %364 : vector<8x128xf32>
    %c98 = arith.constant 98 : index
    %366 = memref.load %arg2[%c98] : memref<171xf32, #tpu.memory_space<smem>>
    %367 = vector.broadcast %366 : f32 to vector<8x128xf32>
    %368 = arith.mulf %367, %207 : vector<8x128xf32>
    %369 = arith.addf %365, %368 : vector<8x128xf32>
    %c100 = arith.constant 100 : index
    %370 = memref.load %arg2[%c100] : memref<171xf32, #tpu.memory_space<smem>>
    %371 = vector.broadcast %370 : f32 to vector<8x128xf32>
    %372 = arith.mulf %371, %227 : vector<8x128xf32>
    %373 = arith.addf %369, %372 : vector<8x128xf32>
    %c102 = arith.constant 102 : index
    %374 = memref.load %arg2[%c102] : memref<171xf32, #tpu.memory_space<smem>>
    %375 = vector.broadcast %374 : f32 to vector<8x128xf32>
    %376 = arith.mulf %375, %247 : vector<8x128xf32>
    %377 = arith.addf %373, %376 : vector<8x128xf32>
    %c104 = arith.constant 104 : index
    %378 = memref.load %arg2[%c104] : memref<171xf32, #tpu.memory_space<smem>>
    %379 = vector.broadcast %378 : f32 to vector<8x128xf32>
    %380 = arith.mulf %379, %267 : vector<8x128xf32>
    %381 = arith.addf %377, %380 : vector<8x128xf32>
    %c106 = arith.constant 106 : index
    %382 = memref.load %arg2[%c106] : memref<171xf32, #tpu.memory_space<smem>>
    %383 = vector.broadcast %382 : f32 to vector<8x128xf32>
    %384 = arith.mulf %383, %287 : vector<8x128xf32>
    %385 = arith.addf %381, %384 : vector<8x128xf32>
    %c108 = arith.constant 108 : index
    %386 = memref.load %arg2[%c108] : memref<171xf32, #tpu.memory_space<smem>>
    %387 = vector.broadcast %386 : f32 to vector<8x128xf32>
    %388 = arith.mulf %387, %307 : vector<8x128xf32>
    %389 = arith.addf %385, %388 : vector<8x128xf32>
    %c110 = arith.constant 110 : index
    %390 = memref.load %arg2[%c110] : memref<171xf32, #tpu.memory_space<smem>>
    %391 = vector.broadcast %390 : f32 to vector<8x128xf32>
    %392 = arith.mulf %391, %327 : vector<8x128xf32>
    %393 = arith.addf %389, %392 : vector<8x128xf32>
    %394 = math.tanh %393 : vector<8x128xf32>
    %c113 = arith.constant 113 : index
    %395 = memref.load %arg2[%c113] : memref<171xf32, #tpu.memory_space<smem>>
    %c81 = arith.constant 81 : index
    %396 = memref.load %arg2[%c81] : memref<171xf32, #tpu.memory_space<smem>>
    %397 = vector.broadcast %396 : f32 to vector<8x128xf32>
    %398 = arith.mulf %397, %27 : vector<8x128xf32>
    %399 = vector.broadcast %395 : f32 to vector<8x128xf32>
    %400 = arith.addf %399, %398 : vector<8x128xf32>
    %c83 = arith.constant 83 : index
    %401 = memref.load %arg2[%c83] : memref<171xf32, #tpu.memory_space<smem>>
    %402 = vector.broadcast %401 : f32 to vector<8x128xf32>
    %403 = arith.mulf %402, %47 : vector<8x128xf32>
    %404 = arith.addf %400, %403 : vector<8x128xf32>
    %c85 = arith.constant 85 : index
    %405 = memref.load %arg2[%c85] : memref<171xf32, #tpu.memory_space<smem>>
    %406 = vector.broadcast %405 : f32 to vector<8x128xf32>
    %407 = arith.mulf %406, %67 : vector<8x128xf32>
    %408 = arith.addf %404, %407 : vector<8x128xf32>
    %c87 = arith.constant 87 : index
    %409 = memref.load %arg2[%c87] : memref<171xf32, #tpu.memory_space<smem>>
    %410 = vector.broadcast %409 : f32 to vector<8x128xf32>
    %411 = arith.mulf %410, %87 : vector<8x128xf32>
    %412 = arith.addf %408, %411 : vector<8x128xf32>
    %c89 = arith.constant 89 : index
    %413 = memref.load %arg2[%c89] : memref<171xf32, #tpu.memory_space<smem>>
    %414 = vector.broadcast %413 : f32 to vector<8x128xf32>
    %415 = arith.mulf %414, %107 : vector<8x128xf32>
    %416 = arith.addf %412, %415 : vector<8x128xf32>
    %c91 = arith.constant 91 : index
    %417 = memref.load %arg2[%c91] : memref<171xf32, #tpu.memory_space<smem>>
    %418 = vector.broadcast %417 : f32 to vector<8x128xf32>
    %419 = arith.mulf %418, %127 : vector<8x128xf32>
    %420 = arith.addf %416, %419 : vector<8x128xf32>
    %c93 = arith.constant 93 : index
    %421 = memref.load %arg2[%c93] : memref<171xf32, #tpu.memory_space<smem>>
    %422 = vector.broadcast %421 : f32 to vector<8x128xf32>
    %423 = arith.mulf %422, %147 : vector<8x128xf32>
    %424 = arith.addf %420, %423 : vector<8x128xf32>
    %c95 = arith.constant 95 : index
    %425 = memref.load %arg2[%c95] : memref<171xf32, #tpu.memory_space<smem>>
    %426 = vector.broadcast %425 : f32 to vector<8x128xf32>
    %427 = arith.mulf %426, %167 : vector<8x128xf32>
    %428 = arith.addf %424, %427 : vector<8x128xf32>
    %c97 = arith.constant 97 : index
    %429 = memref.load %arg2[%c97] : memref<171xf32, #tpu.memory_space<smem>>
    %430 = vector.broadcast %429 : f32 to vector<8x128xf32>
    %431 = arith.mulf %430, %187 : vector<8x128xf32>
    %432 = arith.addf %428, %431 : vector<8x128xf32>
    %c99 = arith.constant 99 : index
    %433 = memref.load %arg2[%c99] : memref<171xf32, #tpu.memory_space<smem>>
    %434 = vector.broadcast %433 : f32 to vector<8x128xf32>
    %435 = arith.mulf %434, %207 : vector<8x128xf32>
    %436 = arith.addf %432, %435 : vector<8x128xf32>
    %c101 = arith.constant 101 : index
    %437 = memref.load %arg2[%c101] : memref<171xf32, #tpu.memory_space<smem>>
    %438 = vector.broadcast %437 : f32 to vector<8x128xf32>
    %439 = arith.mulf %438, %227 : vector<8x128xf32>
    %440 = arith.addf %436, %439 : vector<8x128xf32>
    %c103 = arith.constant 103 : index
    %441 = memref.load %arg2[%c103] : memref<171xf32, #tpu.memory_space<smem>>
    %442 = vector.broadcast %441 : f32 to vector<8x128xf32>
    %443 = arith.mulf %442, %247 : vector<8x128xf32>
    %444 = arith.addf %440, %443 : vector<8x128xf32>
    %c105 = arith.constant 105 : index
    %445 = memref.load %arg2[%c105] : memref<171xf32, #tpu.memory_space<smem>>
    %446 = vector.broadcast %445 : f32 to vector<8x128xf32>
    %447 = arith.mulf %446, %267 : vector<8x128xf32>
    %448 = arith.addf %444, %447 : vector<8x128xf32>
    %c107 = arith.constant 107 : index
    %449 = memref.load %arg2[%c107] : memref<171xf32, #tpu.memory_space<smem>>
    %450 = vector.broadcast %449 : f32 to vector<8x128xf32>
    %451 = arith.mulf %450, %287 : vector<8x128xf32>
    %452 = arith.addf %448, %451 : vector<8x128xf32>
    %c109 = arith.constant 109 : index
    %453 = memref.load %arg2[%c109] : memref<171xf32, #tpu.memory_space<smem>>
    %454 = vector.broadcast %453 : f32 to vector<8x128xf32>
    %455 = arith.mulf %454, %307 : vector<8x128xf32>
    %456 = arith.addf %452, %455 : vector<8x128xf32>
    %c111 = arith.constant 111 : index
    %457 = memref.load %arg2[%c111] : memref<171xf32, #tpu.memory_space<smem>>
    %458 = vector.broadcast %457 : f32 to vector<8x128xf32>
    %459 = arith.mulf %458, %327 : vector<8x128xf32>
    %460 = arith.addf %456, %459 : vector<8x128xf32>
    %461 = math.tanh %460 : vector<8x128xf32>
    %cst_27 = arith.constant 5.000000e-01 : f32
    %462 = vector.broadcast %cst_27 : f32 to vector<8x128xf32>
    %463 = arith.mulf %462, %394 : vector<8x128xf32>
    %464 = math.cos %463 : vector<8x128xf32>
    %cst_28 = arith.constant 5.000000e-01 : f32
    %465 = vector.broadcast %cst_28 : f32 to vector<8x128xf32>
    %466 = arith.mulf %465, %394 : vector<8x128xf32>
    %467 = math.sin %466 : vector<8x128xf32>
    %cst_29 = arith.constant 2.000000e+00 : f32
    %468 = vector.broadcast %cst_29 : f32 to vector<8x128xf32>
    %469 = arith.mulf %468, %464 : vector<8x128xf32>
    %470 = arith.mulf %469, %464 : vector<8x128xf32>
    %cst_30 = arith.constant 1.000000e+00 : f32
    %471 = vector.broadcast %cst_30 : f32 to vector<8x128xf32>
    %472 = arith.subf %470, %471 : vector<8x128xf32>
    %cst_31 = arith.constant 2.000000e+00 : f32
    %473 = vector.broadcast %cst_31 : f32 to vector<8x128xf32>
    %474 = arith.mulf %473, %467 : vector<8x128xf32>
    %475 = arith.mulf %474, %464 : vector<8x128xf32>
    %cst_32 = arith.constant 4.000000e+00 : f32
    %476 = vector.broadcast %cst_32 : f32 to vector<8x128xf32>
    %477 = arith.mulf %476, %464 : vector<8x128xf32>
    %478 = arith.mulf %477, %464 : vector<8x128xf32>
    %cst_33 = arith.constant 3.000000e+00 : f32
    %479 = vector.broadcast %cst_33 : f32 to vector<8x128xf32>
    %480 = arith.subf %478, %479 : vector<8x128xf32>
    %481 = arith.mulf %480, %464 : vector<8x128xf32>
    %cst_34 = arith.constant 4.000000e+00 : f32
    %482 = vector.broadcast %cst_34 : f32 to vector<8x128xf32>
    %483 = arith.mulf %482, %467 : vector<8x128xf32>
    %484 = arith.mulf %483, %467 : vector<8x128xf32>
    %cst_35 = arith.constant 3.000000e+00 : f32
    %485 = vector.broadcast %cst_35 : f32 to vector<8x128xf32>
    %486 = arith.subf %485, %484 : vector<8x128xf32>
    %487 = arith.mulf %486, %467 : vector<8x128xf32>
    %cst_36 = arith.constant 5.000000e-01 : f32
    %488 = vector.broadcast %cst_36 : f32 to vector<8x128xf32>
    %489 = arith.mulf %488, %461 : vector<8x128xf32>
    %490 = math.cos %489 : vector<8x128xf32>
    %cst_37 = arith.constant 5.000000e-01 : f32
    %491 = vector.broadcast %cst_37 : f32 to vector<8x128xf32>
    %492 = arith.mulf %491, %461 : vector<8x128xf32>
    %493 = math.sin %492 : vector<8x128xf32>
    %cst_38 = arith.constant 2.000000e+00 : f32
    %494 = vector.broadcast %cst_38 : f32 to vector<8x128xf32>
    %495 = arith.mulf %494, %490 : vector<8x128xf32>
    %496 = arith.mulf %495, %490 : vector<8x128xf32>
    %cst_39 = arith.constant 1.000000e+00 : f32
    %497 = vector.broadcast %cst_39 : f32 to vector<8x128xf32>
    %498 = arith.subf %496, %497 : vector<8x128xf32>
    %cst_40 = arith.constant 2.000000e+00 : f32
    %499 = vector.broadcast %cst_40 : f32 to vector<8x128xf32>
    %500 = arith.mulf %499, %493 : vector<8x128xf32>
    %501 = arith.mulf %500, %490 : vector<8x128xf32>
    %cst_41 = arith.constant 4.000000e+00 : f32
    %502 = vector.broadcast %cst_41 : f32 to vector<8x128xf32>
    %503 = arith.mulf %502, %490 : vector<8x128xf32>
    %504 = arith.mulf %503, %490 : vector<8x128xf32>
    %cst_42 = arith.constant 3.000000e+00 : f32
    %505 = vector.broadcast %cst_42 : f32 to vector<8x128xf32>
    %506 = arith.subf %504, %505 : vector<8x128xf32>
    %507 = arith.mulf %506, %490 : vector<8x128xf32>
    %cst_43 = arith.constant 4.000000e+00 : f32
    %508 = vector.broadcast %cst_43 : f32 to vector<8x128xf32>
    %509 = arith.mulf %508, %493 : vector<8x128xf32>
    %510 = arith.mulf %509, %493 : vector<8x128xf32>
    %cst_44 = arith.constant 3.000000e+00 : f32
    %511 = vector.broadcast %cst_44 : f32 to vector<8x128xf32>
    %512 = arith.subf %511, %510 : vector<8x128xf32>
    %513 = arith.mulf %512, %493 : vector<8x128xf32>
    %cst_45 = arith.constant 0.000000e+00 : f32
    %514 = vector.broadcast %cst_45 : f32 to vector<8x128xf32>
    %cst_46 = arith.constant 1.000000e+00 : f32
    %515 = vector.broadcast %cst_46 : f32 to vector<8x128xf32>
    %516 = arith.mulf %464, %515 : vector<8x128xf32>
    %517 = arith.mulf %467, %514 : vector<8x128xf32>
    %518 = arith.subf %516, %517 : vector<8x128xf32>
    %519 = arith.mulf %464, %514 : vector<8x128xf32>
    %520 = arith.mulf %467, %514 : vector<8x128xf32>
    %521 = arith.subf %519, %520 : vector<8x128xf32>
    %522 = arith.mulf %467, %515 : vector<8x128xf32>
    %523 = arith.mulf %464, %514 : vector<8x128xf32>
    %524 = arith.addf %522, %523 : vector<8x128xf32>
    %525 = arith.mulf %467, %514 : vector<8x128xf32>
    %526 = arith.mulf %464, %514 : vector<8x128xf32>
    %527 = arith.addf %525, %526 : vector<8x128xf32>
    %528 = arith.mulf %464, %514 : vector<8x128xf32>
    %529 = arith.mulf %467, %514 : vector<8x128xf32>
    %530 = arith.subf %528, %529 : vector<8x128xf32>
    %531 = arith.mulf %464, %514 : vector<8x128xf32>
    %532 = arith.mulf %467, %514 : vector<8x128xf32>
    %533 = arith.subf %531, %532 : vector<8x128xf32>
    %534 = arith.mulf %467, %514 : vector<8x128xf32>
    %535 = arith.mulf %464, %514 : vector<8x128xf32>
    %536 = arith.addf %534, %535 : vector<8x128xf32>
    %537 = arith.mulf %467, %514 : vector<8x128xf32>
    %538 = arith.mulf %464, %514 : vector<8x128xf32>
    %539 = arith.addf %537, %538 : vector<8x128xf32>
    %540 = arith.mulf %490, %518 : vector<8x128xf32>
    %541 = arith.mulf %493, %530 : vector<8x128xf32>
    %542 = arith.subf %540, %541 : vector<8x128xf32>
    %543 = arith.mulf %490, %521 : vector<8x128xf32>
    %544 = arith.mulf %493, %533 : vector<8x128xf32>
    %545 = arith.subf %543, %544 : vector<8x128xf32>
    %546 = arith.mulf %493, %518 : vector<8x128xf32>
    %547 = arith.mulf %490, %530 : vector<8x128xf32>
    %548 = arith.addf %546, %547 : vector<8x128xf32>
    %549 = arith.mulf %493, %521 : vector<8x128xf32>
    %550 = arith.mulf %490, %533 : vector<8x128xf32>
    %551 = arith.addf %549, %550 : vector<8x128xf32>
    %552 = arith.mulf %490, %524 : vector<8x128xf32>
    %553 = arith.mulf %493, %536 : vector<8x128xf32>
    %554 = arith.subf %552, %553 : vector<8x128xf32>
    %555 = arith.mulf %490, %527 : vector<8x128xf32>
    %556 = arith.mulf %493, %539 : vector<8x128xf32>
    %557 = arith.subf %555, %556 : vector<8x128xf32>
    %558 = arith.mulf %493, %524 : vector<8x128xf32>
    %559 = arith.mulf %490, %536 : vector<8x128xf32>
    %560 = arith.addf %558, %559 : vector<8x128xf32>
    %561 = arith.mulf %493, %527 : vector<8x128xf32>
    %562 = arith.mulf %490, %539 : vector<8x128xf32>
    %563 = arith.addf %561, %562 : vector<8x128xf32>
    %c114 = arith.constant 114 : index
    %564 = memref.load %arg2[%c114] : memref<171xf32, #tpu.memory_space<smem>>
    %c126 = arith.constant 126 : index
    %565 = memref.load %arg2[%c126] : memref<171xf32, #tpu.memory_space<smem>>
    %566 = vector.broadcast %564 : f32 to vector<8x128xf32>
    %567 = arith.mulf %566, %542 : vector<8x128xf32>
    %568 = vector.broadcast %565 : f32 to vector<8x128xf32>
    %569 = arith.mulf %568, %560 : vector<8x128xf32>
    %570 = arith.subf %567, %569 : vector<8x128xf32>
    %571 = vector.broadcast %564 : f32 to vector<8x128xf32>
    %572 = arith.mulf %571, %545 : vector<8x128xf32>
    %573 = vector.broadcast %565 : f32 to vector<8x128xf32>
    %574 = arith.mulf %573, %563 : vector<8x128xf32>
    %575 = arith.subf %572, %574 : vector<8x128xf32>
    %576 = vector.broadcast %565 : f32 to vector<8x128xf32>
    %577 = arith.mulf %576, %542 : vector<8x128xf32>
    %578 = vector.broadcast %564 : f32 to vector<8x128xf32>
    %579 = arith.mulf %578, %560 : vector<8x128xf32>
    %580 = arith.addf %577, %579 : vector<8x128xf32>
    %581 = vector.broadcast %565 : f32 to vector<8x128xf32>
    %582 = arith.mulf %581, %545 : vector<8x128xf32>
    %583 = vector.broadcast %564 : f32 to vector<8x128xf32>
    %584 = arith.mulf %583, %563 : vector<8x128xf32>
    %585 = arith.addf %582, %584 : vector<8x128xf32>
    %586 = vector.broadcast %564 : f32 to vector<8x128xf32>
    %587 = arith.mulf %586, %548 : vector<8x128xf32>
    %588 = vector.broadcast %565 : f32 to vector<8x128xf32>
    %589 = arith.mulf %588, %554 : vector<8x128xf32>
    %590 = arith.subf %587, %589 : vector<8x128xf32>
    %591 = vector.broadcast %564 : f32 to vector<8x128xf32>
    %592 = arith.mulf %591, %551 : vector<8x128xf32>
    %593 = vector.broadcast %565 : f32 to vector<8x128xf32>
    %594 = arith.mulf %593, %557 : vector<8x128xf32>
    %595 = arith.subf %592, %594 : vector<8x128xf32>
    %596 = vector.broadcast %565 : f32 to vector<8x128xf32>
    %597 = arith.mulf %596, %548 : vector<8x128xf32>
    %598 = vector.broadcast %564 : f32 to vector<8x128xf32>
    %599 = arith.mulf %598, %554 : vector<8x128xf32>
    %600 = arith.addf %597, %599 : vector<8x128xf32>
    %601 = vector.broadcast %565 : f32 to vector<8x128xf32>
    %602 = arith.mulf %601, %551 : vector<8x128xf32>
    %603 = vector.broadcast %564 : f32 to vector<8x128xf32>
    %604 = arith.mulf %603, %557 : vector<8x128xf32>
    %605 = arith.addf %602, %604 : vector<8x128xf32>
    %c115 = arith.constant 115 : index
    %606 = memref.load %arg2[%c115] : memref<171xf32, #tpu.memory_space<smem>>
    %c127 = arith.constant 127 : index
    %607 = memref.load %arg2[%c127] : memref<171xf32, #tpu.memory_space<smem>>
    %608 = vector.broadcast %606 : f32 to vector<8x128xf32>
    %609 = arith.mulf %608, %570 : vector<8x128xf32>
    %610 = vector.broadcast %607 : f32 to vector<8x128xf32>
    %611 = arith.mulf %610, %575 : vector<8x128xf32>
    %612 = arith.addf %609, %611 : vector<8x128xf32>
    %613 = vector.broadcast %606 : f32 to vector<8x128xf32>
    %614 = arith.mulf %613, %575 : vector<8x128xf32>
    %615 = vector.broadcast %607 : f32 to vector<8x128xf32>
    %616 = arith.mulf %615, %570 : vector<8x128xf32>
    %617 = arith.subf %614, %616 : vector<8x128xf32>
    %618 = vector.broadcast %606 : f32 to vector<8x128xf32>
    %619 = arith.mulf %618, %590 : vector<8x128xf32>
    %620 = vector.broadcast %607 : f32 to vector<8x128xf32>
    %621 = arith.mulf %620, %595 : vector<8x128xf32>
    %622 = arith.addf %619, %621 : vector<8x128xf32>
    %623 = vector.broadcast %606 : f32 to vector<8x128xf32>
    %624 = arith.mulf %623, %595 : vector<8x128xf32>
    %625 = vector.broadcast %607 : f32 to vector<8x128xf32>
    %626 = arith.mulf %625, %590 : vector<8x128xf32>
    %627 = arith.subf %624, %626 : vector<8x128xf32>
    %628 = vector.broadcast %606 : f32 to vector<8x128xf32>
    %629 = arith.mulf %628, %580 : vector<8x128xf32>
    %630 = vector.broadcast %607 : f32 to vector<8x128xf32>
    %631 = arith.mulf %630, %585 : vector<8x128xf32>
    %632 = arith.subf %629, %631 : vector<8x128xf32>
    %633 = vector.broadcast %606 : f32 to vector<8x128xf32>
    %634 = arith.mulf %633, %585 : vector<8x128xf32>
    %635 = vector.broadcast %607 : f32 to vector<8x128xf32>
    %636 = arith.mulf %635, %580 : vector<8x128xf32>
    %637 = arith.addf %634, %636 : vector<8x128xf32>
    %638 = vector.broadcast %606 : f32 to vector<8x128xf32>
    %639 = arith.mulf %638, %600 : vector<8x128xf32>
    %640 = vector.broadcast %607 : f32 to vector<8x128xf32>
    %641 = arith.mulf %640, %605 : vector<8x128xf32>
    %642 = arith.subf %639, %641 : vector<8x128xf32>
    %643 = vector.broadcast %606 : f32 to vector<8x128xf32>
    %644 = arith.mulf %643, %605 : vector<8x128xf32>
    %645 = vector.broadcast %607 : f32 to vector<8x128xf32>
    %646 = arith.mulf %645, %600 : vector<8x128xf32>
    %647 = arith.addf %644, %646 : vector<8x128xf32>
    %c116 = arith.constant 116 : index
    %648 = memref.load %arg2[%c116] : memref<171xf32, #tpu.memory_space<smem>>
    %c128 = arith.constant 128 : index
    %649 = memref.load %arg2[%c128] : memref<171xf32, #tpu.memory_space<smem>>
    %650 = vector.broadcast %648 : f32 to vector<8x128xf32>
    %651 = arith.mulf %650, %612 : vector<8x128xf32>
    %652 = vector.broadcast %649 : f32 to vector<8x128xf32>
    %653 = arith.mulf %652, %622 : vector<8x128xf32>
    %654 = arith.subf %651, %653 : vector<8x128xf32>
    %655 = vector.broadcast %648 : f32 to vector<8x128xf32>
    %656 = arith.mulf %655, %617 : vector<8x128xf32>
    %657 = vector.broadcast %649 : f32 to vector<8x128xf32>
    %658 = arith.mulf %657, %627 : vector<8x128xf32>
    %659 = arith.subf %656, %658 : vector<8x128xf32>
    %660 = vector.broadcast %649 : f32 to vector<8x128xf32>
    %661 = arith.mulf %660, %612 : vector<8x128xf32>
    %662 = vector.broadcast %648 : f32 to vector<8x128xf32>
    %663 = arith.mulf %662, %622 : vector<8x128xf32>
    %664 = arith.addf %661, %663 : vector<8x128xf32>
    %665 = vector.broadcast %649 : f32 to vector<8x128xf32>
    %666 = arith.mulf %665, %617 : vector<8x128xf32>
    %667 = vector.broadcast %648 : f32 to vector<8x128xf32>
    %668 = arith.mulf %667, %627 : vector<8x128xf32>
    %669 = arith.addf %666, %668 : vector<8x128xf32>
    %670 = vector.broadcast %648 : f32 to vector<8x128xf32>
    %671 = arith.mulf %670, %632 : vector<8x128xf32>
    %672 = vector.broadcast %649 : f32 to vector<8x128xf32>
    %673 = arith.mulf %672, %642 : vector<8x128xf32>
    %674 = arith.subf %671, %673 : vector<8x128xf32>
    %675 = vector.broadcast %648 : f32 to vector<8x128xf32>
    %676 = arith.mulf %675, %637 : vector<8x128xf32>
    %677 = vector.broadcast %649 : f32 to vector<8x128xf32>
    %678 = arith.mulf %677, %647 : vector<8x128xf32>
    %679 = arith.subf %676, %678 : vector<8x128xf32>
    %680 = vector.broadcast %649 : f32 to vector<8x128xf32>
    %681 = arith.mulf %680, %632 : vector<8x128xf32>
    %682 = vector.broadcast %648 : f32 to vector<8x128xf32>
    %683 = arith.mulf %682, %642 : vector<8x128xf32>
    %684 = arith.addf %681, %683 : vector<8x128xf32>
    %685 = vector.broadcast %649 : f32 to vector<8x128xf32>
    %686 = arith.mulf %685, %637 : vector<8x128xf32>
    %687 = vector.broadcast %648 : f32 to vector<8x128xf32>
    %688 = arith.mulf %687, %647 : vector<8x128xf32>
    %689 = arith.addf %686, %688 : vector<8x128xf32>
    %c117 = arith.constant 117 : index
    %690 = memref.load %arg2[%c117] : memref<171xf32, #tpu.memory_space<smem>>
    %c129 = arith.constant 129 : index
    %691 = memref.load %arg2[%c129] : memref<171xf32, #tpu.memory_space<smem>>
    %692 = vector.broadcast %690 : f32 to vector<8x128xf32>
    %693 = arith.mulf %692, %654 : vector<8x128xf32>
    %694 = vector.broadcast %691 : f32 to vector<8x128xf32>
    %695 = arith.mulf %694, %659 : vector<8x128xf32>
    %696 = arith.addf %693, %695 : vector<8x128xf32>
    %697 = vector.broadcast %690 : f32 to vector<8x128xf32>
    %698 = arith.mulf %697, %659 : vector<8x128xf32>
    %699 = vector.broadcast %691 : f32 to vector<8x128xf32>
    %700 = arith.mulf %699, %654 : vector<8x128xf32>
    %701 = arith.subf %698, %700 : vector<8x128xf32>
    %702 = vector.broadcast %690 : f32 to vector<8x128xf32>
    %703 = arith.mulf %702, %674 : vector<8x128xf32>
    %704 = vector.broadcast %691 : f32 to vector<8x128xf32>
    %705 = arith.mulf %704, %679 : vector<8x128xf32>
    %706 = arith.addf %703, %705 : vector<8x128xf32>
    %707 = vector.broadcast %690 : f32 to vector<8x128xf32>
    %708 = arith.mulf %707, %679 : vector<8x128xf32>
    %709 = vector.broadcast %691 : f32 to vector<8x128xf32>
    %710 = arith.mulf %709, %674 : vector<8x128xf32>
    %711 = arith.subf %708, %710 : vector<8x128xf32>
    %712 = vector.broadcast %690 : f32 to vector<8x128xf32>
    %713 = arith.mulf %712, %664 : vector<8x128xf32>
    %714 = vector.broadcast %691 : f32 to vector<8x128xf32>
    %715 = arith.mulf %714, %669 : vector<8x128xf32>
    %716 = arith.subf %713, %715 : vector<8x128xf32>
    %717 = vector.broadcast %690 : f32 to vector<8x128xf32>
    %718 = arith.mulf %717, %669 : vector<8x128xf32>
    %719 = vector.broadcast %691 : f32 to vector<8x128xf32>
    %720 = arith.mulf %719, %664 : vector<8x128xf32>
    %721 = arith.addf %718, %720 : vector<8x128xf32>
    %722 = vector.broadcast %690 : f32 to vector<8x128xf32>
    %723 = arith.mulf %722, %684 : vector<8x128xf32>
    %724 = vector.broadcast %691 : f32 to vector<8x128xf32>
    %725 = arith.mulf %724, %689 : vector<8x128xf32>
    %726 = arith.subf %723, %725 : vector<8x128xf32>
    %727 = vector.broadcast %690 : f32 to vector<8x128xf32>
    %728 = arith.mulf %727, %689 : vector<8x128xf32>
    %729 = vector.broadcast %691 : f32 to vector<8x128xf32>
    %730 = arith.mulf %729, %684 : vector<8x128xf32>
    %731 = arith.addf %728, %730 : vector<8x128xf32>
    %732 = arith.mulf %472, %696 : vector<8x128xf32>
    %733 = arith.mulf %475, %726 : vector<8x128xf32>
    %734 = arith.subf %732, %733 : vector<8x128xf32>
    %735 = arith.mulf %472, %701 : vector<8x128xf32>
    %736 = arith.mulf %475, %731 : vector<8x128xf32>
    %737 = arith.subf %735, %736 : vector<8x128xf32>
    %738 = arith.mulf %475, %696 : vector<8x128xf32>
    %739 = arith.mulf %472, %726 : vector<8x128xf32>
    %740 = arith.addf %738, %739 : vector<8x128xf32>
    %741 = arith.mulf %475, %701 : vector<8x128xf32>
    %742 = arith.mulf %472, %731 : vector<8x128xf32>
    %743 = arith.addf %741, %742 : vector<8x128xf32>
    %744 = arith.mulf %472, %716 : vector<8x128xf32>
    %745 = arith.mulf %475, %706 : vector<8x128xf32>
    %746 = arith.subf %744, %745 : vector<8x128xf32>
    %747 = arith.mulf %472, %721 : vector<8x128xf32>
    %748 = arith.mulf %475, %711 : vector<8x128xf32>
    %749 = arith.subf %747, %748 : vector<8x128xf32>
    %750 = arith.mulf %475, %716 : vector<8x128xf32>
    %751 = arith.mulf %472, %706 : vector<8x128xf32>
    %752 = arith.addf %750, %751 : vector<8x128xf32>
    %753 = arith.mulf %475, %721 : vector<8x128xf32>
    %754 = arith.mulf %472, %711 : vector<8x128xf32>
    %755 = arith.addf %753, %754 : vector<8x128xf32>
    %756 = arith.mulf %498, %734 : vector<8x128xf32>
    %757 = arith.mulf %501, %746 : vector<8x128xf32>
    %758 = arith.subf %756, %757 : vector<8x128xf32>
    %759 = arith.mulf %498, %737 : vector<8x128xf32>
    %760 = arith.mulf %501, %749 : vector<8x128xf32>
    %761 = arith.subf %759, %760 : vector<8x128xf32>
    %762 = arith.mulf %501, %734 : vector<8x128xf32>
    %763 = arith.mulf %498, %746 : vector<8x128xf32>
    %764 = arith.addf %762, %763 : vector<8x128xf32>
    %765 = arith.mulf %501, %737 : vector<8x128xf32>
    %766 = arith.mulf %498, %749 : vector<8x128xf32>
    %767 = arith.addf %765, %766 : vector<8x128xf32>
    %768 = arith.mulf %498, %740 : vector<8x128xf32>
    %769 = arith.mulf %501, %752 : vector<8x128xf32>
    %770 = arith.subf %768, %769 : vector<8x128xf32>
    %771 = arith.mulf %498, %743 : vector<8x128xf32>
    %772 = arith.mulf %501, %755 : vector<8x128xf32>
    %773 = arith.subf %771, %772 : vector<8x128xf32>
    %774 = arith.mulf %501, %740 : vector<8x128xf32>
    %775 = arith.mulf %498, %752 : vector<8x128xf32>
    %776 = arith.addf %774, %775 : vector<8x128xf32>
    %777 = arith.mulf %501, %743 : vector<8x128xf32>
    %778 = arith.mulf %498, %755 : vector<8x128xf32>
    %779 = arith.addf %777, %778 : vector<8x128xf32>
    %c118 = arith.constant 118 : index
    %780 = memref.load %arg2[%c118] : memref<171xf32, #tpu.memory_space<smem>>
    %c130 = arith.constant 130 : index
    %781 = memref.load %arg2[%c130] : memref<171xf32, #tpu.memory_space<smem>>
    %782 = vector.broadcast %780 : f32 to vector<8x128xf32>
    %783 = arith.mulf %782, %758 : vector<8x128xf32>
    %784 = vector.broadcast %781 : f32 to vector<8x128xf32>
    %785 = arith.mulf %784, %776 : vector<8x128xf32>
    %786 = arith.subf %783, %785 : vector<8x128xf32>
    %787 = vector.broadcast %780 : f32 to vector<8x128xf32>
    %788 = arith.mulf %787, %761 : vector<8x128xf32>
    %789 = vector.broadcast %781 : f32 to vector<8x128xf32>
    %790 = arith.mulf %789, %779 : vector<8x128xf32>
    %791 = arith.subf %788, %790 : vector<8x128xf32>
    %792 = vector.broadcast %781 : f32 to vector<8x128xf32>
    %793 = arith.mulf %792, %758 : vector<8x128xf32>
    %794 = vector.broadcast %780 : f32 to vector<8x128xf32>
    %795 = arith.mulf %794, %776 : vector<8x128xf32>
    %796 = arith.addf %793, %795 : vector<8x128xf32>
    %797 = vector.broadcast %781 : f32 to vector<8x128xf32>
    %798 = arith.mulf %797, %761 : vector<8x128xf32>
    %799 = vector.broadcast %780 : f32 to vector<8x128xf32>
    %800 = arith.mulf %799, %779 : vector<8x128xf32>
    %801 = arith.addf %798, %800 : vector<8x128xf32>
    %802 = vector.broadcast %780 : f32 to vector<8x128xf32>
    %803 = arith.mulf %802, %764 : vector<8x128xf32>
    %804 = vector.broadcast %781 : f32 to vector<8x128xf32>
    %805 = arith.mulf %804, %770 : vector<8x128xf32>
    %806 = arith.subf %803, %805 : vector<8x128xf32>
    %807 = vector.broadcast %780 : f32 to vector<8x128xf32>
    %808 = arith.mulf %807, %767 : vector<8x128xf32>
    %809 = vector.broadcast %781 : f32 to vector<8x128xf32>
    %810 = arith.mulf %809, %773 : vector<8x128xf32>
    %811 = arith.subf %808, %810 : vector<8x128xf32>
    %812 = vector.broadcast %781 : f32 to vector<8x128xf32>
    %813 = arith.mulf %812, %764 : vector<8x128xf32>
    %814 = vector.broadcast %780 : f32 to vector<8x128xf32>
    %815 = arith.mulf %814, %770 : vector<8x128xf32>
    %816 = arith.addf %813, %815 : vector<8x128xf32>
    %817 = vector.broadcast %781 : f32 to vector<8x128xf32>
    %818 = arith.mulf %817, %767 : vector<8x128xf32>
    %819 = vector.broadcast %780 : f32 to vector<8x128xf32>
    %820 = arith.mulf %819, %773 : vector<8x128xf32>
    %821 = arith.addf %818, %820 : vector<8x128xf32>
    %c119 = arith.constant 119 : index
    %822 = memref.load %arg2[%c119] : memref<171xf32, #tpu.memory_space<smem>>
    %c131 = arith.constant 131 : index
    %823 = memref.load %arg2[%c131] : memref<171xf32, #tpu.memory_space<smem>>
    %824 = vector.broadcast %822 : f32 to vector<8x128xf32>
    %825 = arith.mulf %824, %786 : vector<8x128xf32>
    %826 = vector.broadcast %823 : f32 to vector<8x128xf32>
    %827 = arith.mulf %826, %791 : vector<8x128xf32>
    %828 = arith.addf %825, %827 : vector<8x128xf32>
    %829 = vector.broadcast %822 : f32 to vector<8x128xf32>
    %830 = arith.mulf %829, %791 : vector<8x128xf32>
    %831 = vector.broadcast %823 : f32 to vector<8x128xf32>
    %832 = arith.mulf %831, %786 : vector<8x128xf32>
    %833 = arith.subf %830, %832 : vector<8x128xf32>
    %834 = vector.broadcast %822 : f32 to vector<8x128xf32>
    %835 = arith.mulf %834, %806 : vector<8x128xf32>
    %836 = vector.broadcast %823 : f32 to vector<8x128xf32>
    %837 = arith.mulf %836, %811 : vector<8x128xf32>
    %838 = arith.addf %835, %837 : vector<8x128xf32>
    %839 = vector.broadcast %822 : f32 to vector<8x128xf32>
    %840 = arith.mulf %839, %811 : vector<8x128xf32>
    %841 = vector.broadcast %823 : f32 to vector<8x128xf32>
    %842 = arith.mulf %841, %806 : vector<8x128xf32>
    %843 = arith.subf %840, %842 : vector<8x128xf32>
    %844 = vector.broadcast %822 : f32 to vector<8x128xf32>
    %845 = arith.mulf %844, %796 : vector<8x128xf32>
    %846 = vector.broadcast %823 : f32 to vector<8x128xf32>
    %847 = arith.mulf %846, %801 : vector<8x128xf32>
    %848 = arith.subf %845, %847 : vector<8x128xf32>
    %849 = vector.broadcast %822 : f32 to vector<8x128xf32>
    %850 = arith.mulf %849, %801 : vector<8x128xf32>
    %851 = vector.broadcast %823 : f32 to vector<8x128xf32>
    %852 = arith.mulf %851, %796 : vector<8x128xf32>
    %853 = arith.addf %850, %852 : vector<8x128xf32>
    %854 = vector.broadcast %822 : f32 to vector<8x128xf32>
    %855 = arith.mulf %854, %816 : vector<8x128xf32>
    %856 = vector.broadcast %823 : f32 to vector<8x128xf32>
    %857 = arith.mulf %856, %821 : vector<8x128xf32>
    %858 = arith.subf %855, %857 : vector<8x128xf32>
    %859 = vector.broadcast %822 : f32 to vector<8x128xf32>
    %860 = arith.mulf %859, %821 : vector<8x128xf32>
    %861 = vector.broadcast %823 : f32 to vector<8x128xf32>
    %862 = arith.mulf %861, %816 : vector<8x128xf32>
    %863 = arith.addf %860, %862 : vector<8x128xf32>
    %c120 = arith.constant 120 : index
    %864 = memref.load %arg2[%c120] : memref<171xf32, #tpu.memory_space<smem>>
    %c132 = arith.constant 132 : index
    %865 = memref.load %arg2[%c132] : memref<171xf32, #tpu.memory_space<smem>>
    %866 = vector.broadcast %864 : f32 to vector<8x128xf32>
    %867 = arith.mulf %866, %828 : vector<8x128xf32>
    %868 = vector.broadcast %865 : f32 to vector<8x128xf32>
    %869 = arith.mulf %868, %838 : vector<8x128xf32>
    %870 = arith.subf %867, %869 : vector<8x128xf32>
    %871 = vector.broadcast %864 : f32 to vector<8x128xf32>
    %872 = arith.mulf %871, %833 : vector<8x128xf32>
    %873 = vector.broadcast %865 : f32 to vector<8x128xf32>
    %874 = arith.mulf %873, %843 : vector<8x128xf32>
    %875 = arith.subf %872, %874 : vector<8x128xf32>
    %876 = vector.broadcast %865 : f32 to vector<8x128xf32>
    %877 = arith.mulf %876, %828 : vector<8x128xf32>
    %878 = vector.broadcast %864 : f32 to vector<8x128xf32>
    %879 = arith.mulf %878, %838 : vector<8x128xf32>
    %880 = arith.addf %877, %879 : vector<8x128xf32>
    %881 = vector.broadcast %865 : f32 to vector<8x128xf32>
    %882 = arith.mulf %881, %833 : vector<8x128xf32>
    %883 = vector.broadcast %864 : f32 to vector<8x128xf32>
    %884 = arith.mulf %883, %843 : vector<8x128xf32>
    %885 = arith.addf %882, %884 : vector<8x128xf32>
    %886 = vector.broadcast %864 : f32 to vector<8x128xf32>
    %887 = arith.mulf %886, %848 : vector<8x128xf32>
    %888 = vector.broadcast %865 : f32 to vector<8x128xf32>
    %889 = arith.mulf %888, %858 : vector<8x128xf32>
    %890 = arith.subf %887, %889 : vector<8x128xf32>
    %891 = vector.broadcast %864 : f32 to vector<8x128xf32>
    %892 = arith.mulf %891, %853 : vector<8x128xf32>
    %893 = vector.broadcast %865 : f32 to vector<8x128xf32>
    %894 = arith.mulf %893, %863 : vector<8x128xf32>
    %895 = arith.subf %892, %894 : vector<8x128xf32>
    %896 = vector.broadcast %865 : f32 to vector<8x128xf32>
    %897 = arith.mulf %896, %848 : vector<8x128xf32>
    %898 = vector.broadcast %864 : f32 to vector<8x128xf32>
    %899 = arith.mulf %898, %858 : vector<8x128xf32>
    %900 = arith.addf %897, %899 : vector<8x128xf32>
    %901 = vector.broadcast %865 : f32 to vector<8x128xf32>
    %902 = arith.mulf %901, %853 : vector<8x128xf32>
    %903 = vector.broadcast %864 : f32 to vector<8x128xf32>
    %904 = arith.mulf %903, %863 : vector<8x128xf32>
    %905 = arith.addf %902, %904 : vector<8x128xf32>
    %c121 = arith.constant 121 : index
    %906 = memref.load %arg2[%c121] : memref<171xf32, #tpu.memory_space<smem>>
    %c133 = arith.constant 133 : index
    %907 = memref.load %arg2[%c133] : memref<171xf32, #tpu.memory_space<smem>>
    %908 = vector.broadcast %906 : f32 to vector<8x128xf32>
    %909 = arith.mulf %908, %870 : vector<8x128xf32>
    %910 = vector.broadcast %907 : f32 to vector<8x128xf32>
    %911 = arith.mulf %910, %875 : vector<8x128xf32>
    %912 = arith.addf %909, %911 : vector<8x128xf32>
    %913 = vector.broadcast %906 : f32 to vector<8x128xf32>
    %914 = arith.mulf %913, %875 : vector<8x128xf32>
    %915 = vector.broadcast %907 : f32 to vector<8x128xf32>
    %916 = arith.mulf %915, %870 : vector<8x128xf32>
    %917 = arith.subf %914, %916 : vector<8x128xf32>
    %918 = vector.broadcast %906 : f32 to vector<8x128xf32>
    %919 = arith.mulf %918, %890 : vector<8x128xf32>
    %920 = vector.broadcast %907 : f32 to vector<8x128xf32>
    %921 = arith.mulf %920, %895 : vector<8x128xf32>
    %922 = arith.addf %919, %921 : vector<8x128xf32>
    %923 = vector.broadcast %906 : f32 to vector<8x128xf32>
    %924 = arith.mulf %923, %895 : vector<8x128xf32>
    %925 = vector.broadcast %907 : f32 to vector<8x128xf32>
    %926 = arith.mulf %925, %890 : vector<8x128xf32>
    %927 = arith.subf %924, %926 : vector<8x128xf32>
    %928 = vector.broadcast %906 : f32 to vector<8x128xf32>
    %929 = arith.mulf %928, %880 : vector<8x128xf32>
    %930 = vector.broadcast %907 : f32 to vector<8x128xf32>
    %931 = arith.mulf %930, %885 : vector<8x128xf32>
    %932 = arith.subf %929, %931 : vector<8x128xf32>
    %933 = vector.broadcast %906 : f32 to vector<8x128xf32>
    %934 = arith.mulf %933, %885 : vector<8x128xf32>
    %935 = vector.broadcast %907 : f32 to vector<8x128xf32>
    %936 = arith.mulf %935, %880 : vector<8x128xf32>
    %937 = arith.addf %934, %936 : vector<8x128xf32>
    %938 = vector.broadcast %906 : f32 to vector<8x128xf32>
    %939 = arith.mulf %938, %900 : vector<8x128xf32>
    %940 = vector.broadcast %907 : f32 to vector<8x128xf32>
    %941 = arith.mulf %940, %905 : vector<8x128xf32>
    %942 = arith.subf %939, %941 : vector<8x128xf32>
    %943 = vector.broadcast %906 : f32 to vector<8x128xf32>
    %944 = arith.mulf %943, %905 : vector<8x128xf32>
    %945 = vector.broadcast %907 : f32 to vector<8x128xf32>
    %946 = arith.mulf %945, %900 : vector<8x128xf32>
    %947 = arith.addf %944, %946 : vector<8x128xf32>
    %948 = arith.mulf %481, %912 : vector<8x128xf32>
    %949 = arith.mulf %487, %942 : vector<8x128xf32>
    %950 = arith.subf %948, %949 : vector<8x128xf32>
    %951 = arith.mulf %481, %917 : vector<8x128xf32>
    %952 = arith.mulf %487, %947 : vector<8x128xf32>
    %953 = arith.subf %951, %952 : vector<8x128xf32>
    %954 = arith.mulf %487, %912 : vector<8x128xf32>
    %955 = arith.mulf %481, %942 : vector<8x128xf32>
    %956 = arith.addf %954, %955 : vector<8x128xf32>
    %957 = arith.mulf %487, %917 : vector<8x128xf32>
    %958 = arith.mulf %481, %947 : vector<8x128xf32>
    %959 = arith.addf %957, %958 : vector<8x128xf32>
    %960 = arith.mulf %481, %932 : vector<8x128xf32>
    %961 = arith.mulf %487, %922 : vector<8x128xf32>
    %962 = arith.subf %960, %961 : vector<8x128xf32>
    %963 = arith.mulf %481, %937 : vector<8x128xf32>
    %964 = arith.mulf %487, %927 : vector<8x128xf32>
    %965 = arith.subf %963, %964 : vector<8x128xf32>
    %966 = arith.mulf %487, %932 : vector<8x128xf32>
    %967 = arith.mulf %481, %922 : vector<8x128xf32>
    %968 = arith.addf %966, %967 : vector<8x128xf32>
    %969 = arith.mulf %487, %937 : vector<8x128xf32>
    %970 = arith.mulf %481, %927 : vector<8x128xf32>
    %971 = arith.addf %969, %970 : vector<8x128xf32>
    %972 = arith.mulf %507, %950 : vector<8x128xf32>
    %973 = arith.mulf %513, %962 : vector<8x128xf32>
    %974 = arith.subf %972, %973 : vector<8x128xf32>
    %975 = arith.mulf %507, %953 : vector<8x128xf32>
    %976 = arith.mulf %513, %965 : vector<8x128xf32>
    %977 = arith.subf %975, %976 : vector<8x128xf32>
    %978 = arith.mulf %513, %950 : vector<8x128xf32>
    %979 = arith.mulf %507, %962 : vector<8x128xf32>
    %980 = arith.addf %978, %979 : vector<8x128xf32>
    %981 = arith.mulf %513, %953 : vector<8x128xf32>
    %982 = arith.mulf %507, %965 : vector<8x128xf32>
    %983 = arith.addf %981, %982 : vector<8x128xf32>
    %984 = arith.mulf %507, %956 : vector<8x128xf32>
    %985 = arith.mulf %513, %968 : vector<8x128xf32>
    %986 = arith.subf %984, %985 : vector<8x128xf32>
    %987 = arith.mulf %507, %959 : vector<8x128xf32>
    %988 = arith.mulf %513, %971 : vector<8x128xf32>
    %989 = arith.subf %987, %988 : vector<8x128xf32>
    %990 = arith.mulf %513, %956 : vector<8x128xf32>
    %991 = arith.mulf %507, %968 : vector<8x128xf32>
    %992 = arith.addf %990, %991 : vector<8x128xf32>
    %993 = arith.mulf %513, %959 : vector<8x128xf32>
    %994 = arith.mulf %507, %971 : vector<8x128xf32>
    %995 = arith.addf %993, %994 : vector<8x128xf32>
    %c122 = arith.constant 122 : index
    %996 = memref.load %arg2[%c122] : memref<171xf32, #tpu.memory_space<smem>>
    %c134 = arith.constant 134 : index
    %997 = memref.load %arg2[%c134] : memref<171xf32, #tpu.memory_space<smem>>
    %998 = vector.broadcast %996 : f32 to vector<8x128xf32>
    %999 = arith.mulf %998, %974 : vector<8x128xf32>
    %1000 = vector.broadcast %997 : f32 to vector<8x128xf32>
    %1001 = arith.mulf %1000, %992 : vector<8x128xf32>
    %1002 = arith.subf %999, %1001 : vector<8x128xf32>
    %1003 = vector.broadcast %996 : f32 to vector<8x128xf32>
    %1004 = arith.mulf %1003, %977 : vector<8x128xf32>
    %1005 = vector.broadcast %997 : f32 to vector<8x128xf32>
    %1006 = arith.mulf %1005, %995 : vector<8x128xf32>
    %1007 = arith.subf %1004, %1006 : vector<8x128xf32>
    %1008 = vector.broadcast %997 : f32 to vector<8x128xf32>
    %1009 = arith.mulf %1008, %974 : vector<8x128xf32>
    %1010 = vector.broadcast %996 : f32 to vector<8x128xf32>
    %1011 = arith.mulf %1010, %992 : vector<8x128xf32>
    %1012 = arith.addf %1009, %1011 : vector<8x128xf32>
    %1013 = vector.broadcast %997 : f32 to vector<8x128xf32>
    %1014 = arith.mulf %1013, %977 : vector<8x128xf32>
    %1015 = vector.broadcast %996 : f32 to vector<8x128xf32>
    %1016 = arith.mulf %1015, %995 : vector<8x128xf32>
    %1017 = arith.addf %1014, %1016 : vector<8x128xf32>
    %1018 = vector.broadcast %996 : f32 to vector<8x128xf32>
    %1019 = arith.mulf %1018, %980 : vector<8x128xf32>
    %1020 = vector.broadcast %997 : f32 to vector<8x128xf32>
    %1021 = arith.mulf %1020, %986 : vector<8x128xf32>
    %1022 = arith.subf %1019, %1021 : vector<8x128xf32>
    %1023 = vector.broadcast %996 : f32 to vector<8x128xf32>
    %1024 = arith.mulf %1023, %983 : vector<8x128xf32>
    %1025 = vector.broadcast %997 : f32 to vector<8x128xf32>
    %1026 = arith.mulf %1025, %989 : vector<8x128xf32>
    %1027 = arith.subf %1024, %1026 : vector<8x128xf32>
    %1028 = vector.broadcast %997 : f32 to vector<8x128xf32>
    %1029 = arith.mulf %1028, %980 : vector<8x128xf32>
    %1030 = vector.broadcast %996 : f32 to vector<8x128xf32>
    %1031 = arith.mulf %1030, %986 : vector<8x128xf32>
    %1032 = arith.addf %1029, %1031 : vector<8x128xf32>
    %1033 = vector.broadcast %997 : f32 to vector<8x128xf32>
    %1034 = arith.mulf %1033, %983 : vector<8x128xf32>
    %1035 = vector.broadcast %996 : f32 to vector<8x128xf32>
    %1036 = arith.mulf %1035, %989 : vector<8x128xf32>
    %1037 = arith.addf %1034, %1036 : vector<8x128xf32>
    %c123 = arith.constant 123 : index
    %1038 = memref.load %arg2[%c123] : memref<171xf32, #tpu.memory_space<smem>>
    %c135 = arith.constant 135 : index
    %1039 = memref.load %arg2[%c135] : memref<171xf32, #tpu.memory_space<smem>>
    %1040 = vector.broadcast %1038 : f32 to vector<8x128xf32>
    %1041 = arith.mulf %1040, %1002 : vector<8x128xf32>
    %1042 = vector.broadcast %1039 : f32 to vector<8x128xf32>
    %1043 = arith.mulf %1042, %1007 : vector<8x128xf32>
    %1044 = arith.addf %1041, %1043 : vector<8x128xf32>
    %1045 = vector.broadcast %1038 : f32 to vector<8x128xf32>
    %1046 = arith.mulf %1045, %1007 : vector<8x128xf32>
    %1047 = vector.broadcast %1039 : f32 to vector<8x128xf32>
    %1048 = arith.mulf %1047, %1002 : vector<8x128xf32>
    %1049 = arith.subf %1046, %1048 : vector<8x128xf32>
    %1050 = vector.broadcast %1038 : f32 to vector<8x128xf32>
    %1051 = arith.mulf %1050, %1022 : vector<8x128xf32>
    %1052 = vector.broadcast %1039 : f32 to vector<8x128xf32>
    %1053 = arith.mulf %1052, %1027 : vector<8x128xf32>
    %1054 = arith.addf %1051, %1053 : vector<8x128xf32>
    %1055 = vector.broadcast %1038 : f32 to vector<8x128xf32>
    %1056 = arith.mulf %1055, %1027 : vector<8x128xf32>
    %1057 = vector.broadcast %1039 : f32 to vector<8x128xf32>
    %1058 = arith.mulf %1057, %1022 : vector<8x128xf32>
    %1059 = arith.subf %1056, %1058 : vector<8x128xf32>
    %1060 = vector.broadcast %1038 : f32 to vector<8x128xf32>
    %1061 = arith.mulf %1060, %1012 : vector<8x128xf32>
    %1062 = vector.broadcast %1039 : f32 to vector<8x128xf32>
    %1063 = arith.mulf %1062, %1017 : vector<8x128xf32>
    %1064 = arith.subf %1061, %1063 : vector<8x128xf32>
    %1065 = vector.broadcast %1038 : f32 to vector<8x128xf32>
    %1066 = arith.mulf %1065, %1017 : vector<8x128xf32>
    %1067 = vector.broadcast %1039 : f32 to vector<8x128xf32>
    %1068 = arith.mulf %1067, %1012 : vector<8x128xf32>
    %1069 = arith.addf %1066, %1068 : vector<8x128xf32>
    %1070 = vector.broadcast %1038 : f32 to vector<8x128xf32>
    %1071 = arith.mulf %1070, %1032 : vector<8x128xf32>
    %1072 = vector.broadcast %1039 : f32 to vector<8x128xf32>
    %1073 = arith.mulf %1072, %1037 : vector<8x128xf32>
    %1074 = arith.subf %1071, %1073 : vector<8x128xf32>
    %1075 = vector.broadcast %1038 : f32 to vector<8x128xf32>
    %1076 = arith.mulf %1075, %1037 : vector<8x128xf32>
    %1077 = vector.broadcast %1039 : f32 to vector<8x128xf32>
    %1078 = arith.mulf %1077, %1032 : vector<8x128xf32>
    %1079 = arith.addf %1076, %1078 : vector<8x128xf32>
    %c124 = arith.constant 124 : index
    %1080 = memref.load %arg2[%c124] : memref<171xf32, #tpu.memory_space<smem>>
    %c136 = arith.constant 136 : index
    %1081 = memref.load %arg2[%c136] : memref<171xf32, #tpu.memory_space<smem>>
    %1082 = vector.broadcast %1080 : f32 to vector<8x128xf32>
    %1083 = arith.mulf %1082, %1044 : vector<8x128xf32>
    %1084 = vector.broadcast %1081 : f32 to vector<8x128xf32>
    %1085 = arith.mulf %1084, %1054 : vector<8x128xf32>
    %1086 = arith.subf %1083, %1085 : vector<8x128xf32>
    %1087 = vector.broadcast %1080 : f32 to vector<8x128xf32>
    %1088 = arith.mulf %1087, %1049 : vector<8x128xf32>
    %1089 = vector.broadcast %1081 : f32 to vector<8x128xf32>
    %1090 = arith.mulf %1089, %1059 : vector<8x128xf32>
    %1091 = arith.subf %1088, %1090 : vector<8x128xf32>
    %1092 = vector.broadcast %1081 : f32 to vector<8x128xf32>
    %1093 = arith.mulf %1092, %1044 : vector<8x128xf32>
    %1094 = vector.broadcast %1080 : f32 to vector<8x128xf32>
    %1095 = arith.mulf %1094, %1054 : vector<8x128xf32>
    %1096 = arith.addf %1093, %1095 : vector<8x128xf32>
    %1097 = vector.broadcast %1081 : f32 to vector<8x128xf32>
    %1098 = arith.mulf %1097, %1049 : vector<8x128xf32>
    %1099 = vector.broadcast %1080 : f32 to vector<8x128xf32>
    %1100 = arith.mulf %1099, %1059 : vector<8x128xf32>
    %1101 = arith.addf %1098, %1100 : vector<8x128xf32>
    %1102 = vector.broadcast %1080 : f32 to vector<8x128xf32>
    %1103 = arith.mulf %1102, %1064 : vector<8x128xf32>
    %1104 = vector.broadcast %1081 : f32 to vector<8x128xf32>
    %1105 = arith.mulf %1104, %1074 : vector<8x128xf32>
    %1106 = arith.subf %1103, %1105 : vector<8x128xf32>
    %1107 = vector.broadcast %1080 : f32 to vector<8x128xf32>
    %1108 = arith.mulf %1107, %1069 : vector<8x128xf32>
    %1109 = vector.broadcast %1081 : f32 to vector<8x128xf32>
    %1110 = arith.mulf %1109, %1079 : vector<8x128xf32>
    %1111 = arith.subf %1108, %1110 : vector<8x128xf32>
    %1112 = vector.broadcast %1081 : f32 to vector<8x128xf32>
    %1113 = arith.mulf %1112, %1064 : vector<8x128xf32>
    %1114 = vector.broadcast %1080 : f32 to vector<8x128xf32>
    %1115 = arith.mulf %1114, %1074 : vector<8x128xf32>
    %1116 = arith.addf %1113, %1115 : vector<8x128xf32>
    %1117 = vector.broadcast %1081 : f32 to vector<8x128xf32>
    %1118 = arith.mulf %1117, %1069 : vector<8x128xf32>
    %1119 = vector.broadcast %1080 : f32 to vector<8x128xf32>
    %1120 = arith.mulf %1119, %1079 : vector<8x128xf32>
    %1121 = arith.addf %1118, %1120 : vector<8x128xf32>
    %c125 = arith.constant 125 : index
    %1122 = memref.load %arg2[%c125] : memref<171xf32, #tpu.memory_space<smem>>
    %c137 = arith.constant 137 : index
    %1123 = memref.load %arg2[%c137] : memref<171xf32, #tpu.memory_space<smem>>
    %1124 = vector.broadcast %1122 : f32 to vector<8x128xf32>
    %1125 = arith.mulf %1124, %1086 : vector<8x128xf32>
    %1126 = vector.broadcast %1123 : f32 to vector<8x128xf32>
    %1127 = arith.mulf %1126, %1091 : vector<8x128xf32>
    %1128 = arith.addf %1125, %1127 : vector<8x128xf32>
    %1129 = vector.broadcast %1122 : f32 to vector<8x128xf32>
    %1130 = arith.mulf %1129, %1091 : vector<8x128xf32>
    %1131 = vector.broadcast %1123 : f32 to vector<8x128xf32>
    %1132 = arith.mulf %1131, %1086 : vector<8x128xf32>
    %1133 = arith.subf %1130, %1132 : vector<8x128xf32>
    %1134 = vector.broadcast %1122 : f32 to vector<8x128xf32>
    %1135 = arith.mulf %1134, %1106 : vector<8x128xf32>
    %1136 = vector.broadcast %1123 : f32 to vector<8x128xf32>
    %1137 = arith.mulf %1136, %1111 : vector<8x128xf32>
    %1138 = arith.addf %1135, %1137 : vector<8x128xf32>
    %1139 = vector.broadcast %1122 : f32 to vector<8x128xf32>
    %1140 = arith.mulf %1139, %1111 : vector<8x128xf32>
    %1141 = vector.broadcast %1123 : f32 to vector<8x128xf32>
    %1142 = arith.mulf %1141, %1106 : vector<8x128xf32>
    %1143 = arith.subf %1140, %1142 : vector<8x128xf32>
    %1144 = vector.broadcast %1122 : f32 to vector<8x128xf32>
    %1145 = arith.mulf %1144, %1096 : vector<8x128xf32>
    %1146 = vector.broadcast %1123 : f32 to vector<8x128xf32>
    %1147 = arith.mulf %1146, %1101 : vector<8x128xf32>
    %1148 = arith.subf %1145, %1147 : vector<8x128xf32>
    %1149 = vector.broadcast %1122 : f32 to vector<8x128xf32>
    %1150 = arith.mulf %1149, %1101 : vector<8x128xf32>
    %1151 = vector.broadcast %1123 : f32 to vector<8x128xf32>
    %1152 = arith.mulf %1151, %1096 : vector<8x128xf32>
    %1153 = arith.addf %1150, %1152 : vector<8x128xf32>
    %1154 = vector.broadcast %1122 : f32 to vector<8x128xf32>
    %1155 = arith.mulf %1154, %1116 : vector<8x128xf32>
    %1156 = vector.broadcast %1123 : f32 to vector<8x128xf32>
    %1157 = arith.mulf %1156, %1121 : vector<8x128xf32>
    %1158 = arith.subf %1155, %1157 : vector<8x128xf32>
    %1159 = vector.broadcast %1122 : f32 to vector<8x128xf32>
    %1160 = arith.mulf %1159, %1121 : vector<8x128xf32>
    %1161 = vector.broadcast %1123 : f32 to vector<8x128xf32>
    %1162 = arith.mulf %1161, %1116 : vector<8x128xf32>
    %1163 = arith.addf %1160, %1162 : vector<8x128xf32>
    %1164 = arith.mulf %1128, %1128 : vector<8x128xf32>
    %1165 = arith.mulf %1133, %1133 : vector<8x128xf32>
    %1166 = arith.addf %1164, %1165 : vector<8x128xf32>
    %1167 = arith.mulf %1158, %1158 : vector<8x128xf32>
    %1168 = arith.mulf %1163, %1163 : vector<8x128xf32>
    %1169 = arith.addf %1167, %1168 : vector<8x128xf32>
    %1170 = arith.mulf %1148, %1148 : vector<8x128xf32>
    %1171 = arith.mulf %1153, %1153 : vector<8x128xf32>
    %1172 = arith.addf %1170, %1171 : vector<8x128xf32>
    %1173 = arith.mulf %1138, %1138 : vector<8x128xf32>
    %1174 = arith.mulf %1143, %1143 : vector<8x128xf32>
    %1175 = arith.addf %1173, %1174 : vector<8x128xf32>
    %1176 = arith.addf %1166, %1169 : vector<8x128xf32>
    %1177 = arith.subf %1176, %1172 : vector<8x128xf32>
    %1178 = arith.subf %1177, %1175 : vector<8x128xf32>
    %1179 = arith.subf %1166, %1169 : vector<8x128xf32>
    %1180 = arith.addf %1179, %1172 : vector<8x128xf32>
    %1181 = arith.subf %1180, %1175 : vector<8x128xf32>
    %c154 = arith.constant 154 : index
    %1182 = memref.load %arg2[%c154] : memref<171xf32, #tpu.memory_space<smem>>
    %c138 = arith.constant 138 : index
    %1183 = memref.load %arg2[%c138] : memref<171xf32, #tpu.memory_space<smem>>
    %1184 = vector.broadcast %1183 : f32 to vector<8x128xf32>
    %1185 = arith.mulf %1184, %1178 : vector<8x128xf32>
    %1186 = vector.broadcast %1182 : f32 to vector<8x128xf32>
    %1187 = arith.addf %1186, %1185 : vector<8x128xf32>
    %c146 = arith.constant 146 : index
    %1188 = memref.load %arg2[%c146] : memref<171xf32, #tpu.memory_space<smem>>
    %1189 = vector.broadcast %1188 : f32 to vector<8x128xf32>
    %1190 = arith.mulf %1189, %1181 : vector<8x128xf32>
    %1191 = arith.addf %1187, %1190 : vector<8x128xf32>
    %cst_47 = arith.constant 0.000000e+00 : f32
    %1192 = vector.broadcast %cst_47 : f32 to vector<8x128xf32>
    %1193 = arith.maximumf %1191, %1192 : vector<8x128xf32>
    %c155 = arith.constant 155 : index
    %1194 = memref.load %arg2[%c155] : memref<171xf32, #tpu.memory_space<smem>>
    %c139 = arith.constant 139 : index
    %1195 = memref.load %arg2[%c139] : memref<171xf32, #tpu.memory_space<smem>>
    %1196 = vector.broadcast %1195 : f32 to vector<8x128xf32>
    %1197 = arith.mulf %1196, %1178 : vector<8x128xf32>
    %1198 = vector.broadcast %1194 : f32 to vector<8x128xf32>
    %1199 = arith.addf %1198, %1197 : vector<8x128xf32>
    %c147 = arith.constant 147 : index
    %1200 = memref.load %arg2[%c147] : memref<171xf32, #tpu.memory_space<smem>>
    %1201 = vector.broadcast %1200 : f32 to vector<8x128xf32>
    %1202 = arith.mulf %1201, %1181 : vector<8x128xf32>
    %1203 = arith.addf %1199, %1202 : vector<8x128xf32>
    %cst_48 = arith.constant 0.000000e+00 : f32
    %1204 = vector.broadcast %cst_48 : f32 to vector<8x128xf32>
    %1205 = arith.maximumf %1203, %1204 : vector<8x128xf32>
    %c156 = arith.constant 156 : index
    %1206 = memref.load %arg2[%c156] : memref<171xf32, #tpu.memory_space<smem>>
    %c140 = arith.constant 140 : index
    %1207 = memref.load %arg2[%c140] : memref<171xf32, #tpu.memory_space<smem>>
    %1208 = vector.broadcast %1207 : f32 to vector<8x128xf32>
    %1209 = arith.mulf %1208, %1178 : vector<8x128xf32>
    %1210 = vector.broadcast %1206 : f32 to vector<8x128xf32>
    %1211 = arith.addf %1210, %1209 : vector<8x128xf32>
    %c148 = arith.constant 148 : index
    %1212 = memref.load %arg2[%c148] : memref<171xf32, #tpu.memory_space<smem>>
    %1213 = vector.broadcast %1212 : f32 to vector<8x128xf32>
    %1214 = arith.mulf %1213, %1181 : vector<8x128xf32>
    %1215 = arith.addf %1211, %1214 : vector<8x128xf32>
    %cst_49 = arith.constant 0.000000e+00 : f32
    %1216 = vector.broadcast %cst_49 : f32 to vector<8x128xf32>
    %1217 = arith.maximumf %1215, %1216 : vector<8x128xf32>
    %c157 = arith.constant 157 : index
    %1218 = memref.load %arg2[%c157] : memref<171xf32, #tpu.memory_space<smem>>
    %c141 = arith.constant 141 : index
    %1219 = memref.load %arg2[%c141] : memref<171xf32, #tpu.memory_space<smem>>
    %1220 = vector.broadcast %1219 : f32 to vector<8x128xf32>
    %1221 = arith.mulf %1220, %1178 : vector<8x128xf32>
    %1222 = vector.broadcast %1218 : f32 to vector<8x128xf32>
    %1223 = arith.addf %1222, %1221 : vector<8x128xf32>
    %c149 = arith.constant 149 : index
    %1224 = memref.load %arg2[%c149] : memref<171xf32, #tpu.memory_space<smem>>
    %1225 = vector.broadcast %1224 : f32 to vector<8x128xf32>
    %1226 = arith.mulf %1225, %1181 : vector<8x128xf32>
    %1227 = arith.addf %1223, %1226 : vector<8x128xf32>
    %cst_50 = arith.constant 0.000000e+00 : f32
    %1228 = vector.broadcast %cst_50 : f32 to vector<8x128xf32>
    %1229 = arith.maximumf %1227, %1228 : vector<8x128xf32>
    %c158 = arith.constant 158 : index
    %1230 = memref.load %arg2[%c158] : memref<171xf32, #tpu.memory_space<smem>>
    %c142 = arith.constant 142 : index
    %1231 = memref.load %arg2[%c142] : memref<171xf32, #tpu.memory_space<smem>>
    %1232 = vector.broadcast %1231 : f32 to vector<8x128xf32>
    %1233 = arith.mulf %1232, %1178 : vector<8x128xf32>
    %1234 = vector.broadcast %1230 : f32 to vector<8x128xf32>
    %1235 = arith.addf %1234, %1233 : vector<8x128xf32>
    %c150 = arith.constant 150 : index
    %1236 = memref.load %arg2[%c150] : memref<171xf32, #tpu.memory_space<smem>>
    %1237 = vector.broadcast %1236 : f32 to vector<8x128xf32>
    %1238 = arith.mulf %1237, %1181 : vector<8x128xf32>
    %1239 = arith.addf %1235, %1238 : vector<8x128xf32>
    %cst_51 = arith.constant 0.000000e+00 : f32
    %1240 = vector.broadcast %cst_51 : f32 to vector<8x128xf32>
    %1241 = arith.maximumf %1239, %1240 : vector<8x128xf32>
    %c159 = arith.constant 159 : index
    %1242 = memref.load %arg2[%c159] : memref<171xf32, #tpu.memory_space<smem>>
    %c143 = arith.constant 143 : index
    %1243 = memref.load %arg2[%c143] : memref<171xf32, #tpu.memory_space<smem>>
    %1244 = vector.broadcast %1243 : f32 to vector<8x128xf32>
    %1245 = arith.mulf %1244, %1178 : vector<8x128xf32>
    %1246 = vector.broadcast %1242 : f32 to vector<8x128xf32>
    %1247 = arith.addf %1246, %1245 : vector<8x128xf32>
    %c151 = arith.constant 151 : index
    %1248 = memref.load %arg2[%c151] : memref<171xf32, #tpu.memory_space<smem>>
    %1249 = vector.broadcast %1248 : f32 to vector<8x128xf32>
    %1250 = arith.mulf %1249, %1181 : vector<8x128xf32>
    %1251 = arith.addf %1247, %1250 : vector<8x128xf32>
    %cst_52 = arith.constant 0.000000e+00 : f32
    %1252 = vector.broadcast %cst_52 : f32 to vector<8x128xf32>
    %1253 = arith.maximumf %1251, %1252 : vector<8x128xf32>
    %c160 = arith.constant 160 : index
    %1254 = memref.load %arg2[%c160] : memref<171xf32, #tpu.memory_space<smem>>
    %c144 = arith.constant 144 : index
    %1255 = memref.load %arg2[%c144] : memref<171xf32, #tpu.memory_space<smem>>
    %1256 = vector.broadcast %1255 : f32 to vector<8x128xf32>
    %1257 = arith.mulf %1256, %1178 : vector<8x128xf32>
    %1258 = vector.broadcast %1254 : f32 to vector<8x128xf32>
    %1259 = arith.addf %1258, %1257 : vector<8x128xf32>
    %c152 = arith.constant 152 : index
    %1260 = memref.load %arg2[%c152] : memref<171xf32, #tpu.memory_space<smem>>
    %1261 = vector.broadcast %1260 : f32 to vector<8x128xf32>
    %1262 = arith.mulf %1261, %1181 : vector<8x128xf32>
    %1263 = arith.addf %1259, %1262 : vector<8x128xf32>
    %cst_53 = arith.constant 0.000000e+00 : f32
    %1264 = vector.broadcast %cst_53 : f32 to vector<8x128xf32>
    %1265 = arith.maximumf %1263, %1264 : vector<8x128xf32>
    %c161 = arith.constant 161 : index
    %1266 = memref.load %arg2[%c161] : memref<171xf32, #tpu.memory_space<smem>>
    %c145 = arith.constant 145 : index
    %1267 = memref.load %arg2[%c145] : memref<171xf32, #tpu.memory_space<smem>>
    %1268 = vector.broadcast %1267 : f32 to vector<8x128xf32>
    %1269 = arith.mulf %1268, %1178 : vector<8x128xf32>
    %1270 = vector.broadcast %1266 : f32 to vector<8x128xf32>
    %1271 = arith.addf %1270, %1269 : vector<8x128xf32>
    %c153 = arith.constant 153 : index
    %1272 = memref.load %arg2[%c153] : memref<171xf32, #tpu.memory_space<smem>>
    %1273 = vector.broadcast %1272 : f32 to vector<8x128xf32>
    %1274 = arith.mulf %1273, %1181 : vector<8x128xf32>
    %1275 = arith.addf %1271, %1274 : vector<8x128xf32>
    %cst_54 = arith.constant 0.000000e+00 : f32
    %1276 = vector.broadcast %cst_54 : f32 to vector<8x128xf32>
    %1277 = arith.maximumf %1275, %1276 : vector<8x128xf32>
    %c170 = arith.constant 170 : index
    %1278 = memref.load %arg2[%c170] : memref<171xf32, #tpu.memory_space<smem>>
    %c162 = arith.constant 162 : index
    %1279 = memref.load %arg2[%c162] : memref<171xf32, #tpu.memory_space<smem>>
    %1280 = vector.broadcast %1279 : f32 to vector<8x128xf32>
    %1281 = arith.mulf %1280, %1193 : vector<8x128xf32>
    %1282 = vector.broadcast %1278 : f32 to vector<8x128xf32>
    %1283 = arith.addf %1282, %1281 : vector<8x128xf32>
    %c163 = arith.constant 163 : index
    %1284 = memref.load %arg2[%c163] : memref<171xf32, #tpu.memory_space<smem>>
    %1285 = vector.broadcast %1284 : f32 to vector<8x128xf32>
    %1286 = arith.mulf %1285, %1205 : vector<8x128xf32>
    %1287 = arith.addf %1283, %1286 : vector<8x128xf32>
    %c164 = arith.constant 164 : index
    %1288 = memref.load %arg2[%c164] : memref<171xf32, #tpu.memory_space<smem>>
    %1289 = vector.broadcast %1288 : f32 to vector<8x128xf32>
    %1290 = arith.mulf %1289, %1217 : vector<8x128xf32>
    %1291 = arith.addf %1287, %1290 : vector<8x128xf32>
    %c165 = arith.constant 165 : index
    %1292 = memref.load %arg2[%c165] : memref<171xf32, #tpu.memory_space<smem>>
    %1293 = vector.broadcast %1292 : f32 to vector<8x128xf32>
    %1294 = arith.mulf %1293, %1229 : vector<8x128xf32>
    %1295 = arith.addf %1291, %1294 : vector<8x128xf32>
    %c166 = arith.constant 166 : index
    %1296 = memref.load %arg2[%c166] : memref<171xf32, #tpu.memory_space<smem>>
    %1297 = vector.broadcast %1296 : f32 to vector<8x128xf32>
    %1298 = arith.mulf %1297, %1241 : vector<8x128xf32>
    %1299 = arith.addf %1295, %1298 : vector<8x128xf32>
    %c167 = arith.constant 167 : index
    %1300 = memref.load %arg2[%c167] : memref<171xf32, #tpu.memory_space<smem>>
    %1301 = vector.broadcast %1300 : f32 to vector<8x128xf32>
    %1302 = arith.mulf %1301, %1253 : vector<8x128xf32>
    %1303 = arith.addf %1299, %1302 : vector<8x128xf32>
    %c168 = arith.constant 168 : index
    %1304 = memref.load %arg2[%c168] : memref<171xf32, #tpu.memory_space<smem>>
    %1305 = vector.broadcast %1304 : f32 to vector<8x128xf32>
    %1306 = arith.mulf %1305, %1265 : vector<8x128xf32>
    %1307 = arith.addf %1303, %1306 : vector<8x128xf32>
    %c169 = arith.constant 169 : index
    %1308 = memref.load %arg2[%c169] : memref<171xf32, #tpu.memory_space<smem>>
    %1309 = vector.broadcast %1308 : f32 to vector<8x128xf32>
    %1310 = arith.mulf %1309, %1277 : vector<8x128xf32>
    %1311 = arith.addf %1307, %1310 : vector<8x128xf32>
    %c0_55 = arith.constant 0 : index
    %c0_56 = arith.constant 0 : index
    %1312 = vector.load %arg3[%c0_55, %c0_56] : memref<8x128xf32, #tpu.memory_space<vmem>>, vector<8x128xf32>
    tpu.vector_store %arg3[%c0_55, %c0_56], %1311 {strides = array<i32>} : memref<8x128xf32, #tpu.memory_space<vmem>>, vector<8x128xf32>,
    return
  }
  func.func @transform_0(%arg0: i32) -> (i32, i32, i32) {
    %c0_i32 = arith.constant 0 : i32
    %c0_i32_0 = arith.constant 0 : i32
    %c0_i32_1 = arith.constant 0 : i32
    return %c0_i32, %arg0, %c0_i32_0 : i32, i32, i32
  }
  func.func @transform_1(%arg0: i32) -> i32 {
    %c0_i32 = arith.constant 0 : i32
    %c0_i32_0 = arith.constant 0 : i32
    return %c0_i32 : i32
  }
  func.func @transform_2(%arg0: i32) -> (i32, i32) {
    %c0_i32 = arith.constant 0 : i32
    %c0_i32_0 = arith.constant 0 : i32
    return %arg0, %c0_i32 : i32, i32
  }
}

</mosaic_0001>

<llo_original>
// kernel: hybrid_forward.1
$region0: #{hybrid_forward.1}
  #allocation0 [shape = 'u32[]', space=smem, size = 0x4, offset = 0x4, fixed_abs, tag = 'smem constant byte address 0x4 - core index']
  #allocation1 [shape = 'u32[144,128]{1,0:T(1,128)}', space=vmem, size = 0x12000, scoped, tag = 'internal scratch']
  %s0 = inlined_call_operand.vmem [shape: f32[4,8,128], index: 0, kind: input, shape index: {}]
  %s1 = inlined_call_operand.vmem [shape: f32[171], index: 1, kind: input, shape index: {}]
  %s2 = inlined_call_operand.vmem [shape: f32[8,128], index: 2, kind: output, shape index: {}]
  %s3 = sld [smem:[#allocation0]]
  $region22: #{hybrid_forward.1} parent=0
    _
  %s5 = ssub.s32 1, %s3
  %s6 = scalar_select 0, %s5, %s3
  $region1: #{hybrid_forward.1} parent=0
    #allocation2 [shape = 'u8[1024]{0}', space=smem, size = 0x400, scoped, tag = 'input window, operand 1, single buffered']
    #allocation3 [shape = 's32[1]{0}', space=sflag, size = 0x4, scoped, tag = 'scoped memory for hybrid_forward.1']
    %7 = vsyncpa [#allocation3], 0
    // Predicated region
    $region2: #{hybrid_forward.1} parent=1 // pred_check
      _
    $region3: #{hybrid_forward.1} parent=1 // pred_check_branch
      %9 = sbr.rel (0) target = $region5
    $region4: #{hybrid_forward.1} parent=1 // pred_region
      _
    $region5: #{hybrid_forward.1} parent=1 // pred_fallthru
      _
    // Predicated region
    $region6: #{hybrid_forward.1} parent=1 // pred_check
      _
    $region7: #{hybrid_forward.1} parent=1 // pred_check_branch
      %11 = sbr.rel (0) target = $region9
    $region8: #{hybrid_forward.1} parent=1 // pred_region
      %s13 = ssub.s32 32, 32
      %14 = vsyncadd [#allocation3], %s13
      %s16 = sshll.u32 %s1, 4
      %s17 = int_to_ptr.vmem [resolvable:$true] %s16
      %19 = dma.vmem_to_smem %s17, 32, [#allocation2], [#allocation3]
    $region9: #{hybrid_forward.1} parent=1 // pred_fallthru
      _
    // Predicated region
    $region10: #{hybrid_forward.1} parent=1 // pred_check
      _
    $region11: #{hybrid_forward.1} parent=1 // pred_check_branch
      %21 = sbr.rel (0) target = $region13
    $region12: #{hybrid_forward.1} parent=1 // pred_region
      %22 = dma.done [#allocation3], 32
    $region13: #{hybrid_forward.1} parent=1 // pred_fallthru
      _
    %23 = sfence
    %v24 = vld [vmem:[%s0] sm:$0xff]
    %s25 = scalar_lea.vmem %s0, 8
    %v26 = vld [vmem:[%s25] sm:$0xff]
    %s27 = scalar_lea.vmem %s0, 16
    %v28 = vld [vmem:[%s27] sm:$0xff]
    %s29 = scalar_lea.vmem %s0, 24
    %v30 = vld [vmem:[%s29] sm:$0xff]
    %s31 = sld [smem:[#allocation2 + $0x40]]
    %s32 = sld [smem:[#allocation2]]
    %v33 = vstv %s32
    %v34 = vmul.f32 %v33, %v24
    %v35 = vstv %s31
    %v36 = vadd.f32 %v35, %v34
    %s37 = sld [smem:[#allocation2 + $0x10]]
    %v38 = vstv %s37
    %v39 = vmul.f32 %v38, %v26
    %v40 = vadd.f32 %v36, %v39
    %s41 = sld [smem:[#allocation2 + $0x20]]
    %v42 = vstv %s41
    %v43 = vmul.f32 %v42, %v28
    %v44 = vadd.f32 %v40, %v43
    %s45 = sld [smem:[#allocation2 + $0x30]]
    %v46 = vstv %s45
    %v47 = vmul.f32 %v46, %v30
    %v48 = vadd.f32 %v44, %v47
    %v49 = vmax.f32 %v48, 0.0
    %s50 = sld [smem:[#allocation2 + $0x41]]
    %s51 = sld [smem:[#allocation2 + $0x1]]
    %v52 = vstv %s51
    %v53 = vmul.f32 %v52, %v24
    %v54 = vstv %s50
    %v55 = vadd.f32 %v54, %v53
    %s56 = sld [smem:[#allocation2 + $0x11]]
    %v57 = vstv %s56
    %v58 = vmul.f32 %v57, %v26
    %v59 = vadd.f32 %v55, %v58
    %s60 = sld [smem:[#allocation2 + $0x21]]
    %v61 = vstv %s60
    %v62 = vmul.f32 %v61, %v28
    %v63 = vadd.f32 %v59, %v62
    %s64 = sld [smem:[#allocation2 + $0x31]]
    %v65 = vstv %s64
    %v66 = vmul.f32 %v65, %v30
    %v67 = vadd.f32 %v63, %v66
    %v68 = vmax.f32 %v67, 0.0
    %s69 = sld [smem:[#allocation2 + $0x42]]
    %s70 = sld [smem:[#allocation2 + $0x2]]
    %v71 = vstv %s70
    %v72 = vmul.f32 %v71, %v24
    %v73 = vstv %s69
    %v74 = vadd.f32 %v73, %v72
    %s75 = sld [smem:[#allocation2 + $0x12]]
    %v76 = vstv %s75
    %v77 = vmul.f32 %v76, %v26
    %v78 = vadd.f32 %v74, %v77
    %s79 = sld [smem:[#allocation2 + $0x22]]
    %v80 = vstv %s79
    %v81 = vmul.f32 %v80, %v28
    %v82 = vadd.f32 %v78, %v81
    %s83 = sld [smem:[#allocation2 + $0x32]]
    %v84 = vstv %s83
    %v85 = vmul.f32 %v84, %v30
    %v86 = vadd.f32 %v82, %v85
    %v87 = vmax.f32 %v86, 0.0
    %s88 = sld [smem:[#allocation2 + $0x43]]
    %s89 = sld [smem:[#allocation2 + $0x3]]
    %v90 = vstv %s89
    %v91 = vmul.f32 %v90, %v24
    %v92 = vstv %s88
    %v93 = vadd.f32 %v92, %v91
    %s94 = sld [smem:[#allocation2 + $0x13]]
    %v95 = vstv %s94
    %v96 = vmul.f32 %v95, %v26
    %v97 = vadd.f32 %v93, %v96
    %s98 = sld [smem:[#allocation2 + $0x23]]
    %v99 = vstv %s98
    %v100 = vmul.f32 %v99, %v28
    %v101 = vadd.f32 %v97, %v100
    %s102 = sld [smem:[#allocation2 + $0x33]]
    %v103 = vstv %s102
    %v104 = vmul.f32 %v103, %v30
    %v105 = vadd.f32 %v101, %v104
    %v106 = vmax.f32 %v105, 0.0
    %s107 = sld [smem:[#allocation2 + $0x44]]
    %s108 = sld [smem:[#allocation2 + $0x4]]
    %v109 = vstv %s108
    %v110 = vmul.f32 %v109, %v24
    %v111 = vstv %s107
    %v112 = vadd.f32 %v111, %v110
    %s113 = sld [smem:[#allocation2 + $0x14]]
    %v114 = vstv %s113
    %v115 = vmul.f32 %v114, %v26
    %v116 = vadd.f32 %v112, %v115
    %s117 = sld [smem:[#allocation2 + $0x24]]
    %v118 = vstv %s117
    %v119 = vmul.f32 %v118, %v28
    %v120 = vadd.f32 %v116, %v119
    %s121 = sld [smem:[#allocation2 + $0x34]]
    %v122 = vstv %s121
    %v123 = vmul.f32 %v122, %v30
    %v124 = vadd.f32 %v120, %v123
    %v125 = vmax.f32 %v124, 0.0
    %s126 = sld [smem:[#allocation2 + $0x45]]
    %s127 = sld [smem:[#allocation2 + $0x5]]
    %v128 = vstv %s127
    %v129 = vmul.f32 %v128, %v24
    %v130 = vstv %s126
    %v131 = vadd.f32 %v130, %v129
    %s132 = sld [smem:[#allocation2 + $0x15]]
    %v133 = vstv %s132
    %v134 = vmul.f32 %v133, %v26
    %v135 = vadd.f32 %v131, %v134
    %s136 = sld [smem:[#allocation2 + $0x25]]
    %v137 = vstv %s136
    %v138 = vmul.f32 %v137, %v28
    %v139 = vadd.f32 %v135, %v138
    %s140 = sld [smem:[#allocation2 + $0x35]]
    %v141 = vstv %s140
    %v142 = vmul.f32 %v141, %v30
    %v143 = vadd.f32 %v139, %v142
    %v144 = vmax.f32 %v143, 0.0
    %s145 = sld [smem:[#allocation2 + $0x46]]
    %s146 = sld [smem:[#allocation2 + $0x6]]
    %v147 = vstv %s146
    %v148 = vmul.f32 %v147, %v24
    %v149 = vstv %s145
    %v150 = vadd.f32 %v149, %v148
    %s151 = sld [smem:[#allocation2 + $0x16]]
    %v152 = vstv %s151
    %v153 = vmul.f32 %v152, %v26
    %v154 = vadd.f32 %v150, %v153
    %s155 = sld [smem:[#allocation2 + $0x26]]
    %v156 = vstv %s155
    %v157 = vmul.f32 %v156, %v28
    %v158 = vadd.f32 %v154, %v157
    %s159 = sld [smem:[#allocation2 + $0x36]]
    %v160 = vstv %s159
    %v161 = vmul.f32 %v160, %v30
    %v162 = vadd.f32 %v158, %v161
    %v163 = vmax.f32 %v162, 0.0
    %s164 = sld [smem:[#allocation2 + $0x47]]
    %s165 = sld [smem:[#allocation2 + $0x7]]
    %v166 = vstv %s165
    %v167 = vmul.f32 %v166, %v24
    %v168 = vstv %s164
    %v169 = vadd.f32 %v168, %v167
    %s170 = sld [smem:[#allocation2 + $0x17]]
    %v171 = vstv %s170
    %v172 = vmul.f32 %v171, %v26
    %v173 = vadd.f32 %v169, %v172
    %s174 = sld [smem:[#allocation2 + $0x27]]
    %v175 = vstv %s174
    %v176 = vmul.f32 %v175, %v28
    %v177 = vadd.f32 %v173, %v176
    %s178 = sld [smem:[#allocation2 + $0x37]]
    %v179 = vstv %s178
    %v180 = vmul.f32 %v179, %v30
    %v181 = vadd.f32 %v177, %v180
    %v182 = vmax.f32 %v181, 0.0
    %s183 = sld [smem:[#allocation2 + $0x48]]
    %s184 = sld [smem:[#allocation2 + $0x8]]
    %v185 = vstv %s184
    %v186 = vmul.f32 %v185, %v24
    %v187 = vstv %s183
    %v188 = vadd.f32 %v187, %v186
    %s189 = sld [smem:[#allocation2 + $0x18]]
    %v190 = vstv %s189
    %v191 = vmul.f32 %v190, %v26
    %v192 = vadd.f32 %v188, %v191
    %s193 = sld [smem:[#allocation2 + $0x28]]
    %v194 = vstv %s193
    %v195 = vmul.f32 %v194, %v28
    %v196 = vadd.f32 %v192, %v195
    %s197 = sld [smem:[#allocation2 + $0x38]]
    %v198 = vstv %s197
    %v199 = vmul.f32 %v198, %v30
    %v200 = vadd.f32 %v196, %v199
    %v201 = vmax.f32 %v200, 0.0
    %s202 = sld [smem:[#allocation2 + $0x49]]
    %s203 = sld [smem:[#allocation2 + $0x9]]
    %v204 = vstv %s203
    %v205 = vmul.f32 %v204, %v24
    %v206 = vstv %s202
    %v207 = vadd.f32 %v206, %v205
    %s208 = sld [smem:[#allocation2 + $0x19]]
    %v209 = vstv %s208
    %v210 = vmul.f32 %v209, %v26
    %v211 = vadd.f32 %v207, %v210
    %s212 = sld [smem:[#allocation2 + $0x29]]
    %v213 = vstv %s212
    %v214 = vmul.f32 %v213, %v28
    %v215 = vadd.f32 %v211, %v214
    %s216 = sld [smem:[#allocation2 + $0x39]]
    %v217 = vstv %s216
    %v218 = vmul.f32 %v217, %v30
    %v219 = vadd.f32 %v215, %v218
    %v220 = vmax.f32 %v219, 0.0
    %s221 = sld [smem:[#allocation2 + $0x4a]]
    %s222 = sld [smem:[#allocation2 + $0xa]]
    %v223 = vstv %s222
    %v224 = vmul.f32 %v223, %v24
    %v225 = vstv %s221
    %v226 = vadd.f32 %v225, %v224
    %s227 = sld [smem:[#allocation2 + $0x1a]]
    %v228 = vstv %s227
    %v229 = vmul.f32 %v228, %v26
    %v230 = vadd.f32 %v226, %v229
    %s231 = sld [smem:[#allocation2 + $0x2a]]
    %v232 = vstv %s231
    %v233 = vmul.f32 %v232, %v28
    %v234 = vadd.f32 %v230, %v233
    %s235 = sld [smem:[#allocation2 + $0x3a]]
    %v236 = vstv %s235
    %v237 = vmul.f32 %v236, %v30
    %v238 = vadd.f32 %v234, %v237
    %v239 = vmax.f32 %v238, 0.0
    %s240 = sld [smem:[#allocation2 + $0x4b]]
    %s241 = sld [smem:[#allocation2 + $0xb]]
    %v242 = vstv %s241
    %v243 = vmul.f32 %v242, %v24
    %v244 = vstv %s240
    %v245 = vadd.f32 %v244, %v243
    %s246 = sld [smem:[#allocation2 + $0x1b]]
    %v247 = vstv %s246
    %v248 = vmul.f32 %v247, %v26
    %v249 = vadd.f32 %v245, %v248
    %s250 = sld [smem:[#allocation2 + $0x2b]]
    %v251 = vstv %s250
    %v252 = vmul.f32 %v251, %v28
    %v253 = vadd.f32 %v249, %v252
    %s254 = sld [smem:[#allocation2 + $0x3b]]
    %v255 = vstv %s254
    %v256 = vmul.f32 %v255, %v30
    %v257 = vadd.f32 %v253, %v256
    %v258 = vmax.f32 %v257, 0.0
    %s259 = sld [smem:[#allocation2 + $0x4c]]
    %s260 = sld [smem:[#allocation2 + $0xc]]
    %v261 = vstv %s260
    %v262 = vmul.f32 %v261, %v24
    %v263 = vstv %s259
    %v264 = vadd.f32 %v263, %v262
    %s265 = sld [smem:[#allocation2 + $0x1c]]
    %v266 = vstv %s265
    %v267 = vmul.f32 %v266, %v26
    %v268 = vadd.f32 %v264, %v267
    %s269 = sld [smem:[#allocation2 + $0x2c]]
    %v270 = vstv %s269
    %v271 = vmul.f32 %v270, %v28
    %v272 = vadd.f32 %v268, %v271
    %s273 = sld [smem:[#allocation2 + $0x3c]]
    %v274 = vstv %s273
    %v275 = vmul.f32 %v274, %v30
    %v276 = vadd.f32 %v272, %v275
    %v277 = vmax.f32 %v276, 0.0
    %s278 = sld [smem:[#allocation2 + $0x4d]]
    %s279 = sld [smem:[#allocation2 + $0xd]]
    %v280 = vstv %s279
    %v281 = vmul.f32 %v280, %v24
    %v282 = vstv %s278
    %v283 = vadd.f32 %v282, %v281
    %s284 = sld [smem:[#allocation2 + $0x1d]]
    %v285 = vstv %s284
    %v286 = vmul.f32 %v285, %v26
    %v287 = vadd.f32 %v283, %v286
    %s288 = sld [smem:[#allocation2 + $0x2d]]
    %v289 = vstv %s288
    %v290 = vmul.f32 %v289, %v28
    %v291 = vadd.f32 %v287, %v290
    %s292 = sld [smem:[#allocation2 + $0x3d]]
    %v293 = vstv %s292
    %v294 = vmul.f32 %v293, %v30
    %v295 = vadd.f32 %v291, %v294
    %v296 = vmax.f32 %v295, 0.0
    %s297 = sld [smem:[#allocation2 + $0x4e]]
    %s298 = sld [smem:[#allocation2 + $0xe]]
    %v299 = vstv %s298
    %v300 = vmul.f32 %v299, %v24
    %v301 = vstv %s297
    %v302 = vadd.f32 %v301, %v300
    %s303 = sld [smem:[#allocation2 + $0x1e]]
    %v304 = vstv %s303
    %v305 = vmul.f32 %v304, %v26
    %v306 = vadd.f32 %v302, %v305
    %s307 = sld [smem:[#allocation2 + $0x2e]]
    %v308 = vstv %s307
    %v309 = vmul.f32 %v308, %v28
    %v310 = vadd.f32 %v306, %v309
    %s311 = sld [smem:[#allocation2 + $0x3e]]
    %v312 = vstv %s311
    %v313 = vmul.f32 %v312, %v30
    %v314 = vadd.f32 %v310, %v313
    %v315 = vmax.f32 %v314, 0.0
    %s316 = sld [smem:[#allocation2 + $0x4f]]
    %s317 = sld [smem:[#allocation2 + $0xf]]
    %v318 = vstv %s317
    %v319 = vmul.f32 %v318, %v24
    %v320 = vstv %s316
    %v321 = vadd.f32 %v320, %v319
    %s322 = sld [smem:[#allocation2 + $0x1f]]
    %v323 = vstv %s322
    %v324 = vmul.f32 %v323, %v26
    %v325 = vadd.f32 %v321, %v324
    %s326 = sld [smem:[#allocation2 + $0x2f]]
    %v327 = vstv %s326
    %v328 = vmul.f32 %v327, %v28
    %v329 = vadd.f32 %v325, %v328
    %s330 = sld [smem:[#allocation2 + $0x3f]]
    %v331 = vstv %s330
    %v332 = vmul.f32 %v331, %v30
    %v333 = vadd.f32 %v329, %v332
    %v334 = vmax.f32 %v333, 0.0
    %s335 = sld [smem:[#allocation2 + $0x70]]
    %s336 = sld [smem:[#allocation2 + $0x50]]
    %v337 = vstv %s336
    %v338 = vmul.f32 %v337, %v49
    %v339 = vstv %s335
    %v340 = vadd.f32 %v339, %v338
    %s341 = sld [smem:[#allocation2 + $0x52]]
    %v342 = vstv %s341
    %v343 = vmul.f32 %v342, %v68
    %v344 = vadd.f32 %v340, %v343
    %s345 = sld [smem:[#allocation2 + $0x54]]
    %v346 = vstv %s345
    %v347 = vmul.f32 %v346, %v87
    %v348 = vadd.f32 %v344, %v347
    %s349 = sld [smem:[#allocation2 + $0x56]]
    %v350 = vstv %s349
    %v351 = vmul.f32 %v350, %v106
    %v352 = vadd.f32 %v348, %v351
    %s353 = sld [smem:[#allocation2 + $0x58]]
    %v354 = vstv %s353
    %v355 = vmul.f32 %v354, %v125
    %v356 = vadd.f32 %v352, %v355
    %s357 = sld [smem:[#allocation2 + $0x5a]]
    %v358 = vstv %s357
    %v359 = vmul.f32 %v358, %v144
    %v360 = vadd.f32 %v356, %v359
    %s361 = sld [smem:[#allocation2 + $0x5c]]
    %v362 = vstv %s361
    %v363 = vmul.f32 %v362, %v163
    %v364 = vadd.f32 %v360, %v363
    %s365 = sld [smem:[#allocation2 + $0x5e]]
    %v366 = vstv %s365
    %v367 = vmul.f32 %v366, %v182
    %v368 = vadd.f32 %v364, %v367
    %s369 = sld [smem:[#allocation2 + $0x60]]
    %v370 = vstv %s369
    %v371 = vmul.f32 %v370, %v201
    %v372 = vadd.f32 %v368, %v371
    %s373 = sld [smem:[#allocation2 + $0x62]]
    %v374 = vstv %s373
    %v375 = vmul.f32 %v374, %v220
    %v376 = vadd.f32 %v372, %v375
    %s377 = sld [smem:[#allocation2 + $0x64]]
    %v378 = vstv %s377
    %v379 = vmul.f32 %v378, %v239
    %v380 = vadd.f32 %v376, %v379
    %s381 = sld [smem:[#allocation2 + $0x66]]
    %v382 = vstv %s381
    %v383 = vmul.f32 %v382, %v258
    %v384 = vadd.f32 %v380, %v383
    %s385 = sld [smem:[#allocation2 + $0x68]]
    %v386 = vstv %s385
    %v387 = vmul.f32 %v386, %v277
    %v388 = vadd.f32 %v384, %v387
    %s389 = sld [smem:[#allocation2 + $0x6a]]
    %v390 = vstv %s389
    %v391 = vmul.f32 %v390, %v296
    %v392 = vadd.f32 %v388, %v391
    %s393 = sld [smem:[#allocation2 + $0x6c]]
    %v394 = vstv %s393
    %v395 = vmul.f32 %v394, %v315
    %v396 = vadd.f32 %v392, %v395
    %s397 = sld [smem:[#allocation2 + $0x6e]]
    %v398 = vstv %s397
    %v399 = vmul.f32 %v398, %v334
    %v400 = vadd.f32 %v396, %v399
    %v401 = vtanh.pop %v400
    %s402 = sld [smem:[#allocation2 + $0x71]]
    %s403 = sld [smem:[#allocation2 + $0x51]]
    %v404 = vstv %s403
    %v405 = vmul.f32 %v404, %v49
    %v406 = vstv %s402
    %v407 = vadd.f32 %v406, %v405
    %s408 = sld [smem:[#allocation2 + $0x53]]
    %v409 = vstv %s408
    %v410 = vmul.f32 %v409, %v68
    %v411 = vadd.f32 %v407, %v410
    %s412 = sld [smem:[#allocation2 + $0x55]]
    %v413 = vstv %s412
    %v414 = vmul.f32 %v413, %v87
    %v415 = vadd.f32 %v411, %v414
    %s416 = sld [smem:[#allocation2 + $0x57]]
    %v417 = vstv %s416
    %v418 = vmul.f32 %v417, %v106
    %v419 = vadd.f32 %v415, %v418
    %s420 = sld [smem:[#allocation2 + $0x59]]
    %v421 = vstv %s420
    %v422 = vmul.f32 %v421, %v125
    %v423 = vadd.f32 %v419, %v422
    %s424 = sld [smem:[#allocation2 + $0x5b]]
    %v425 = vstv %s424
    %v426 = vmul.f32 %v425, %v144
    %v427 = vadd.f32 %v423, %v426
    %s428 = sld [smem:[#allocation2 + $0x5d]]
    %v429 = vstv %s428
    %v430 = vmul.f32 %v429, %v163
    %v431 = vadd.f32 %v427, %v430
    %s432 = sld [smem:[#allocation2 + $0x5f]]
    %v433 = vstv %s432
    %v434 = vmul.f32 %v433, %v182
    %v435 = vadd.f32 %v431, %v434
    %s436 = sld [smem:[#allocation2 + $0x61]]
    %v437 = vstv %s436
    %v438 = vmul.f32 %v437, %v201
    %v439 = vadd.f32 %v435, %v438
    %s440 = sld [smem:[#allocation2 + $0x63]]
    %v441 = vstv %s440
    %v442 = vmul.f32 %v441, %v220
    %v443 = vadd.f32 %v439, %v442
    %s444 = sld [smem:[#allocation2 + $0x65]]
    %v445 = vstv %s444
    %v446 = vmul.f32 %v445, %v239
    %v447 = vadd.f32 %v443, %v446
    %s448 = sld [smem:[#allocation2 + $0x67]]
    %v449 = vstv %s448
    %v450 = vmul.f32 %v449, %v258
    %v451 = vadd.f32 %v447, %v450
    %s452 = sld [smem:[#allocation2 + $0x69]]
    %v453 = vstv %s452
    %v454 = vmul.f32 %v453, %v277
    %v455 = vadd.f32 %v451, %v454
    %s456 = sld [smem:[#allocation2 + $0x6b]]
    %v457 = vstv %s456
    %v458 = vmul.f32 %v457, %v296
    %v459 = vadd.f32 %v455, %v458
    %s460 = sld [smem:[#allocation2 + $0x6d]]
    %v461 = vstv %s460
    %v462 = vmul.f32 %v461, %v315
    %v463 = vadd.f32 %v459, %v462
    %s464 = sld [smem:[#allocation2 + $0x6f]]
    %v465 = vstv %s464
    %v466 = vmul.f32 %v465, %v334
    %v467 = vadd.f32 %v463, %v466
    %v468 = vtanh.pop %v467
    %v469 = vmul.f32 %v401, 0.5
    %v470 = vand.u32 2147483647, %v469
    %vm471 = vcmp.le.f32.partialorder %v470, 0.7853982
    %vm472 = vcmp.lt.s32.totalorder %v469, 0
    %v473 = vand.u32 %v469, 2139095040
    %v474 = vshrl.u32 %v473, 23
    %v475 = vsub.s32 %v474, 127
    %v476 = vand.u32 2147483647, %v469
    %v477 = vand.u32 %v476, 8388607
    %v478 = vor.u32 %v477, 8388608
    %v479 = vsub.s32 0, %v478
    %v480 = vadd.s32 %v475, 1
    %vm481 = vcmp.gt.s32.totalorder %v480, 0
    %v482 = vsel %vm481, %v480, 0
    %v483 = vshrl.u32 %v482, 5
    %v484 = vand.u32 %v482, 31
    %v485 = vsub.s32 32, %v484
    %v486 = vshrl.u32 683565275, %v485
    %v487 = vshll.u32 683565275, %v484
    %v488 = vshrl.u32 2475754826, %v485
    %v489 = vor.u32 %v487, %v488
    %v490 = vshll.u32 2475754826, %v484
    %v491 = vshrl.u32 2131351028, %v485
    %v492 = vor.u32 %v490, %v491
    %v493 = vshll.u32 2131351028, %v484
    %v494 = vshrl.u32 2102212464, %v485
    %v495 = vor.u32 %v493, %v494
    %v496 = vshll.u32 2102212464, %v484
    %v497 = vshrl.u32 920167782, %v485
    %v498 = vor.u32 %v496, %v497
    %v499 = vshll.u32 920167782, %v484
    %v500 = vshrl.u32 1326507024, %v485
    %v501 = vor.u32 %v499, %v500
    %vm502 = vcmp.lt.s32.totalorder %v483, 1
    %vm503 = vcmp.lt.s32.totalorder %v483, 2
    %vm504 = vcmp.lt.s32.totalorder %v483, 3
    %vm505 = vcmp.lt.s32.totalorder %v483, 4
    %v506 = vsel %vm502, %v486, %v489
    %v507 = vsel %vm505, %v495, 2102212464
    %v508 = vsel %vm504, %v492, %v507
    %v509 = vsel %vm503, %v506, %v508
    %v510 = vsel %vm502, %v489, %v492
    %v511 = vsel %vm505, %v498, 920167782
    %v512 = vsel %vm504, %v495, %v511
    %v513 = vsel %vm503, %v510, %v512
    %v514 = vsel %vm502, %v492, %v495
    %v515 = vsel %vm505, %v501, 1326507024
    %v516 = vsel %vm504, %v498, %v515
    %v517 = vsel %vm503, %v514, %v516
    %v518 = vshll.u32 %v478, 8
    %v519 = vmul.u32.u64.compose %v518, %v517
    %v520 = vextract.low.u32 %v519
    %v521 = vextract.high.u32 %v519
    %v522 = vmul.u32.u64.compose %v518, %v513
    %v523 = vextract.low.u32 %v522
    %v524 = vextract.high.u32 %v522
    %v525 = vmul.u32 %v518, %v509
    %v526 = vadd.s32 %v521, %v523
    %vm527 = vc.u32 %v521, %v523
    %v528 = vadd.s32 %v524, 1
    %v529 = vsel %vm527, %v528, %v524
    %v530 = vadd.s32 %v525, %v529
    %v531 = vadd.s32 %v530, 536870912
    %v532 = vshrl.u32 %v531, 30
    %v533 = vshll.u32 %v532, 30
    %v534 = vsub.s32 %v530, %v533
    %vm535 = vcmp.lt.s32.totalorder %v534, 0
    %v536 = vsub.s32 0, %v534
    %v537 = vsel %vm535, %v536, %v534
    %v538 = vclz %v537
    %v539 = vsub.s32 %v538, 2
    %vm540 = vcmp.gt.s32.totalorder 0, %v539
    %v541 = vsel %vm540, 0, %v539
    %v542 = vsub.s32 32, %v541
    %v543 = vshll.u32 %v534, %v541
    %v544 = vshrl.u32 %v526, %v542
    %v545 = vor.u32 %v543, %v544
    %v546 = vsub.s32 4294967266, %v541
    %v547 = vadd.s32 %v546, 127
    %v548 = vshll.u32 %v547, 23
    %v549 = vor.u32 4788187, %v548
    %v550 = vand.u32 2147483647, %v549
    %v552 = vcvt.s32.f32 %v545
    %v553 = vmul.f32 %v552, %v550
    %v554 = vxor.u32 %v553, 2147483648
    %v555 = vsel %vm472, %v554, %v553
    %v556 = vsub.s32 4, %v532
    %v557 = vsel %vm472, %v556, %v532
    %v558 = vsel %vm471, %v469, %v555
    %v559 = vsel %vm471, 0, %v557
    %v560 = vcosq.f32.pop %v558
    %v561 = vsinq.f32.pop %v558
    %vm562 = vweird.f32 %v469
    %v563 = vand.u32 %v559, 3
    %vm564 = vcmp.lt.s32.totalorder %v563, 2
    %vm565 = vcmp.eq.s32.totalorder %v563, 0
    %v566 = vxor.u32 %v561, 2147483648
    %v567 = vsel %vm565, %v560, %v566
    %vm568 = vcmp.eq.s32.totalorder %v563, 2
    %v569 = vxor.u32 %v560, 2147483648
    %v570 = vsel %vm568, %v569, %v561
    %v571 = vsel %vm564, %v567, %v570
    %v572 = vsel %vm562, nan, %v571
    %v573 = vand.u32 2147483647, %v469
    %vm574 = vcmp.le.f32.partialorder %v573, 0.7853982
    %vm575 = vcmp.lt.s32.totalorder %v469, 0
    %v576 = vand.u32 %v469, 2139095040
    %v577 = vshrl.u32 %v576, 23
    %v578 = vsub.s32 %v577, 127
    %v579 = vand.u32 2147483647, %v469
    %v580 = vand.u32 %v579, 8388607
    %v581 = vor.u32 %v580, 8388608
    %v582 = vsub.s32 0, %v581
    %v583 = vadd.s32 %v578, 1
    %vm584 = vcmp.gt.s32.totalorder %v583, 0
    %v585 = vsel %vm584, %v583, 0
    %v586 = vshrl.u32 %v585, 5
    %v587 = vand.u32 %v585, 31
    %v588 = vsub.s32 32, %v587
    %v589 = vshrl.u32 683565275, %v588
    %v590 = vshll.u32 683565275, %v587
    %v591 = vshrl.u32 2475754826, %v588
    %v592 = vor.u32 %v590, %v591
    %v593 = vshll.u32 2475754826, %v587
    %v594 = vshrl.u32 2131351028, %v588
    %v595 = vor.u32 %v593, %v594
    %v596 = vshll.u32 2131351028, %v587
    %v597 = vshrl.u32 2102212464, %v588
    %v598 = vor.u32 %v596, %v597
    %v599 = vshll.u32 2102212464, %v587
    %v600 = vshrl.u32 920167782, %v588
    %v601 = vor.u32 %v599, %v600
    %v602 = vshll.u32 920167782, %v587
    %v603 = vshrl.u32 1326507024, %v588
    %v604 = vor.u32 %v602, %v603
    %vm605 = vcmp.lt.s32.totalorder %v586, 1
    %vm606 = vcmp.lt.s32.totalorder %v586, 2
    %vm607 = vcmp.lt.s32.totalorder %v586, 3
    %vm608 = vcmp.lt.s32.totalorder %v586, 4
    %v609 = vsel %vm605, %v589, %v592
    %v610 = vsel %vm608, %v598, 2102212464
    %v611 = vsel %vm607, %v595, %v610
    %v612 = vsel %vm606, %v609, %v611
    %v613 = vsel %vm605, %v592, %v595
    %v614 = vsel %vm608, %v601, 920167782
    %v615 = vsel %vm607, %v598, %v614
    %v616 = vsel %vm606, %v613, %v615
    %v617 = vsel %vm605, %v595, %v598
    %v618 = vsel %vm608, %v604, 1326507024
    %v619 = vsel %vm607, %v601, %v618
    %v620 = vsel %vm606, %v617, %v619
    %v621 = vshll.u32 %v581, 8
    %v622 = vmul.u32.u64.compose %v621, %v620
    %v623 = vextract.low.u32 %v622
    %v624 = vextract.high.u32 %v622
    %v625 = vmul.u32.u64.compose %v621, %v616
    %v626 = vextract.low.u32 %v625
    %v627 = vextract.high.u32 %v625
    %v628 = vmul.u32 %v621, %v612
    %v629 = vadd.s32 %v624, %v626
    %vm630 = vc.u32 %v624, %v626
    %v631 = vadd.s32 %v627, 1
    %v632 = vsel %vm630, %v631, %v627
    %v633 = vadd.s32 %v628, %v632
    %v634 = vadd.s32 %v633, 536870912
    %v635 = vshrl.u32 %v634, 30
    %v636 = vshll.u32 %v635, 30
    %v637 = vsub.s32 %v633, %v636
    %vm638 = vcmp.lt.s32.totalorder %v637, 0
    %v639 = vsub.s32 0, %v637
    %v640 = vsel %vm638, %v639, %v637
    %v641 = vclz %v640
    %v642 = vsub.s32 %v641, 2
    %vm643 = vcmp.gt.s32.totalorder 0, %v642
    %v644 = vsel %vm643, 0, %v642
    %v645 = vsub.s32 32, %v644
    %v646 = vshll.u32 %v637, %v644
    %v647 = vshrl.u32 %v629, %v645
    %v648 = vor.u32 %v646, %v647
    %v649 = vsub.s32 4294967266, %v644
    %v650 = vadd.s32 %v649, 127
    %v651 = vshll.u32 %v650, 23
    %v652 = vor.u32 4788187, %v651
    %v653 = vand.u32 2147483647, %v652
    %v655 = vcvt.s32.f32 %v648
    %v656 = vmul.f32 %v655, %v653
    %v657 = vxor.u32 %v656, 2147483648
    %v658 = vsel %vm575, %v657, %v656
    %v659 = vsub.s32 4, %v635
    %v660 = vsel %vm575, %v659, %v635
    %v661 = vsel %vm574, %v469, %v658
    %v662 = vsel %vm574, 0, %v660
    %v663 = vcosq.f32.pop %v661
    %v664 = vsinq.f32.pop %v661
    %vm665 = vweird.f32 %v469
    %v666 = vadd.s32 %v662, 3
    %v667 = vand.u32 %v666, 3
    %vm668 = vcmp.lt.s32.totalorder %v667, 2
    %vm669 = vcmp.eq.s32.totalorder %v667, 0
    %v670 = vxor.u32 %v664, 2147483648
    %v671 = vsel %vm669, %v663, %v670
    %vm672 = vcmp.eq.s32.totalorder %v667, 2
    %v673 = vxor.u32 %v663, 2147483648
    %v674 = vsel %vm672, %v673, %v664
    %v675 = vsel %vm668, %v671, %v674
    %v676 = vsel %vm665, nan, %v675
    %v677 = vmul.f32 %v572, 2.0
    %v678 = vmul.f32 %v677, %v572
    %v679 = vsub.f32 %v678, 1.0
    %v680 = vmul.f32 %v676, 2.0
    %v681 = vmul.f32 %v680, %v572
    %v682 = vmul.f32 %v572, 4.0
    %v683 = vmul.f32 %v682, %v572
    %v684 = vsub.f32 %v683, 3.0
    %v685 = vmul.f32 %v684, %v572
    %v686 = vmul.f32 %v676, 4.0
    %v687 = vmul.f32 %v686, %v676
    %v688 = vsub.f32 3.0, %v687
    %v689 = vmul.f32 %v688, %v676
    %v690 = vmul.f32 %v468, 0.5
    %v691 = vand.u32 2147483647, %v690
    %vm692 = vcmp.le.f32.partialorder %v691, 0.7853982
    %vm693 = vcmp.lt.s32.totalorder %v690, 0
    %v694 = vand.u32 %v690, 2139095040
    %v695 = vshrl.u32 %v694, 23
    %v696 = vsub.s32 %v695, 127
    %v697 = vand.u32 2147483647, %v690
    %v698 = vand.u32 %v697, 8388607
    %v699 = vor.u32 %v698, 8388608
    %v700 = vsub.s32 0, %v699
    %v701 = vadd.s32 %v696, 1
    %vm702 = vcmp.gt.s32.totalorder %v701, 0
    %v703 = vsel %vm702, %v701, 0
    %v704 = vshrl.u32 %v703, 5
    %v705 = vand.u32 %v703, 31
    %v706 = vsub.s32 32, %v705
    %v707 = vshrl.u32 683565275, %v706
    %v708 = vshll.u32 683565275, %v705
    %v709 = vshrl.u32 2475754826, %v706
    %v710 = vor.u32 %v708, %v709
    %v711 = vshll.u32 2475754826, %v705
    %v712 = vshrl.u32 2131351028, %v706
    %v713 = vor.u32 %v711, %v712
    %v714 = vshll.u32 2131351028, %v705
    %v715 = vshrl.u32 2102212464, %v706
    %v716 = vor.u32 %v714, %v715
    %v717 = vshll.u32 2102212464, %v705
    %v718 = vshrl.u32 920167782, %v706
    %v719 = vor.u32 %v717, %v718
    %v720 = vshll.u32 920167782, %v705
    %v721 = vshrl.u32 1326507024, %v706
    %v722 = vor.u32 %v720, %v721
    %vm723 = vcmp.lt.s32.totalorder %v704, 1
    %vm724 = vcmp.lt.s32.totalorder %v704, 2
    %vm725 = vcmp.lt.s32.totalorder %v704, 3
    %vm726 = vcmp.lt.s32.totalorder %v704, 4
    %v727 = vsel %vm723, %v707, %v710
    %v728 = vsel %vm726, %v716, 2102212464
    %v729 = vsel %vm725, %v713, %v728
    %v730 = vsel %vm724, %v727, %v729
    %v731 = vsel %vm723, %v710, %v713
    %v732 = vsel %vm726, %v719, 920167782
    %v733 = vsel %vm725, %v716, %v732
    %v734 = vsel %vm724, %v731, %v733
    %v735 = vsel %vm723, %v713, %v716
    %v736 = vsel %vm726, %v722, 1326507024
    %v737 = vsel %vm725, %v719, %v736
    %v738 = vsel %vm724, %v735, %v737
    %v739 = vshll.u32 %v699, 8
    %v740 = vmul.u32.u64.compose %v739, %v738
    %v741 = vextract.low.u32 %v740
    %v742 = vextract.high.u32 %v740
    %v743 = vmul.u32.u64.compose %v739, %v734
    %v744 = vextract.low.u32 %v743
    %v745 = vextract.high.u32 %v743
    %v746 = vmul.u32 %v739, %v730
    %v747 = vadd.s32 %v742, %v744
    %vm748 = vc.u32 %v742, %v744
    %v749 = vadd.s32 %v745, 1
    %v750 = vsel %vm748, %v749, %v745
    %v751 = vadd.s32 %v746, %v750
    %v752 = vadd.s32 %v751, 536870912
    %v753 = vshrl.u32 %v752, 30
    %v754 = vshll.u32 %v753, 30
    %v755 = vsub.s32 %v751, %v754
    %vm756 = vcmp.lt.s32.totalorder %v755, 0
    %v757 = vsub.s32 0, %v755
    %v758 = vsel %vm756, %v757, %v755
    %v759 = vclz %v758
    %v760 = vsub.s32 %v759, 2
    %vm761 = vcmp.gt.s32.totalorder 0, %v760
    %v762 = vsel %vm761, 0, %v760
    %v763 = vsub.s32 32, %v762
    %v764 = vshll.u32 %v755, %v762
    %v765 = vshrl.u32 %v747, %v763
    %v766 = vor.u32 %v764, %v765
    %v767 = vsub.s32 4294967266, %v762
    %v768 = vadd.s32 %v767, 127
    %v769 = vshll.u32 %v768, 23
    %v770 = vor.u32 4788187, %v769
    %v771 = vand.u32 2147483647, %v770
    %v773 = vcvt.s32.f32 %v766
    %v774 = vmul.f32 %v773, %v771
    %v775 = vxor.u32 %v774, 2147483648
    %v776 = vsel %vm693, %v775, %v774
    %v777 = vsub.s32 4, %v753
    %v778 = vsel %vm693, %v777, %v753
    %v779 = vsel %vm692, %v690, %v776
    %v780 = vsel %vm692, 0, %v778
    %v781 = vcosq.f32.pop %v779
    %v782 = vsinq.f32.pop %v779
    %vm783 = vweird.f32 %v690
    %v784 = vand.u32 %v780, 3
    %vm785 = vcmp.lt.s32.totalorder %v784, 2
    %vm786 = vcmp.eq.s32.totalorder %v784, 0
    %v787 = vxor.u32 %v782, 2147483648
    %v788 = vsel %vm786, %v781, %v787
    %vm789 = vcmp.eq.s32.totalorder %v784, 2
    %v790 = vxor.u32 %v781, 2147483648
    %v791 = vsel %vm789, %v790, %v782
    %v792 = vsel %vm785, %v788, %v791
    %v793 = vsel %vm783, nan, %v792
    %v794 = vand.u32 2147483647, %v690
    %vm795 = vcmp.le.f32.partialorder %v794, 0.7853982
    %vm796 = vcmp.lt.s32.totalorder %v690, 0
    %v797 = vand.u32 %v690, 2139095040
    %v798 = vshrl.u32 %v797, 23
    %v799 = vsub.s32 %v798, 127
    %v800 = vand.u32 2147483647, %v690
    %v801 = vand.u32 %v800, 8388607
    %v802 = vor.u32 %v801, 8388608
    %v803 = vsub.s32 0, %v802
    %v804 = vadd.s32 %v799, 1
    %vm805 = vcmp.gt.s32.totalorder %v804, 0
    %v806 = vsel %vm805, %v804, 0
    %v807 = vshrl.u32 %v806, 5
    %v808 = vand.u32 %v806, 31
    %v809 = vsub.s32 32, %v808
    %v810 = vshrl.u32 683565275, %v809
    %v811 = vshll.u32 683565275, %v808
    %v812 = vshrl.u32 2475754826, %v809
    %v813 = vor.u32 %v811, %v812
    %v814 = vshll.u32 2475754826, %v808
    %v815 = vshrl.u32 2131351028, %v809
    %v816 = vor.u32 %v814, %v815
    %v817 = vshll.u32 2131351028, %v808
    %v818 = vshrl.u32 2102212464, %v809
    %v819 = vor.u32 %v817, %v818
    %v820 = vshll.u32 2102212464, %v808
    %v821 = vshrl.u32 920167782, %v809
    %v822 = vor.u32 %v820, %v821
    %v823 = vshll.u32 920167782, %v808
    %v824 = vshrl.u32 1326507024, %v809
    %v825 = vor.u32 %v823, %v824
    %vm826 = vcmp.lt.s32.totalorder %v807, 1
    %vm827 = vcmp.lt.s32.totalorder %v807, 2
    %vm828 = vcmp.lt.s32.totalorder %v807, 3
    %vm829 = vcmp.lt.s32.totalorder %v807, 4
    %v830 = vsel %vm826, %v810, %v813
    %v831 = vsel %vm829, %v819, 2102212464
    %v832 = vsel %vm828, %v816, %v831
    %v833 = vsel %vm827, %v830, %v832
    %v834 = vsel %vm826, %v813, %v816
    %v835 = vsel %vm829, %v822, 920167782
    %v836 = vsel %vm828, %v819, %v835
    %v837 = vsel %vm827, %v834, %v836
    %v838 = vsel %vm826, %v816, %v819
    %v839 = vsel %vm829, %v825, 1326507024
    %v840 = vsel %vm828, %v822, %v839
    %v841 = vsel %vm827, %v838, %v840
    %v842 = vshll.u32 %v802, 8
    %v843 = vmul.u32.u64.compose %v842, %v841
    %v844 = vextract.low.u32 %v843
    %v845 = vextract.high.u32 %v843
    %v846 = vmul.u32.u64.compose %v842, %v837
    %v847 = vextract.low.u32 %v846
    %v848 = vextract.high.u32 %v846
    %v849 = vmul.u32 %v842, %v833
    %v850 = vadd.s32 %v845, %v847
    %vm851 = vc.u32 %v845, %v847
    %v852 = vadd.s32 %v848, 1
    %v853 = vsel %vm851, %v852, %v848
    %v854 = vadd.s32 %v849, %v853
    %v855 = vadd.s32 %v854, 536870912
    %v856 = vshrl.u32 %v855, 30
    %v857 = vshll.u32 %v856, 30
    %v858 = vsub.s32 %v854, %v857
    %vm859 = vcmp.lt.s32.totalorder %v858, 0
    %v860 = vsub.s32 0, %v858
    %v861 = vsel %vm859, %v860, %v858
    %v862 = vclz %v861
    %v863 = vsub.s32 %v862, 2
    %vm864 = vcmp.gt.s32.totalorder 0, %v863
    %v865 = vsel %vm864, 0, %v863
    %v866 = vsub.s32 32, %v865
    %v867 = vshll.u32 %v858, %v865
    %v868 = vshrl.u32 %v850, %v866
    %v869 = vor.u32 %v867, %v868
    %v870 = vsub.s32 4294967266, %v865
    %v871 = vadd.s32 %v870, 127
    %v872 = vshll.u32 %v871, 23
    %v873 = vor.u32 4788187, %v872
    %v874 = vand.u32 2147483647, %v873
    %v876 = vcvt.s32.f32 %v869
    %v877 = vmul.f32 %v876, %v874
    %v878 = vxor.u32 %v877, 2147483648
    %v879 = vsel %vm796, %v878, %v877
    %v880 = vsub.s32 4, %v856
    %v881 = vsel %vm796, %v880, %v856
    %v882 = vsel %vm795, %v690, %v879
    %v883 = vsel %vm795, 0, %v881
    %v884 = vcosq.f32.pop %v882
    %v885 = vsinq.f32.pop %v882
    %vm886 = vweird.f32 %v690
    %v887 = vadd.s32 %v883, 3
    %v888 = vand.u32 %v887, 3
    %vm889 = vcmp.lt.s32.totalorder %v888, 2
    %vm890 = vcmp.eq.s32.totalorder %v888, 0
    %v891 = vxor.u32 %v885, 2147483648
    %v892 = vsel %vm890, %v884, %v891
    %vm893 = vcmp.eq.s32.totalorder %v888, 2
    %v894 = vxor.u32 %v884, 2147483648
    %v895 = vsel %vm893, %v894, %v885
    %v896 = vsel %vm889, %v892, %v895
    %v897 = vsel %vm886, nan, %v896
    %v898 = vmul.f32 %v793, 2.0
    %v899 = vmul.f32 %v898, %v793
    %v900 = vsub.f32 %v899, 1.0
    %v901 = vmul.f32 %v897, 2.0
    %v902 = vmul.f32 %v901, %v793
    %v903 = vmul.f32 %v793, 4.0
    %v904 = vmul.f32 %v903, %v793
    %v905 = vsub.f32 %v904, 3.0
    %v906 = vmul.f32 %v905, %v793
    %v907 = vmul.f32 %v897, 4.0
    %v908 = vmul.f32 %v907, %v897
    %v909 = vsub.f32 3.0, %v908
    %v910 = vmul.f32 %v909, %v897
    %v911 = vmul.f32 %v676, 0.0
    %v912 = vsub.f32 %v572, %v911
    %v913 = vmul.f32 %v572, 0.0
    %v914 = vsub.f32 %v913, %v911
    %v915 = vadd.f32 %v676, %v913
    %v916 = vadd.f32 %v911, %v913
    %v917 = vmul.f32 %v793, %v912
    %v918 = vmul.f32 %v897, %v914
    %v919 = vsub.f32 %v917, %v918
    %v920 = vmul.f32 %v793, %v914
    %v921 = vsub.f32 %v920, %v918
    %v922 = vmul.f32 %v897, %v912
    %v923 = vadd.f32 %v922, %v920
    %v924 = vadd.f32 %v918, %v920
    %v925 = vmul.f32 %v793, %v915
    %v926 = vmul.f32 %v897, %v916
    %v927 = vsub.f32 %v925, %v926
    %v928 = vmul.f32 %v793, %v916
    %v929 = vsub.f32 %v928, %v926
    %v930 = vmul.f32 %v897, %v915
    %v931 = vadd.f32 %v930, %v928
    %v932 = vadd.f32 %v926, %v928
    %s933 = sld [smem:[#allocation2 + $0x72]]
    %s934 = sld [smem:[#allocation2 + $0x7e]]
    %v935 = vstv %s933
    %v936 = vmul.f32 %v935, %v919
    %v937 = vstv %s934
    %v938 = vmul.f32 %v937, %v931
    %v939 = vsub.f32 %v936, %v938
    %v940 = vmul.f32 %v935, %v921
    %v941 = vmul.f32 %v937, %v932
    %v942 = vsub.f32 %v940, %v941
    %v943 = vmul.f32 %v937, %v919
    %v944 = vmul.f32 %v935, %v931
    %v945 = vadd.f32 %v943, %v944
    %v946 = vmul.f32 %v937, %v921
    %v947 = vmul.f32 %v935, %v932
    %v948 = vadd.f32 %v946, %v947
    %v949 = vmul.f32 %v935, %v923
    %v950 = vmul.f32 %v937, %v927
    %v951 = vsub.f32 %v949, %v950
    %v952 = vmul.f32 %v935, %v924
    %v953 = vmul.f32 %v937, %v929
    %v954 = vsub.f32 %v952, %v953
    %v955 = vmul.f32 %v937, %v923
    %v956 = vmul.f32 %v935, %v927
    %v957 = vadd.f32 %v955, %v956
    %v958 = vmul.f32 %v937, %v924
    %v959 = vmul.f32 %v935, %v929
    %v960 = vadd.f32 %v958, %v959
    %s961 = sld [smem:[#allocation2 + $0x73]]
    %s962 = sld [smem:[#allocation2 + $0x7f]]
    %v963 = vstv %s961
    %v964 = vmul.f32 %v963, %v939
    %v965 = vstv %s962
    %v966 = vmul.f32 %v965, %v942
    %v967 = vadd.f32 %v964, %v966
    %v968 = vmul.f32 %v963, %v942
    %v969 = vmul.f32 %v965, %v939
    %v970 = vsub.f32 %v968, %v969
    %v971 = vmul.f32 %v963, %v951
    %v972 = vmul.f32 %v965, %v954
    %v973 = vadd.f32 %v971, %v972
    %v974 = vmul.f32 %v963, %v954
    %v975 = vmul.f32 %v965, %v951
    %v976 = vsub.f32 %v974, %v975
    %v977 = vmul.f32 %v963, %v945
    %v978 = vmul.f32 %v965, %v948
    %v979 = vsub.f32 %v977, %v978
    %v980 = vmul.f32 %v963, %v948
    %v981 = vmul.f32 %v965, %v945
    %v982 = vadd.f32 %v980, %v981
    %v983 = vmul.f32 %v963, %v957
    %v984 = vmul.f32 %v965, %v960
    %v985 = vsub.f32 %v983, %v984
    %v986 = vmul.f32 %v963, %v960
    %v987 = vmul.f32 %v965, %v957
    %v988 = vadd.f32 %v986, %v987
    %s989 = sld [smem:[#allocation2 + $0x74]]
    %s990 = sld [smem:[#allocation2 + $0x80]]
    %v991 = vstv %s989
    %v992 = vmul.f32 %v991, %v967
    %v993 = vstv %s990
    %v994 = vmul.f32 %v993, %v973
    %v995 = vsub.f32 %v992, %v994
    %v996 = vmul.f32 %v991, %v970
    %v997 = vmul.f32 %v993, %v976
    %v998 = vsub.f32 %v996, %v997
    %v999 = vmul.f32 %v993, %v967
    %v1000 = vmul.f32 %v991, %v973
    %v1001 = vadd.f32 %v999, %v1000
    %v1002 = vmul.f32 %v993, %v970
    %v1003 = vmul.f32 %v991, %v976
    %v1004 = vadd.f32 %v1002, %v1003
    %v1005 = vmul.f32 %v991, %v979
    %v1006 = vmul.f32 %v993, %v985
    %v1007 = vsub.f32 %v1005, %v1006
    %v1008 = vmul.f32 %v991, %v982
    %v1009 = vmul.f32 %v993, %v988
    %v1010 = vsub.f32 %v1008, %v1009
    %v1011 = vmul.f32 %v993, %v979
    %v1012 = vmul.f32 %v991, %v985
    %v1013 = vadd.f32 %v1011, %v1012
    %v1014 = vmul.f32 %v993, %v982
    %v1015 = vmul.f32 %v991, %v988
    %v1016 = vadd.f32 %v1014, %v1015
    %s1017 = sld [smem:[#allocation2 + $0x75]]
    %s1018 = sld [smem:[#allocation2 + $0x81]]
    %v1019 = vstv %s1017
    %v1020 = vmul.f32 %v1019, %v995
    %v1021 = vstv %s1018
    %v1022 = vmul.f32 %v1021, %v998
    %v1023 = vadd.f32 %v1020, %v1022
    %v1024 = vmul.f32 %v1019, %v998
    %v1025 = vmul.f32 %v1021, %v995
    %v1026 = vsub.f32 %v1024, %v1025
    %v1027 = vmul.f32 %v1019, %v1007
    %v1028 = vmul.f32 %v1021, %v1010
    %v1029 = vadd.f32 %v1027, %v1028
    %v1030 = vmul.f32 %v1019, %v1010
    %v1031 = vmul.f32 %v1021, %v1007
    %v1032 = vsub.f32 %v1030, %v1031
    %v1033 = vmul.f32 %v1019, %v1001
    %v1034 = vmul.f32 %v1021, %v1004
    %v1035 = vsub.f32 %v1033, %v1034
    %v1036 = vmul.f32 %v1019, %v1004
    %v1037 = vmul.f32 %v1021, %v1001
    %v1038 = vadd.f32 %v1036, %v1037
    %v1039 = vmul.f32 %v1019, %v1013
    %v1040 = vmul.f32 %v1021, %v1016
    %v1041 = vsub.f32 %v1039, %v1040
    %v1042 = vmul.f32 %v1019, %v1016
    %v1043 = vmul.f32 %v1021, %v1013
    %v1044 = vadd.f32 %v1042, %v1043
    %v1045 = vmul.f32 %v679, %v1023
    %v1046 = vmul.f32 %v681, %v1041
    %v1047 = vsub.f32 %v1045, %v1046
    %v1048 = vmul.f32 %v679, %v1026
    %v1049 = vmul.f32 %v681, %v1044
    %v1050 = vsub.f32 %v1048, %v1049
    %v1051 = vmul.f32 %v681, %v1023
    %v1052 = vmul.f32 %v679, %v1041
    %v1053 = vadd.f32 %v1051, %v1052
    %v1054 = vmul.f32 %v681, %v1026
    %v1055 = vmul.f32 %v679, %v1044
    %v1056 = vadd.f32 %v1054, %v1055
    %v1057 = vmul.f32 %v679, %v1035
    %v1058 = vmul.f32 %v681, %v1029
    %v1059 = vsub.f32 %v1057, %v1058
    %v1060 = vmul.f32 %v679, %v1038
    %v1061 = vmul.f32 %v681, %v1032
    %v1062 = vsub.f32 %v1060, %v1061
    %v1063 = vmul.f32 %v681, %v1035
    %v1064 = vmul.f32 %v679, %v1029
    %v1065 = vadd.f32 %v1063, %v1064
    %v1066 = vmul.f32 %v681, %v1038
    %v1067 = vmul.f32 %v679, %v1032
    %v1068 = vadd.f32 %v1066, %v1067
    %v1069 = vmul.f32 %v900, %v1047
    %v1070 = vmul.f32 %v902, %v1059
    %v1071 = vsub.f32 %v1069, %v1070
    %v1072 = vmul.f32 %v900, %v1050
    %v1073 = vmul.f32 %v902, %v1062
    %v1074 = vsub.f32 %v1072, %v1073
    %v1075 = vmul.f32 %v902, %v1047
    %v1076 = vmul.f32 %v900, %v1059
    %v1077 = vadd.f32 %v1075, %v1076
    %v1078 = vmul.f32 %v902, %v1050
    %v1079 = vmul.f32 %v900, %v1062
    %v1080 = vadd.f32 %v1078, %v1079
    %v1081 = vmul.f32 %v900, %v1053
    %v1082 = vmul.f32 %v902, %v1065
    %v1083 = vsub.f32 %v1081, %v1082
    %v1084 = vmul.f32 %v900, %v1056
    %v1085 = vmul.f32 %v902, %v1068
    %v1086 = vsub.f32 %v1084, %v1085
    %v1087 = vmul.f32 %v902, %v1053
    %v1088 = vmul.f32 %v900, %v1065
    %v1089 = vadd.f32 %v1087, %v1088
    %v1090 = vmul.f32 %v902, %v1056
    %v1091 = vmul.f32 %v900, %v1068
    %v1092 = vadd.f32 %v1090, %v1091
    %s1093 = sld [smem:[#allocation2 + $0x76]]
    %s1094 = sld [smem:[#allocation2 + $0x82]]
    %v1095 = vstv %s1093
    %v1096 = vmul.f32 %v1095, %v1071
    %v1097 = vstv %s1094
    %v1098 = vmul.f32 %v1097, %v1089
    %v1099 = vsub.f32 %v1096, %v1098
    %v1100 = vmul.f32 %v1095, %v1074
    %v1101 = vmul.f32 %v1097, %v1092
    %v1102 = vsub.f32 %v1100, %v1101
    %v1103 = vmul.f32 %v1097, %v1071
    %v1104 = vmul.f32 %v1095, %v1089
    %v1105 = vadd.f32 %v1103, %v1104
    %v1106 = vmul.f32 %v1097, %v1074
    %v1107 = vmul.f32 %v1095, %v1092
    %v1108 = vadd.f32 %v1106, %v1107
    %v1109 = vmul.f32 %v1095, %v1077
    %v1110 = vmul.f32 %v1097, %v1083
    %v1111 = vsub.f32 %v1109, %v1110
    %v1112 = vmul.f32 %v1095, %v1080
    %v1113 = vmul.f32 %v1097, %v1086
    %v1114 = vsub.f32 %v1112, %v1113
    %v1115 = vmul.f32 %v1097, %v1077
    %v1116 = vmul.f32 %v1095, %v1083
    %v1117 = vadd.f32 %v1115, %v1116
    %v1118 = vmul.f32 %v1097, %v1080
    %v1119 = vmul.f32 %v1095, %v1086
    %v1120 = vadd.f32 %v1118, %v1119
    %s1121 = sld [smem:[#allocation2 + $0x77]]
    %s1122 = sld [smem:[#allocation2 + $0x83]]
    %v1123 = vstv %s1121
    %v1124 = vmul.f32 %v1123, %v1099
    %v1125 = vstv %s1122
    %v1126 = vmul.f32 %v1125, %v1102
    %v1127 = vadd.f32 %v1124, %v1126
    %v1128 = vmul.f32 %v1123, %v1102
    %v1129 = vmul.f32 %v1125, %v1099
    %v1130 = vsub.f32 %v1128, %v1129
    %v1131 = vmul.f32 %v1123, %v1111
    %v1132 = vmul.f32 %v1125, %v1114
    %v1133 = vadd.f32 %v1131, %v1132
    %v1134 = vmul.f32 %v1123, %v1114
    %v1135 = vmul.f32 %v1125, %v1111
    %v1136 = vsub.f32 %v1134, %v1135
    %v1137 = vmul.f32 %v1123, %v1105
    %v1138 = vmul.f32 %v1125, %v1108
    %v1139 = vsub.f32 %v1137, %v1138
    %v1140 = vmul.f32 %v1123, %v1108
    %v1141 = vmul.f32 %v1125, %v1105
    %v1142 = vadd.f32 %v1140, %v1141
    %v1143 = vmul.f32 %v1123, %v1117
    %v1144 = vmul.f32 %v1125, %v1120
    %v1145 = vsub.f32 %v1143, %v1144
    %v1146 = vmul.f32 %v1123, %v1120
    %v1147 = vmul.f32 %v1125, %v1117
    %v1148 = vadd.f32 %v1146, %v1147
    %s1149 = sld [smem:[#allocation2 + $0x78]]
    %s1150 = sld [smem:[#allocation2 + $0x84]]
    %v1151 = vstv %s1149
    %v1152 = vmul.f32 %v1151, %v1127
    %v1153 = vstv %s1150
    %v1154 = vmul.f32 %v1153, %v1133
    %v1155 = vsub.f32 %v1152, %v1154
    %v1156 = vmul.f32 %v1151, %v1130
    %v1157 = vmul.f32 %v1153, %v1136
    %v1158 = vsub.f32 %v1156, %v1157
    %v1159 = vmul.f32 %v1153, %v1127
    %v1160 = vmul.f32 %v1151, %v1133
    %v1161 = vadd.f32 %v1159, %v1160
    %v1162 = vmul.f32 %v1153, %v1130
    %v1163 = vmul.f32 %v1151, %v1136
    %v1164 = vadd.f32 %v1162, %v1163
    %v1165 = vmul.f32 %v1151, %v1139
    %v1166 = vmul.f32 %v1153, %v1145
    %v1167 = vsub.f32 %v1165, %v1166
    %v1168 = vmul.f32 %v1151, %v1142
    %v1169 = vmul.f32 %v1153, %v1148
    %v1170 = vsub.f32 %v1168, %v1169
    %v1171 = vmul.f32 %v1153, %v1139
    %v1172 = vmul.f32 %v1151, %v1145
    %v1173 = vadd.f32 %v1171, %v1172
    %v1174 = vmul.f32 %v1153, %v1142
    %v1175 = vmul.f32 %v1151, %v1148
    %v1176 = vadd.f32 %v1174, %v1175
    %s1177 = sld [smem:[#allocation2 + $0x79]]
    %s1178 = sld [smem:[#allocation2 + $0x85]]
    %v1179 = vstv %s1177
    %v1180 = vmul.f32 %v1179, %v1155
    %v1181 = vstv %s1178
    %v1182 = vmul.f32 %v1181, %v1158
    %v1183 = vadd.f32 %v1180, %v1182
    %v1184 = vmul.f32 %v1179, %v1158
    %v1185 = vmul.f32 %v1181, %v1155
    %v1186 = vsub.f32 %v1184, %v1185
    %v1187 = vmul.f32 %v1179, %v1167
    %v1188 = vmul.f32 %v1181, %v1170
    %v1189 = vadd.f32 %v1187, %v1188
    %v1190 = vmul.f32 %v1179, %v1170
    %v1191 = vmul.f32 %v1181, %v1167
    %v1192 = vsub.f32 %v1190, %v1191
    %v1193 = vmul.f32 %v1179, %v1161
    %v1194 = vmul.f32 %v1181, %v1164
    %v1195 = vsub.f32 %v1193, %v1194
    %v1196 = vmul.f32 %v1179, %v1164
    %v1197 = vmul.f32 %v1181, %v1161
    %v1198 = vadd.f32 %v1196, %v1197
    %v1199 = vmul.f32 %v1179, %v1173
    %v1200 = vmul.f32 %v1181, %v1176
    %v1201 = vsub.f32 %v1199, %v1200
    %v1202 = vmul.f32 %v1179, %v1176
    %v1203 = vmul.f32 %v1181, %v1173
    %v1204 = vadd.f32 %v1202, %v1203
    %v1205 = vmul.f32 %v685, %v1183
    %v1206 = vmul.f32 %v689, %v1201
    %v1207 = vsub.f32 %v1205, %v1206
    %v1208 = vmul.f32 %v685, %v1186
    %v1209 = vmul.f32 %v689, %v1204
    %v1210 = vsub.f32 %v1208, %v1209
    %v1211 = vmul.f32 %v689, %v1183
    %v1212 = vmul.f32 %v685, %v1201
    %v1213 = vadd.f32 %v1211, %v1212
    %v1214 = vmul.f32 %v689, %v1186
    %v1215 = vmul.f32 %v685, %v1204
    %v1216 = vadd.f32 %v1214, %v1215
    %v1217 = vmul.f32 %v685, %v1195
    %v1218 = vmul.f32 %v689, %v1189
    %v1219 = vsub.f32 %v1217, %v1218
    %v1220 = vmul.f32 %v685, %v1198
    %v1221 = vmul.f32 %v689, %v1192
    %v1222 = vsub.f32 %v1220, %v1221
    %v1223 = vmul.f32 %v689, %v1195
    %v1224 = vmul.f32 %v685, %v1189
    %v1225 = vadd.f32 %v1223, %v1224
    %v1226 = vmul.f32 %v689, %v1198
    %v1227 = vmul.f32 %v685, %v1192
    %v1228 = vadd.f32 %v1226, %v1227
    %v1229 = vmul.f32 %v906, %v1207
    %v1230 = vmul.f32 %v910, %v1219
    %v1231 = vsub.f32 %v1229, %v1230
    %v1232 = vmul.f32 %v906, %v1210
    %v1233 = vmul.f32 %v910, %v1222
    %v1234 = vsub.f32 %v1232, %v1233
    %v1235 = vmul.f32 %v910, %v1207
    %v1236 = vmul.f32 %v906, %v1219
    %v1237 = vadd.f32 %v1235, %v1236
    %v1238 = vmul.f32 %v910, %v1210
    %v1239 = vmul.f32 %v906, %v1222
    %v1240 = vadd.f32 %v1238, %v1239
    %v1241 = vmul.f32 %v906, %v1213
    %v1242 = vmul.f32 %v910, %v1225
    %v1243 = vsub.f32 %v1241, %v1242
    %v1244 = vmul.f32 %v906, %v1216
    %v1245 = vmul.f32 %v910, %v1228
    %v1246 = vsub.f32 %v1244, %v1245
    %v1247 = vmul.f32 %v910, %v1213
    %v1248 = vmul.f32 %v906, %v1225
    %v1249 = vadd.f32 %v1247, %v1248
    %v1250 = vmul.f32 %v910, %v1216
    %v1251 = vmul.f32 %v906, %v1228
    %v1252 = vadd.f32 %v1250, %v1251
    %s1253 = sld [smem:[#allocation2 + $0x7a]]
    %s1254 = sld [smem:[#allocation2 + $0x86]]
    %v1255 = vstv %s1253
    %v1256 = vmul.f32 %v1255, %v1231
    %v1257 = vstv %s1254
    %v1258 = vmul.f32 %v1257, %v1249
    %v1259 = vsub.f32 %v1256, %v1258
    %v1260 = vmul.f32 %v1255, %v1234
    %v1261 = vmul.f32 %v1257, %v1252
    %v1262 = vsub.f32 %v1260, %v1261
    %v1263 = vmul.f32 %v1257, %v1231
    %v1264 = vmul.f32 %v1255, %v1249
    %v1265 = vadd.f32 %v1263, %v1264
    %v1266 = vmul.f32 %v1257, %v1234
    %v1267 = vmul.f32 %v1255, %v1252
    %v1268 = vadd.f32 %v1266, %v1267
    %v1269 = vmul.f32 %v1255, %v1237
    %v1270 = vmul.f32 %v1257, %v1243
    %v1271 = vsub.f32 %v1269, %v1270
    %v1272 = vmul.f32 %v1255, %v1240
    %v1273 = vmul.f32 %v1257, %v1246
    %v1274 = vsub.f32 %v1272, %v1273
    %v1275 = vmul.f32 %v1257, %v1237
    %v1276 = vmul.f32 %v1255, %v1243
    %v1277 = vadd.f32 %v1275, %v1276
    %v1278 = vmul.f32 %v1257, %v1240
    %v1279 = vmul.f32 %v1255, %v1246
    %v1280 = vadd.f32 %v1278, %v1279
    %s1281 = sld [smem:[#allocation2 + $0x7b]]
    %s1282 = sld [smem:[#allocation2 + $0x87]]
    %v1283 = vstv %s1281
    %v1284 = vmul.f32 %v1283, %v1259
    %v1285 = vstv %s1282
    %v1286 = vmul.f32 %v1285, %v1262
    %v1287 = vadd.f32 %v1284, %v1286
    %v1288 = vmul.f32 %v1283, %v1262
    %v1289 = vmul.f32 %v1285, %v1259
    %v1290 = vsub.f32 %v1288, %v1289
    %v1291 = vmul.f32 %v1283, %v1271
    %v1292 = vmul.f32 %v1285, %v1274
    %v1293 = vadd.f32 %v1291, %v1292
    %v1294 = vmul.f32 %v1283, %v1274
    %v1295 = vmul.f32 %v1285, %v1271
    %v1296 = vsub.f32 %v1294, %v1295
    %v1297 = vmul.f32 %v1283, %v1265
    %v1298 = vmul.f32 %v1285, %v1268
    %v1299 = vsub.f32 %v1297, %v1298
    %v1300 = vmul.f32 %v1283, %v1268
    %v1301 = vmul.f32 %v1285, %v1265
    %v1302 = vadd.f32 %v1300, %v1301
    %v1303 = vmul.f32 %v1283, %v1277
    %v1304 = vmul.f32 %v1285, %v1280
    %v1305 = vsub.f32 %v1303, %v1304
    %v1306 = vmul.f32 %v1283, %v1280
    %v1307 = vmul.f32 %v1285, %v1277
    %v1308 = vadd.f32 %v1306, %v1307
    %s1309 = sld [smem:[#allocation2 + $0x7c]]
    %s1310 = sld [smem:[#allocation2 + $0x88]]
    %v1311 = vstv %s1309
    %v1312 = vmul.f32 %v1311, %v1287
    %v1313 = vstv %s1310
    %v1314 = vmul.f32 %v1313, %v1293
    %v1315 = vsub.f32 %v1312, %v1314
    %v1316 = vmul.f32 %v1311, %v1290
    %v1317 = vmul.f32 %v1313, %v1296
    %v1318 = vsub.f32 %v1316, %v1317
    %v1319 = vmul.f32 %v1313, %v1287
    %v1320 = vmul.f32 %v1311, %v1293
    %v1321 = vadd.f32 %v1319, %v1320
    %v1322 = vmul.f32 %v1313, %v1290
    %v1323 = vmul.f32 %v1311, %v1296
    %v1324 = vadd.f32 %v1322, %v1323
    %v1325 = vmul.f32 %v1311, %v1299
    %v1326 = vmul.f32 %v1313, %v1305
    %v1327 = vsub.f32 %v1325, %v1326
    %v1328 = vmul.f32 %v1311, %v1302
    %v1329 = vmul.f32 %v1313, %v1308
    %v1330 = vsub.f32 %v1328, %v1329
    %v1331 = vmul.f32 %v1313, %v1299
    %v1332 = vmul.f32 %v1311, %v1305
    %v1333 = vadd.f32 %v1331, %v1332
    %v1334 = vmul.f32 %v1313, %v1302
    %v1335 = vmul.f32 %v1311, %v1308
    %v1336 = vadd.f32 %v1334, %v1335
    %s1337 = sld [smem:[#allocation2 + $0x7d]]
    %s1338 = sld [smem:[#allocation2 + $0x89]]
    %v1339 = vstv %s1337
    %v1340 = vmul.f32 %v1339, %v1315
    %v1341 = vstv %s1338
    %v1342 = vmul.f32 %v1341, %v1318
    %v1343 = vadd.f32 %v1340, %v1342
    %v1344 = vmul.f32 %v1339, %v1318
    %v1345 = vmul.f32 %v1341, %v1315
    %v1346 = vsub.f32 %v1344, %v1345
    %v1347 = vmul.f32 %v1339, %v1327
    %v1348 = vmul.f32 %v1341, %v1330
    %v1349 = vadd.f32 %v1347, %v1348
    %v1350 = vmul.f32 %v1339, %v1330
    %v1351 = vmul.f32 %v1341, %v1327
    %v1352 = vsub.f32 %v1350, %v1351
    %v1353 = vmul.f32 %v1339, %v1321
    %v1354 = vmul.f32 %v1341, %v1324
    %v1355 = vsub.f32 %v1353, %v1354
    %v1356 = vmul.f32 %v1339, %v1324
    %v1357 = vmul.f32 %v1341, %v1321
    %v1358 = vadd.f32 %v1356, %v1357
    %v1359 = vmul.f32 %v1339, %v1333
    %v1360 = vmul.f32 %v1341, %v1336
    %v1361 = vsub.f32 %v1359, %v1360
    %v1362 = vmul.f32 %v1339, %v1336
    %v1363 = vmul.f32 %v1341, %v1333
    %v1364 = vadd.f32 %v1362, %v1363
    %v1365 = vmul.f32 %v1343, %v1343
    %v1366 = vmul.f32 %v1346, %v1346
    %v1367 = vadd.f32 %v1365, %v1366
    %v1368 = vmul.f32 %v1361, %v1361
    %v1369 = vmul.f32 %v1364, %v1364
    %v1370 = vadd.f32 %v1368, %v1369
    %v1371 = vmul.f32 %v1355, %v1355
    %v1372 = vmul.f32 %v1358, %v1358
    %v1373 = vadd.f32 %v1371, %v1372
    %v1374 = vmul.f32 %v1349, %v1349
    %v1375 = vmul.f32 %v1352, %v1352
    %v1376 = vadd.f32 %v1374, %v1375
    %v1377 = vadd.f32 %v1367, %v1370
    %v1378 = vsub.f32 %v1377, %v1373
    %v1379 = vsub.f32 %v1378, %v1376
    %v1380 = vsub.f32 %v1367, %v1370
    %v1381 = vadd.f32 %v1380, %v1373
    %v1382 = vsub.f32 %v1381, %v1376
    %s1383 = sld [smem:[#allocation2 + $0x9a]]
    %s1384 = sld [smem:[#allocation2 + $0x8a]]
    %v1385 = vstv %s1384
    %v1386 = vmul.f32 %v1385, %v1379
    %v1387 = vstv %s1383
    %v1388 = vadd.f32 %v1387, %v1386
    %s1389 = sld [smem:[#allocation2 + $0x92]]
    %v1390 = vstv %s1389
    %v1391 = vmul.f32 %v1390, %v1382
    %v1392 = vadd.f32 %v1388, %v1391
    %v1393 = vmax.f32 %v1392, 0.0
    %s1394 = sld [smem:[#allocation2 + $0x9b]]
    %s1395 = sld [smem:[#allocation2 + $0x8b]]
    %v1396 = vstv %s1395
    %v1397 = vmul.f32 %v1396, %v1379
    %v1398 = vstv %s1394
    %v1399 = vadd.f32 %v1398, %v1397
    %s1400 = sld [smem:[#allocation2 + $0x93]]
    %v1401 = vstv %s1400
    %v1402 = vmul.f32 %v1401, %v1382
    %v1403 = vadd.f32 %v1399, %v1402
    %v1404 = vmax.f32 %v1403, 0.0
    %s1405 = sld [smem:[#allocation2 + $0x9c]]
    %s1406 = sld [smem:[#allocation2 + $0x8c]]
    %v1407 = vstv %s1406
    %v1408 = vmul.f32 %v1407, %v1379
    %v1409 = vstv %s1405
    %v1410 = vadd.f32 %v1409, %v1408
    %s1411 = sld [smem:[#allocation2 + $0x94]]
    %v1412 = vstv %s1411
    %v1413 = vmul.f32 %v1412, %v1382
    %v1414 = vadd.f32 %v1410, %v1413
    %v1415 = vmax.f32 %v1414, 0.0
    %s1416 = sld [smem:[#allocation2 + $0x9d]]
    %s1417 = sld [smem:[#allocation2 + $0x8d]]
    %v1418 = vstv %s1417
    %v1419 = vmul.f32 %v1418, %v1379
    %v1420 = vstv %s1416
    %v1421 = vadd.f32 %v1420, %v1419
    %s1422 = sld [smem:[#allocation2 + $0x95]]
    %v1423 = vstv %s1422
    %v1424 = vmul.f32 %v1423, %v1382
    %v1425 = vadd.f32 %v1421, %v1424
    %v1426 = vmax.f32 %v1425, 0.0
    %s1427 = sld [smem:[#allocation2 + $0x9e]]
    %s1428 = sld [smem:[#allocation2 + $0x8e]]
    %v1429 = vstv %s1428
    %v1430 = vmul.f32 %v1429, %v1379
    %v1431 = vstv %s1427
    %v1432 = vadd.f32 %v1431, %v1430
    %s1433 = sld [smem:[#allocation2 + $0x96]]
    %v1434 = vstv %s1433
    %v1435 = vmul.f32 %v1434, %v1382
    %v1436 = vadd.f32 %v1432, %v1435
    %v1437 = vmax.f32 %v1436, 0.0
    %s1438 = sld [smem:[#allocation2 + $0x9f]]
    %s1439 = sld [smem:[#allocation2 + $0x8f]]
    %v1440 = vstv %s1439
    %v1441 = vmul.f32 %v1440, %v1379
    %v1442 = vstv %s1438
    %v1443 = vadd.f32 %v1442, %v1441
    %s1444 = sld [smem:[#allocation2 + $0x97]]
    %v1445 = vstv %s1444
    %v1446 = vmul.f32 %v1445, %v1382
    %v1447 = vadd.f32 %v1443, %v1446
    %v1448 = vmax.f32 %v1447, 0.0
    %s1449 = sld [smem:[#allocation2 + $0xa0]]
    %s1450 = sld [smem:[#allocation2 + $0x90]]
    %v1451 = vstv %s1450
    %v1452 = vmul.f32 %v1451, %v1379
    %v1453 = vstv %s1449
    %v1454 = vadd.f32 %v1453, %v1452
    %s1455 = sld [smem:[#allocation2 + $0x98]]
    %v1456 = vstv %s1455
    %v1457 = vmul.f32 %v1456, %v1382
    %v1458 = vadd.f32 %v1454, %v1457
    %v1459 = vmax.f32 %v1458, 0.0
    %s1460 = sld [smem:[#allocation2 + $0xa1]]
    %s1461 = sld [smem:[#allocation2 + $0x91]]
    %v1462 = vstv %s1461
    %v1463 = vmul.f32 %v1462, %v1379
    %v1464 = vstv %s1460
    %v1465 = vadd.f32 %v1464, %v1463
    %s1466 = sld [smem:[#allocation2 + $0x99]]
    %v1467 = vstv %s1466
    %v1468 = vmul.f32 %v1467, %v1382
    %v1469 = vadd.f32 %v1465, %v1468
    %v1470 = vmax.f32 %v1469, 0.0
    %s1471 = sld [smem:[#allocation2 + $0xaa]]
    %s1472 = sld [smem:[#allocation2 + $0xa2]]
    %v1473 = vstv %s1472
    %v1474 = vmul.f32 %v1473, %v1393
    %v1475 = vstv %s1471
    %v1476 = vadd.f32 %v1475, %v1474
    %s1477 = sld [smem:[#allocation2 + $0xa3]]
    %v1478 = vstv %s1477
    %v1479 = vmul.f32 %v1478, %v1404
    %v1480 = vadd.f32 %v1476, %v1479
    %s1481 = sld [smem:[#allocation2 + $0xa4]]
    %v1482 = vstv %s1481
    %v1483 = vmul.f32 %v1482, %v1415
    %v1484 = vadd.f32 %v1480, %v1483
    %s1485 = sld [smem:[#allocation2 + $0xa5]]
    %v1486 = vstv %s1485
    %v1487 = vmul.f32 %v1486, %v1426
    %v1488 = vadd.f32 %v1484, %v1487
    %s1489 = sld [smem:[#allocation2 + $0xa6]]
    %v1490 = vstv %s1489
    %v1491 = vmul.f32 %v1490, %v1437
    %v1492 = vadd.f32 %v1488, %v1491
    %s1493 = sld [smem:[#allocation2 + $0xa7]]
    %v1494 = vstv %s1493
    %v1495 = vmul.f32 %v1494, %v1448
    %v1496 = vadd.f32 %v1492, %v1495
    %s1497 = sld [smem:[#allocation2 + $0xa8]]
    %v1498 = vstv %s1497
    %v1499 = vmul.f32 %v1498, %v1459
    %v1500 = vadd.f32 %v1496, %v1499
    %s1501 = sld [smem:[#allocation2 + $0xa9]]
    %v1502 = vstv %s1501
    %v1503 = vmul.f32 %v1502, %v1470
    %v1504 = vadd.f32 %v1500, %v1503
    %1505 = vst [vmem:[%s2] sm:$0xff] %v1504
    // Predicated region
    $region14: #{hybrid_forward.1} parent=1 // pred_check
      _
    $region15: #{hybrid_forward.1} parent=1 // pred_check_branch
      %1507 = sbr.rel (0) target = $region17
    $region16: #{hybrid_forward.1} parent=1 // pred_region
      _
    $region17: #{hybrid_forward.1} parent=1 // pred_fallthru
      _
    // Predicated region
    $region18: #{hybrid_forward.1} parent=1 // pred_check
      _
    $region19: #{hybrid_forward.1} parent=1 // pred_check_branch
      %1509 = sbr.rel (0) target = $region21
    $region20: #{hybrid_forward.1} parent=1 // pred_region
      _
    $region21: #{hybrid_forward.1} parent=1 // pred_fallthru
      _
    %1510 = vsyncpa [#allocation3], 1

</llo_original>
